<compile_context>
chip_gen: v7x
topology: tpu7x:2x2x1
jax: 0.10.0
libtpu: 0.0.40
codegen_flags: <defaults>
</compile_context>

<pallas_src>
import functools
import math

import jax
import jax.numpy as jnp
import numpy as np
from jax import lax
from jax.experimental import pallas as pl
from jax.experimental.pallas import tpu as pltpu


def _encoder_resblock_kernel(x_ref, wl_ref, w1_ref, w2_ref,
                             s1_ref, b1_ref, s2_ref, b2_ref,
                             o_ref, cat_ref, *, H, W):
    """One batch element per grid step.

    x_ref  : (1, H*W, Cp)      bf16 input (channels zero-padded to Cp, a multiple of 128)
    wl_ref : (Cp, Cp)          bf16 left-branch 1x1 conv weight
    w1_ref : (3*Cp, 3*Cp)      bf16 conv1 weight, [ky*Cp + ci, kx*Cp + co]
    w2_ref : (3*Cp, 3*Cp)      bf16 conv2 weight, same arrangement
    s*/b*  : (1, Cp)           folded BatchNorm scale / shift (eval mode), f32
    o_ref  : (1, H*W, Cp)      f32 output
    cat_ref: (H*W + 2W, 3*Cp)  bf16 staging buffer: column block ky holds the activation
                               shifted by dy = ky-1 image rows (all writes/reads row-aligned)
    """
    HW = H * W
    Cp = x_ref.shape[-1]
    K3 = 3 * Cp
    f32 = jnp.float32
    bf16 = jnp.bfloat16

    x = x_ref[0]                                                    # (HW, Cp) bf16

    # x-edge masks for the dx = -1 / +1 taps, kept (HW, 1) and broadcast inside jnp.where.
    xpos = lax.broadcasted_iota(jnp.int32, (HW, 1), 0) % W
    not_left_edge = xpos != 0
    not_right_edge = xpos != (W - 1)

    # Zero only the two thin halo strips that are read but never overwritten by the staging
    # stores below (block-0 columns at rows [W, 2W) and block-2 columns at rows [HW, HW+W)).
    # Done once per grid step, so there is no cross-iteration scratch state.
    cat_ref[W:2 * W, :] = jnp.zeros((W, K3), bf16)
    cat_ref[HW:HW + W, :] = jnp.zeros((W, K3), bf16)

    def conv3x3(act_bf16, w_ref):
        # Column block ky holds act shifted by dy = ky-1 image rows; row offsets 2W / W / 0
        # are multiples of W (W % 8 == 0), so all three stores are aligned, unmasked stores.
        cat_ref[2 * W:2 * W + HW, 0:Cp] = act_bf16                  # ky = 0  (dy = -1)
        cat_ref[W:W + HW, Cp:2 * Cp] = act_bf16                     # ky = 1  (dy =  0)
        cat_ref[0:HW, 2 * Cp:3 * Cp] = act_bf16                     # ky = 2  (dy = +1)
        # Single aligned patch read + single fused matmul: K = 3Cp (ky, ci), N = 3Cp (kx, co).
        patch = cat_ref[W:W + HW, :]                                # (HW, 3Cp) bf16, aligned
        res = jnp.dot(patch, w_ref[...], preferred_element_type=f32)   # (HW, 3Cp) f32
        # Output column block kx needs the value computed at flattened row p + (kx-1):
        #   kx=0 (dx=-1): shift by +1 row; kx=2 (dx=+1): shift by -1 row (== HW-1).
        # Wrapped rows land exactly on the masked image edges, so the rolls are exact.
        c1 = res[:, Cp:2 * Cp]
        c0 = jnp.where(not_left_edge,
                       pltpu.roll(res[:, 0:Cp], shift=1, axis=0), 0.0)
        c2 = jnp.where(not_right_edge,
                       pltpu.roll(res[:, 2 * Cp:3 * Cp], shift=HW - 1, axis=0), 0.0)
        return c0 + c1 + c2                                         # (HW, Cp) f32

    # ---------------- right branch: BN1 (eval, folded) + ReLU -> conv1 (3x3, padding=1)
    xf = x.astype(f32)
    r1 = jnp.maximum(xf * s1_ref[...] + b1_ref[...], 0.0).astype(bf16)
    h1 = conv3x3(r1, w1_ref)

    # BN2 (eval, folded) + ReLU -> conv2 (3x3, padding=1)
    r2 = jnp.maximum(h1 * s2_ref[...] + b2_ref[...], 0.0).astype(bf16)
    h2 = conv3x3(r2, w2_ref)

    # ---------------- left branch: Identity downsample + 1x1 conv (channel matmul, bf16 MXU)
    left = jnp.dot(x, wl_ref[...], preferred_element_type=f32)

    # Single lane-dense store of the whole output block.
    o_ref[0] = left + h2


def _round_up(v, m):
    return (v + m - 1) // m * m


def _pick_vmem_limit_bytes():
    """Generation-aware scoped-VMEM limit: ~75% of physical, capped at 100 MiB.
    (~96 MiB on v5e/v6e with 128 MiB physical, ~48 MiB on v7x with 64 MiB physical.)"""
    try:
        phys = int(pltpu.get_tpu_info().vmem_capacity_bytes)
    except Exception:
        phys = 64 * 1024 * 1024          # conservative fallback, safe on every generation
    return min((phys * 3) // 4, 100 * 1024 * 1024)


def encoder_resblock(x, wl, w1, w2, s1, b1, s2, b2):
    """x: (N, H, W, Cin) NHWC f32.  wl: (Cin, Cout).  w1/w2: (3,3,Ci,Co) HWIO.  s*/b*: (C,).
    Returns (N, H, W, Cout) f32."""
    N, H, W, Cin = x.shape
    Cout = wl.shape[1]
    HW = H * W
    assert W % 8 == 0, "W must be a multiple of 8 for aligned dy-staging stores/reads"
    # Pad channels to a multiple of 128 so activations/weights/output are lane-dense.
    Cp = _round_up(max(Cin, Cout), 128)

    # bf16 input (all MXU operands are bf16; f32 accumulation happens in-kernel).
    xp = jnp.pad(x.astype(jnp.float32),
                 ((0, 0), (0, 0), (0, 0), (0, Cp - Cin))).reshape(N, HW, Cp).astype(jnp.bfloat16)
    wlb = jnp.pad(wl.astype(jnp.float32),
                  ((0, Cp - Cin), (0, Cp - Cout))).astype(jnp.bfloat16)

    def prep_conv_weight(w, ci):
        # HWIO (3,3,ci,Cout) -> padded (3,3,Cp,Cp) -> (ky, ci, kx, co) -> (3*Cp, 3*Cp)
        # so rows match the staged patch (ky, channel) and columns are (kx, out-channel).
        wp = jnp.pad(w.astype(jnp.float32),
                     ((0, 0), (0, 0), (0, Cp - ci), (0, Cp - Cout)))
        return jnp.transpose(wp, (0, 2, 1, 3)).reshape(3 * Cp, 3 * Cp).astype(jnp.bfloat16)

    w1c = prep_conv_weight(w1, Cin)
    w2c = prep_conv_weight(w2, Cout)

    def padvec(v):
        return jnp.pad(v.astype(jnp.float32), (0, Cp - v.shape[0])).reshape(1, Cp)

    s1p, b1p, s2p, b2p = padvec(s1), padvec(b1), padvec(s2), padvec(b2)

    kernel = functools.partial(_encoder_resblock_kernel, H=H, W=W)
    out = pl.pallas_call(
        kernel,
        out_shape=jax.ShapeDtypeStruct((N, HW, Cp), jnp.float32),
        grid=(N,),
        in_specs=[
            pl.BlockSpec((1, HW, Cp), lambda n: (n, 0, 0)),           # x (bf16)
            # Grid-invariant operands: constant index_maps -> fetched once by the pipeline.
            pl.BlockSpec((Cp, Cp), lambda n: (0, 0)),                 # wl
            pl.BlockSpec((3 * Cp, 3 * Cp), lambda n: (0, 0)),         # conv1 weight
            pl.BlockSpec((3 * Cp, 3 * Cp), lambda n: (0, 0)),         # conv2 weight
            pl.BlockSpec((1, Cp), lambda n: (0, 0)),                  # s1
            pl.BlockSpec((1, Cp), lambda n: (0, 0)),                  # b1
            pl.BlockSpec((1, Cp), lambda n: (0, 0)),                  # s2
            pl.BlockSpec((1, Cp), lambda n: (0, 0)),                  # b2
        ],
        out_specs=pl.BlockSpec((1, HW, Cp), lambda n: (n, 0, 0)),
        scratch_shapes=[
            pltpu.VMEM((HW + 2 * W, 3 * Cp), jnp.bfloat16),           # dy-shift staging buffer
        ],
        compiler_params=pltpu.CompilerParams(
            dimension_semantics=("parallel",),
            vmem_limit_bytes=_pick_vmem_limit_bytes(),
        ),
    )(xp, wlb, w1c, w2c, s1p, b1p, s2p, b2p)
    return out.reshape(N, H, W, Cp)[..., :Cout]


def _xavier_uniform(key, shape_hwio, gain):
    kh, kw, cin, cout = shape_hwio
    fan_in = cin * kh * kw
    fan_out = cout * kh * kw
    bound = gain * math.sqrt(6.0 / (fan_in + fan_out))
    return jax.random.uniform(key, shape_hwio, jnp.float32, -bound, bound)


def _reference(x, wl, w1, w2, s1, b1, s2, b2):
    """Pure-JAX f32 reference (same NHWC/HWIO layout)."""
    dn = ("NHWC", "HWIO", "NHWC")
    cin, cout = wl.shape
    left = lax.conv_general_dilated(x, wl.reshape(1, 1, cin, cout), (1, 1), "SAME",
                                    dimension_numbers=dn, precision=lax.Precision.HIGHEST)
    r = jnp.maximum(x * s1 + b1, 0.0)
    r = lax.conv_general_dilated(r, w1, (1, 1), "SAME",
                                 dimension_numbers=dn, precision=lax.Precision.HIGHEST)
    r = jnp.maximum(r * s2 + b2, 0.0)
    r = lax.conv_general_dilated(r, w2, (1, 1), "SAME",
                                 dimension_numbers=dn, precision=lax.Precision.HIGHEST)
    return left + r


if __name__ == "__main__":
    N, H, W = 2, 16, 16
    Cin, Cout = 4, 8
    eps = 1e-5

    key = jax.random.PRNGKey(0)
    kx, kwl, kw1, kw2 = jax.random.split(key, 4)

    # input (NHWC); the equivalent PyTorch input is x.transpose(0, 3, 1, 2) -> (N, Cin, H, W)
    x = jax.random.normal(kx, (N, H, W, Cin), jnp.float32)

    # conv weights, xavier_uniform like module.initialize(): gain=1 (left), gain=sqrt(2) (right)
    wl = _xavier_uniform(kwl, (1, 1, Cin, Cout), gain=1.0)[0, 0]          # (Cin, Cout)
    w1 = _xavier_uniform(kw1, (3, 3, Cin, Cout), gain=math.sqrt(2.0))
    w2 = _xavier_uniform(kw2, (3, 3, Cout, Cout), gain=math.sqrt(2.0))

    # BatchNorm2d at PyTorch defaults (gamma=1, beta=0, running_mean=0, running_var=1),
    # folded to per-channel scale/shift for eval-mode normalization.
    def bn_fold(gamma, beta, mean, var):
        s = gamma / jnp.sqrt(var + eps)
        b = beta - mean * s
        return s.astype(jnp.float32), b.astype(jnp.float32)

    s1, b1 = bn_fold(jnp.ones(Cin), jnp.zeros(Cin), jnp.zeros(Cin), jnp.ones(Cin))
    s2, b2 = bn_fold(jnp.ones(Cout), jnp.zeros(Cout), jnp.zeros(Cout), jnp.ones(Cout))

    out = encoder_resblock(x, wl, w1, w2, s1, b1, s2, b2)
    out = jax.block_until_ready(out)

    ref = _reference(x, wl, w1, w2, s1, b1, s2, b2)
    # bf16 MXU operands / bf16 input vs an f32 HIGHEST-precision reference: error << 2e-2.
    np.testing.assert_allclose(np.asarray(out), np.asarray(ref), rtol=2e-2, atol=2e-2)

    print("KERNEL_OK")
</pallas_src>

<mosaic_0001>
module attributes {stable_mosaic.version = 11 : i64} {
  func.func @_encoder_resblock_kernel(%arg0: i32, %arg1: memref<1x256x128xbf16, #tpu.memory_space<vmem>>, %arg2: memref<128x128xbf16, #tpu.memory_space<vmem>>, %arg3: memref<384x384xbf16, #tpu.memory_space<vmem>>, %arg4: memref<384x384xbf16, #tpu.memory_space<vmem>>, %arg5: memref<1x128xf32, #tpu.memory_space<vmem>>, %arg6: memref<1x128xf32, #tpu.memory_space<vmem>>, %arg7: memref<1x128xf32, #tpu.memory_space<vmem>>, %arg8: memref<1x128xf32, #tpu.memory_space<vmem>>, %arg9: memref<1x256x128xf32, #tpu.memory_space<vmem>>, %arg10: memref<288x384xbf16, #tpu.memory_space<vmem>>) attributes {dimension_semantics = [#tpu.dimension_semantics<parallel>], iteration_bounds = array<i64: 2>, scalar_prefetch = 0 : i64, scratch_operands = 1 : i64, tpu.core_type = #tpu.core_type<tc>, window_params = [{transform_indices = @transform_0, window_bounds = array<i64: 1, 256, 128>}, {pipeline_mode = #tpu.pipeline_mode<synchronous>, transform_indices = @transform_1, window_bounds = array<i64: 128, 128>}, {pipeline_mode = #tpu.pipeline_mode<synchronous>, transform_indices = @transform_2, window_bounds = array<i64: 384, 384>}, {pipeline_mode = #tpu.pipeline_mode<synchronous>, transform_indices = @transform_3, window_bounds = array<i64: 384, 384>}, {pipeline_mode = #tpu.pipeline_mode<synchronous>, transform_indices = @transform_4, window_bounds = array<i64: 1, 128>}, {pipeline_mode = #tpu.pipeline_mode<synchronous>, transform_indices = @transform_5, window_bounds = array<i64: 1, 128>}, {pipeline_mode = #tpu.pipeline_mode<synchronous>, transform_indices = @transform_6, window_bounds = array<i64: 1, 128>}, {pipeline_mode = #tpu.pipeline_mode<synchronous>, transform_indices = @transform_7, window_bounds = array<i64: 1, 128>}, {transform_indices = @transform_8, window_bounds = array<i64: 1, 256, 128>}]} {
    %c0 = arith.constant 0 : index
    %c0_0 = arith.constant 0 : index
    %c0_1 = arith.constant 0 : index
    %0 = vector.load %arg1[%c0, %c0_0, %c0_1] : memref<1x256x128xbf16, #tpu.memory_space<vmem>>, vector<1x256x128xbf16>
    %1 = vector.shape_cast %0 : vector<1x256x128xbf16> to vector<256x128xbf16>
    %2 = tpu.iota {dimensions = array<i32: 0>} : vector<256x1xi32>
    %c16_i32 = arith.constant 16 : i32
    %c0_i32 = arith.constant 0 : i32
    %3 = arith.cmpi eq, %c16_i32, %c0_i32 : i32
    %c1_i32 = arith.constant 1 : i32
    %4 = arith.select %3, %c1_i32, %c16_i32 : i32
    %5 = vector.broadcast %4 : i32 to vector<256x1xi32>
    %6 = arith.remsi %2, %5 : vector<256x1xi32>
    %c0_i32_2 = arith.constant 0 : i32
    %7 = vector.broadcast %c0_i32_2 : i32 to vector<256x1xi32>
    %8 = arith.cmpi ne, %6, %7 : vector<256x1xi32>
    %c0_i32_3 = arith.constant 0 : i32
    %9 = vector.broadcast %c0_i32_3 : i32 to vector<256x1xi32>
    %10 = arith.cmpi slt, %6, %9 : vector<256x1xi32>
    %c0_i32_4 = arith.constant 0 : i32
    %11 = arith.cmpi slt, %4, %c0_i32_4 : i32
    %12 = vector.broadcast %11 : i1 to vector<256x1xi1>
    %13 = vector.broadcast %12 : vector<256x1xi1> to vector<256x1xi1>
    %14 = arith.xori %10, %13 : vector<256x1xi1>
    %15 = arith.andi %14, %8 : vector<256x1xi1>
    %16 = vector.broadcast %4 : i32 to vector<256x1xi32>
    %17 = arith.addi %6, %16 : vector<256x1xi32>
    %18 = arith.select %15, %17, %6 : vector<256x1xi1>, vector<256x1xi32>
    %c0_i32_5 = arith.constant 0 : i32
    %19 = vector.broadcast %c0_i32_5 : i32 to vector<256x1xi32>
    %20 = arith.cmpi ne, %18, %19 : vector<256x1xi32>
    %c15_i32 = arith.constant 15 : i32
    %21 = vector.broadcast %c15_i32 : i32 to vector<256x1xi32>
    %22 = arith.cmpi ne, %18, %21 : vector<256x1xi32>
    %cst = arith.constant 0.000000e+00 : bf16
    %23 = vector.broadcast %cst : bf16 to vector<16x384xbf16>
    %c16 = arith.constant 16 : index
    %c0_6 = arith.constant 0 : index
    %24 = vector.load %arg10[%c16, %c0_6] : memref<288x384xbf16, #tpu.memory_space<vmem>>, vector<16x384xbf16>
    tpu.vector_store %arg10[%c16, %c0_6], %23 {strides = array<i32>} : memref<288x384xbf16, #tpu.memory_space<vmem>>, vector<16x384xbf16>,
    %cst_7 = arith.constant 0.000000e+00 : bf16
    %25 = vector.broadcast %cst_7 : bf16 to vector<16x384xbf16>
    %c256 = arith.constant 256 : index
    %c0_8 = arith.constant 0 : index
    %26 = vector.load %arg10[%c256, %c0_8] : memref<288x384xbf16, #tpu.memory_space<vmem>>, vector<16x384xbf16>
    tpu.vector_store %arg10[%c256, %c0_8], %25 {strides = array<i32>} : memref<288x384xbf16, #tpu.memory_space<vmem>>, vector<16x384xbf16>,
    %27 = arith.extf %1 : vector<256x128xbf16> to vector<256x128xf32>
    %c0_9 = arith.constant 0 : index
    %c0_10 = arith.constant 0 : index
    %28 = vector.load %arg5[%c0_9, %c0_10] : memref<1x128xf32, #tpu.memory_space<vmem>>, vector<1x128xf32>
    %29 = vector.broadcast %28 : vector<1x128xf32> to vector<256x128xf32>
    %30 = arith.mulf %27, %29 : vector<256x128xf32>
    %c0_11 = arith.constant 0 : index
    %c0_12 = arith.constant 0 : index
    %31 = vector.load %arg6[%c0_11, %c0_12] : memref<1x128xf32, #tpu.memory_space<vmem>>, vector<1x128xf32>
    %32 = vector.broadcast %31 : vector<1x128xf32> to vector<256x128xf32>
    %33 = arith.addf %30, %32 : vector<256x128xf32>
    %cst_13 = arith.constant 0.000000e+00 : f32
    %34 = vector.broadcast %cst_13 : f32 to vector<256x128xf32>
    %35 = arith.maximumf %33, %34 : vector<256x128xf32>
    %36 = arith.truncf %35 : vector<256x128xf32> to vector<256x128xbf16>
    %c32 = arith.constant 32 : index
    %c0_14 = arith.constant 0 : index
    %37 = vector.load %arg10[%c32, %c0_14] : memref<288x384xbf16, #tpu.memory_space<vmem>>, vector<256x128xbf16>
    tpu.vector_store %arg10[%c32, %c0_14], %36 {strides = array<i32>} : memref<288x384xbf16, #tpu.memory_space<vmem>>, vector<256x128xbf16>,
    %c16_15 = arith.constant 16 : index
    %c128 = arith.constant 128 : index
    %38 = vector.load %arg10[%c16_15, %c128] : memref<288x384xbf16, #tpu.memory_space<vmem>>, vector<256x128xbf16>
    tpu.vector_store %arg10[%c16_15, %c128], %36 {strides = array<i32>} : memref<288x384xbf16, #tpu.memory_space<vmem>>, vector<256x128xbf16>,
    %c0_16 = arith.constant 0 : index
    %c256_17 = arith.constant 256 : index
    %39 = vector.load %arg10[%c0_16, %c256_17] : memref<288x384xbf16, #tpu.memory_space<vmem>>, vector<256x128xbf16>
    tpu.vector_store %arg10[%c0_16, %c256_17], %36 {strides = array<i32>} : memref<288x384xbf16, #tpu.memory_space<vmem>>, vector<256x128xbf16>,
    %c16_18 = arith.constant 16 : index
    %c0_19 = arith.constant 0 : index
    %40 = vector.load %arg10[%c16_18, %c0_19] : memref<288x384xbf16, #tpu.memory_space<vmem>>, vector<256x384xbf16>
    %c0_20 = arith.constant 0 : index
    %c0_21 = arith.constant 0 : index
    %41 = vector.load %arg3[%c0_20, %c0_21] : memref<384x384xbf16, #tpu.memory_space<vmem>>, vector<384x384xbf16>
    %cst_22 = arith.constant dense<0.000000e+00> : vector<256x384xf32>
    %42 = tpu.matmul %40, %41, %cst_22 {dimension_numbers = #tpu.dot_dimension_numbers<[1], [0], [0], [1], [0, 0, 1, 1], [], []>} : vector<256x384xbf16>, vector<384x384xbf16>, vector<256x384xf32> -> vector<256x384xf32>
    %43 = vector.extract_strided_slice %42 {offsets = [0, 128], sizes = [256, 128], strides = [1, 1]} : vector<256x384xf32> to vector<256x128xf32>
    %44 = vector.extract_strided_slice %42 {offsets = [0, 0], sizes = [256, 128], strides = [1, 1]} : vector<256x384xf32> to vector<256x128xf32>
    %c1_i32_23 = arith.constant 1 : i32
    %45 = tpu.dynamic_rotate %44 by %c1_i32_23 dim 0 : vector<256x128xf32>, i32 -> vector<256x128xf32>
    %cst_24 = arith.constant 0.000000e+00 : f32
    %46 = vector.shape_cast %20 : vector<256x1xi1> to vector<256x1xi1>
    %47 = vector.broadcast %46 : vector<256x1xi1> to vector<256x128xi1>
    %48 = vector.broadcast %cst_24 : f32 to vector<256x128xf32>
    %49 = arith.select %47, %45, %48 : vector<256x128xi1>, vector<256x128xf32>
    %50 = vector.extract_strided_slice %42 {offsets = [0, 256], sizes = [256, 128], strides = [1, 1]} : vector<256x384xf32> to vector<256x128xf32>
    %c255_i32 = arith.constant 255 : i32
    %51 = tpu.dynamic_rotate %50 by %c255_i32 dim 0 : vector<256x128xf32>, i32 -> vector<256x128xf32>
    %cst_25 = arith.constant 0.000000e+00 : f32
    %52 = vector.shape_cast %22 : vector<256x1xi1> to vector<256x1xi1>
    %53 = vector.broadcast %52 : vector<256x1xi1> to vector<256x128xi1>
    %54 = vector.broadcast %cst_25 : f32 to vector<256x128xf32>
    %55 = arith.select %53, %51, %54 : vector<256x128xi1>, vector<256x128xf32>
    %56 = arith.addf %49, %43 : vector<256x128xf32>
    %57 = arith.addf %56, %55 : vector<256x128xf32>
    %c0_26 = arith.constant 0 : index
    %c0_27 = arith.constant 0 : index
    %58 = vector.load %arg7[%c0_26, %c0_27] : memref<1x128xf32, #tpu.memory_space<vmem>>, vector<1x128xf32>
    %59 = vector.broadcast %58 : vector<1x128xf32> to vector<256x128xf32>
    %60 = arith.mulf %57, %59 : vector<256x128xf32>
    %c0_28 = arith.constant 0 : index
    %c0_29 = arith.constant 0 : index
    %61 = vector.load %arg8[%c0_28, %c0_29] : memref<1x128xf32, #tpu.memory_space<vmem>>, vector<1x128xf32>
    %62 = vector.broadcast %61 : vector<1x128xf32> to vector<256x128xf32>
    %63 = arith.addf %60, %62 : vector<256x128xf32>
    %cst_30 = arith.constant 0.000000e+00 : f32
    %64 = vector.broadcast %cst_30 : f32 to vector<256x128xf32>
    %65 = arith.maximumf %63, %64 : vector<256x128xf32>
    %66 = arith.truncf %65 : vector<256x128xf32> to vector<256x128xbf16>
    %c32_31 = arith.constant 32 : index
    %c0_32 = arith.constant 0 : index
    %67 = vector.load %arg10[%c32_31, %c0_32] : memref<288x384xbf16, #tpu.memory_space<vmem>>, vector<256x128xbf16>
    tpu.vector_store %arg10[%c32_31, %c0_32], %66 {strides = array<i32>} : memref<288x384xbf16, #tpu.memory_space<vmem>>, vector<256x128xbf16>,
    %c16_33 = arith.constant 16 : index
    %c128_34 = arith.constant 128 : index
    %68 = vector.load %arg10[%c16_33, %c128_34] : memref<288x384xbf16, #tpu.memory_space<vmem>>, vector<256x128xbf16>
    tpu.vector_store %arg10[%c16_33, %c128_34], %66 {strides = array<i32>} : memref<288x384xbf16, #tpu.memory_space<vmem>>, vector<256x128xbf16>,
    %c0_35 = arith.constant 0 : index
    %c256_36 = arith.constant 256 : index
    %69 = vector.load %arg10[%c0_35, %c256_36] : memref<288x384xbf16, #tpu.memory_space<vmem>>, vector<256x128xbf16>
    tpu.vector_store %arg10[%c0_35, %c256_36], %66 {strides = array<i32>} : memref<288x384xbf16, #tpu.memory_space<vmem>>, vector<256x128xbf16>,
    %c16_37 = arith.constant 16 : index
    %c0_38 = arith.constant 0 : index
    %70 = vector.load %arg10[%c16_37, %c0_38] : memref<288x384xbf16, #tpu.memory_space<vmem>>, vector<256x384xbf16>
    %c0_39 = arith.constant 0 : index
    %c0_40 = arith.constant 0 : index
    %71 = vector.load %arg4[%c0_39, %c0_40] : memref<384x384xbf16, #tpu.memory_space<vmem>>, vector<384x384xbf16>
    %cst_41 = arith.constant dense<0.000000e+00> : vector<256x384xf32>
    %72 = tpu.matmul %70, %71, %cst_41 {dimension_numbers = #tpu.dot_dimension_numbers<[1], [0], [0], [1], [0, 0, 1, 1], [], []>} : vector<256x384xbf16>, vector<384x384xbf16>, vector<256x384xf32> -> vector<256x384xf32>
    %73 = vector.extract_strided_slice %72 {offsets = [0, 128], sizes = [256, 128], strides = [1, 1]} : vector<256x384xf32> to vector<256x128xf32>
    %74 = vector.extract_strided_slice %72 {offsets = [0, 0], sizes = [256, 128], strides = [1, 1]} : vector<256x384xf32> to vector<256x128xf32>
    %c1_i32_42 = arith.constant 1 : i32
    %75 = tpu.dynamic_rotate %74 by %c1_i32_42 dim 0 : vector<256x128xf32>, i32 -> vector<256x128xf32>
    %cst_43 = arith.constant 0.000000e+00 : f32
    %76 = vector.shape_cast %20 : vector<256x1xi1> to vector<256x1xi1>
    %77 = vector.broadcast %76 : vector<256x1xi1> to vector<256x128xi1>
    %78 = vector.broadcast %cst_43 : f32 to vector<256x128xf32>
    %79 = arith.select %77, %75, %78 : vector<256x128xi1>, vector<256x128xf32>
    %80 = vector.extract_strided_slice %72 {offsets = [0, 256], sizes = [256, 128], strides = [1, 1]} : vector<256x384xf32> to vector<256x128xf32>
    %c255_i32_44 = arith.constant 255 : i32
    %81 = tpu.dynamic_rotate %80 by %c255_i32_44 dim 0 : vector<256x128xf32>, i32 -> vector<256x128xf32>
    %cst_45 = arith.constant 0.000000e+00 : f32
    %82 = vector.shape_cast %22 : vector<256x1xi1> to vector<256x1xi1>
    %83 = vector.broadcast %82 : vector<256x1xi1> to vector<256x128xi1>
    %84 = vector.broadcast %cst_45 : f32 to vector<256x128xf32>
    %85 = arith.select %83, %81, %84 : vector<256x128xi1>, vector<256x128xf32>
    %86 = arith.addf %79, %73 : vector<256x128xf32>
    %87 = arith.addf %86, %85 : vector<256x128xf32>
    %c0_46 = arith.constant 0 : index
    %c0_47 = arith.constant 0 : index
    %88 = vector.load %arg2[%c0_46, %c0_47] : memref<128x128xbf16, #tpu.memory_space<vmem>>, vector<128x128xbf16>
    %cst_48 = arith.constant dense<0.000000e+00> : vector<256x128xf32>
    %89 = tpu.matmul %1, %88, %cst_48 {dimension_numbers = #tpu.dot_dimension_numbers<[1], [0], [0], [1], [0, 0, 1, 1], [], []>} : vector<256x128xbf16>, vector<128x128xbf16>, vector<256x128xf32> -> vector<256x128xf32>
    %90 = arith.addf %89, %87 : vector<256x128xf32>
    %c0_49 = arith.constant 0 : index
    %c0_50 = arith.constant 0 : index
    %c0_51 = arith.constant 0 : index
    %91 = vector.load %arg9[%c0_49, %c0_50, %c0_51] : memref<1x256x128xf32, #tpu.memory_space<vmem>>, vector<1x256x128xf32>
    %92 = vector.shape_cast %91 : vector<1x256x128xf32> to vector<256x128xf32>
    %93 = vector.shape_cast %90 : vector<256x128xf32> to vector<1x256x128xf32>
    tpu.vector_store %arg9[%c0_49, %c0_50, %c0_51], %93 {strides = array<i32>} : memref<1x256x128xf32, #tpu.memory_space<vmem>>, vector<1x256x128xf32>,
    return
  }
  func.func @transform_0(%arg0: i32) -> (i32, i32, i32) {
    %c0_i32 = arith.constant 0 : i32
    %c0_i32_0 = arith.constant 0 : i32
    %c0_i32_1 = arith.constant 0 : i32
    return %arg0, %c0_i32, %c0_i32_0 : i32, i32, i32
  }
  func.func @transform_1(%arg0: i32) -> (i32, i32) {
    %c0_i32 = arith.constant 0 : i32
    %c0_i32_0 = arith.constant 0 : i32
    %c0_i32_1 = arith.constant 0 : i32
    return %c0_i32, %c0_i32_0 : i32, i32
  }
  func.func @transform_2(%arg0: i32) -> (i32, i32) {
    %c0_i32 = arith.constant 0 : i32
    %c0_i32_0 = arith.constant 0 : i32
    %c0_i32_1 = arith.constant 0 : i32
    return %c0_i32, %c0_i32_0 : i32, i32
  }
  func.func @transform_3(%arg0: i32) -> (i32, i32) {
    %c0_i32 = arith.constant 0 : i32
    %c0_i32_0 = arith.constant 0 : i32
    %c0_i32_1 = arith.constant 0 : i32
    return %c0_i32, %c0_i32_0 : i32, i32
  }
  func.func @transform_4(%arg0: i32) -> (i32, i32) {
    %c0_i32 = arith.constant 0 : i32
    %c0_i32_0 = arith.constant 0 : i32
    %c0_i32_1 = arith.constant 0 : i32
    return %c0_i32, %c0_i32_0 : i32, i32
  }
  func.func @transform_5(%arg0: i32) -> (i32, i32) {
    %c0_i32 = arith.constant 0 : i32
    %c0_i32_0 = arith.constant 0 : i32
    %c0_i32_1 = arith.constant 0 : i32
    return %c0_i32, %c0_i32_0 : i32, i32
  }
  func.func @transform_6(%arg0: i32) -> (i32, i32) {
    %c0_i32 = arith.constant 0 : i32
    %c0_i32_0 = arith.constant 0 : i32
    %c0_i32_1 = arith.constant 0 : i32
    return %c0_i32, %c0_i32_0 : i32, i32
  }
  func.func @transform_7(%arg0: i32) -> (i32, i32) {
    %c0_i32 = arith.constant 0 : i32
    %c0_i32_0 = arith.constant 0 : i32
    %c0_i32_1 = arith.constant 0 : i32
    return %c0_i32, %c0_i32_0 : i32, i32
  }
  func.func @transform_8(%arg0: i32) -> (i32, i32, i32) {
    %c0_i32 = arith.constant 0 : i32
    %c0_i32_0 = arith.constant 0 : i32
    %c0_i32_1 = arith.constant 0 : i32
    return %arg0, %c0_i32, %c0_i32_0 : i32, i32, i32
  }
}

</mosaic_0001>

<llo_original>
// kernel: tpu_custom_call.1
$region0: #{tpu_custom_call.1}
  #allocation0 [shape = 'u32[]', space=smem, size = 0x4, offset = 0x4, fixed_abs, tag = 'smem constant byte address 0x4 - core index']
  #allocation1 [shape = 'u32[144,128]{1,0:T(1,128)}', space=vmem, size = 0x12000, scoped, tag = 'internal scratch']
  #allocation2 [shape = 'bf16[288,384]{1,0:T(16,128)(2,1)}', space=vmem, size = 0x36000, scoped, tag = 'scratch operand']
  %s0 = inlined_call_operand.hbm [shape: bf16[2,256,128], index: 0, kind: input, shape index: {}]
  %s1 = inlined_call_operand.hbm [shape: bf16[128,128], index: 1, kind: input, shape index: {}]
  %s2 = inlined_call_operand.hbm [shape: bf16[384,384], index: 2, kind: input, shape index: {}]
  %s3 = inlined_call_operand.hbm [shape: bf16[384,384], index: 3, kind: input, shape index: {}]
  %s4 = inlined_call_operand.vmem [shape: f32[1,128], index: 4, kind: input, shape index: {}]
  %s5 = inlined_call_operand.vmem [shape: f32[1,128], index: 5, kind: input, shape index: {}]
  %s6 = inlined_call_operand.vmem [shape: f32[1,128], index: 6, kind: input, shape index: {}]
  %s7 = inlined_call_operand.vmem [shape: f32[1,128], index: 7, kind: input, shape index: {}]
  %s8 = inlined_call_operand.hbm [shape: f32[2,256,128], index: 8, kind: output, shape index: {}]
  %s9 = sld [smem:[#allocation0]]
  $region81: #{tpu_custom_call.1} parent=0
    _
  %s11 = ssub.s32 1, %s9
  %s12 = scalar_select 0, %s11, %s9
  $region1: #{tpu_custom_call.1} parent=0
    #allocation3 [shape = 'u8[131072]{0}', space=vmem, size = 0x20000, scoped, tag = 'input window, operand 0']
    #allocation4 [shape = 's32[2]{0}', space=sflag, size = 0x8, scoped, tag = 'scoped memory for tpu_custom_call.1']
    #allocation5 [shape = 's32[2]{0}', space=sflag, size = 0x8, scoped, tag = 'scoped memory for tpu_custom_call.1']
    #allocation6 [shape = 'u8[32768]{0}', space=vmem, size = 0x8000, scoped, tag = 'input window, operand 1, single buffered']
    #allocation7 [shape = 's32[1]{0}', space=sflag, size = 0x4, scoped, tag = 'scoped memory for tpu_custom_call.1']
    #allocation8 [shape = 'u8[294912]{0}', space=vmem, size = 0x48000, scoped, tag = 'input window, operand 2, single buffered']
    #allocation9 [shape = 'u8[294912]{0}', space=vmem, size = 0x48000, scoped, tag = 'input window, operand 3, single buffered']
    #allocation10 [shape = 's32[1]{0}', space=sflag, size = 0x4, scoped, tag = 'scoped memory for tpu_custom_call.1']
    #allocation11 [shape = 'u8[262144]{0}', space=vmem, size = 0x40000, scoped, tag = 'output window, operand 0']
    %13 = vsyncpa [#allocation4], 0
    %s14 = scalar_lea.sflag [#allocation4], 1
    %15 = vsyncpa %s14, 0
    %16 = vsyncpa [#allocation7], 0
    %17 = vsyncpa [#allocation10], 0
    %18 = vsyncpa [#allocation5], 0
    %s19 = scalar_lea.sflag [#allocation5], 1
    %20 = vsyncpa %s19, 0
    loop: start=0, step=1, limit=4
    $region2: #{tpu_custom_call.1} parent=1 // loop_pre_header
      _
    $region3: #{tpu_custom_call.1} parent=1 // loop_header
      %s22 = sphi 0, %s26
      %p23 = scmp.ge.s32.totalorder %s22, 4
      %s32 = sphi 0, %s34
      %s35 = sphi 0, %s32
      %s36 = sphi 0, %s35
      %s52 = sphi 0, %s36
      %s56 = sphi 0, %s56
      %s58 = sphi 0, %s56
      %s59 = sphi 0, %s58
      %s73 = sphi 0, %s59
      %s77 = sphi 0, %s77
      %s79 = sphi 0, %s77
      %s80 = sphi 0, %s79
      %s94 = sphi 0, %s80
      %s98 = sphi 0, %s98
      %s100 = sphi 0, %s98
      %s101 = sphi 0, %s100
      %s115 = sphi 0, %s101
      %s119 = sphi 0, %s119
      %s121 = sphi 0, %s119
      %s122 = sphi 0, %s121
      %s136 = sphi 0, %s122
      %s140 = sphi 0, %s140
      %s142 = sphi 0, %s140
      %s143 = sphi 0, %s142
      %s157 = sphi 0, %s143
      %s161 = sphi 0, %s161
      %s163 = sphi 0, %s161
      %s164 = sphi 0, %s163
      %s178 = sphi 0, %s164
      %s182 = sphi 0, %s182
      %s184 = sphi 0, %s182
      %s185 = sphi 0, %s184
      %s199 = sphi 0, %s185
      %s205 = sphi 0, %s207
      %s208 = sphi 0, %s205
      %s209 = sphi 0, %s208
      %s225 = sphi 0, %s209
    $region4: #{tpu_custom_call.1} parent=1 // loop_header_branch
      %25 = sbr.rel (%p23) target = $region8
    $region5: #{tpu_custom_call.1} parent=1 // loop_body
      %s27 = ssub.s32 %s22, 1
      %s28 = ssub.s32 %s22, 2
      %s29 = sadd.s32 %s22, 1
      %s30 = ssub.s32 %s22, %s29
      %p31 = scmp.eq.s32.totalorder %s30, 0
      %s33 = sadd.s32 %s32, 1
      %s34 = scalar_select %p31, %s32, %s33
      %p37 = pneg %p31
      %p38 = scmp.eq.s32.totalorder %s22, 1
      %p39 = por %p37, %p38
      %p40 = scmp.ne.s32.totalorder %s32, %s35
      %p41 = scmp.eq.s32.totalorder %s22, 0
      %p42 = por %p40, %p41
      %p43 = scmp.ne.s32.totalorder %s32, %s35
      %p44 = scmp.eq.s32.totalorder %s27, 1
      %p45 = por %p43, %p44
      %p46 = scmp.ne.s32.totalorder %s35, %s36
      %p47 = scmp.eq.s32.totalorder %s27, 0
      %p48 = por %p46, %p47
      %p49 = scmp.ne.s32.totalorder %s35, %s36
      %p50 = scmp.eq.s32.totalorder %s28, 1
      %p51 = por %p49, %p50
      %p53 = scmp.ne.s32.totalorder %s36, %s52
      %p54 = scmp.eq.s32.totalorder %s28, 0
      %p55 = por %p53, %p54
      %s57 = sadd.s32 %s56, 1
      %p60 = scmp.eq.s32.totalorder %s22, 1
      %p61 = scmp.ne.s32.totalorder %s56, %s58
      %p62 = scmp.eq.s32.totalorder %s22, 0
      %p63 = por %p61, %p62
      %p64 = scmp.ne.s32.totalorder %s56, %s58
      %p65 = scmp.eq.s32.totalorder %s27, 1
      %p66 = por %p64, %p65
      %p67 = scmp.ne.s32.totalorder %s58, %s59
      %p68 = scmp.eq.s32.totalorder %s27, 0
      %p69 = por %p67, %p68
      %p70 = scmp.ne.s32.totalorder %s58, %s59
      %p71 = scmp.eq.s32.totalorder %s28, 1
      %p72 = por %p70, %p71
      %p74 = scmp.ne.s32.totalorder %s59, %s73
      %p75 = scmp.eq.s32.totalorder %s28, 0
      %p76 = por %p74, %p75
      %s78 = sadd.s32 %s77, 1
      %p81 = scmp.eq.s32.totalorder %s22, 1
      %p82 = scmp.ne.s32.totalorder %s77, %s79
      %p83 = scmp.eq.s32.totalorder %s22, 0
      %p84 = por %p82, %p83
      %p85 = scmp.ne.s32.totalorder %s77, %s79
      %p86 = scmp.eq.s32.totalorder %s27, 1
      %p87 = por %p85, %p86
      %p88 = scmp.ne.s32.totalorder %s79, %s80
      %p89 = scmp.eq.s32.totalorder %s27, 0
      %p90 = por %p88, %p89
      %p91 = scmp.ne.s32.totalorder %s79, %s80
      %p92 = scmp.eq.s32.totalorder %s28, 1
      %p93 = por %p91, %p92
      %p95 = scmp.ne.s32.totalorder %s80, %s94
      %p96 = scmp.eq.s32.totalorder %s28, 0
      %p97 = por %p95, %p96
      %s99 = sadd.s32 %s98, 1
      %p102 = scmp.eq.s32.totalorder %s22, 1
      %p103 = scmp.ne.s32.totalorder %s98, %s100
      %p104 = scmp.eq.s32.totalorder %s22, 0
      %p105 = por %p103, %p104
      %p106 = scmp.ne.s32.totalorder %s98, %s100
      %p107 = scmp.eq.s32.totalorder %s27, 1
      %p108 = por %p106, %p107
      %p109 = scmp.ne.s32.totalorder %s100, %s101
      %p110 = scmp.eq.s32.totalorder %s27, 0
      %p111 = por %p109, %p110
      %p112 = scmp.ne.s32.totalorder %s100, %s101
      %p113 = scmp.eq.s32.totalorder %s28, 1
      %p114 = por %p112, %p113
      %p116 = scmp.ne.s32.totalorder %s101, %s115
      %p117 = scmp.eq.s32.totalorder %s28, 0
      %p118 = por %p116, %p117
      %s120 = sadd.s32 %s119, 1
      %p123 = scmp.eq.s32.totalorder %s22, 1
      %p124 = scmp.ne.s32.totalorder %s119, %s121
      %p125 = scmp.eq.s32.totalorder %s22, 0
      %p126 = por %p124, %p125
      %p127 = scmp.ne.s32.totalorder %s119, %s121
      %p128 = scmp.eq.s32.totalorder %s27, 1
      %p129 = por %p127, %p128
      %p130 = scmp.ne.s32.totalorder %s121, %s122
      %p131 = scmp.eq.s32.totalorder %s27, 0
      %p132 = por %p130, %p131
      %p133 = scmp.ne.s32.totalorder %s121, %s122
      %p134 = scmp.eq.s32.totalorder %s28, 1
      %p135 = por %p133, %p134
      %p137 = scmp.ne.s32.totalorder %s122, %s136
      %p138 = scmp.eq.s32.totalorder %s28, 0
      %p139 = por %p137, %p138
      %s141 = sadd.s32 %s140, 1
      %p144 = scmp.eq.s32.totalorder %s22, 1
      %p145 = scmp.ne.s32.totalorder %s140, %s142
      %p146 = scmp.eq.s32.totalorder %s22, 0
      %p147 = por %p145, %p146
      %p148 = scmp.ne.s32.totalorder %s140, %s142
      %p149 = scmp.eq.s32.totalorder %s27, 1
      %p150 = por %p148, %p149
      %p151 = scmp.ne.s32.totalorder %s142, %s143
      %p152 = scmp.eq.s32.totalorder %s27, 0
      %p153 = por %p151, %p152
      %p154 = scmp.ne.s32.totalorder %s142, %s143
      %p155 = scmp.eq.s32.totalorder %s28, 1
      %p156 = por %p154, %p155
      %p158 = scmp.ne.s32.totalorder %s143, %s157
      %p159 = scmp.eq.s32.totalorder %s28, 0
      %p160 = por %p158, %p159
      %s162 = sadd.s32 %s161, 1
      %p165 = scmp.eq.s32.totalorder %s22, 1
      %p166 = scmp.ne.s32.totalorder %s161, %s163
      %p167 = scmp.eq.s32.totalorder %s22, 0
      %p168 = por %p166, %p167
      %p169 = scmp.ne.s32.totalorder %s161, %s163
      %p170 = scmp.eq.s32.totalorder %s27, 1
      %p171 = por %p169, %p170
      %p172 = scmp.ne.s32.totalorder %s163, %s164
      %p173 = scmp.eq.s32.totalorder %s27, 0
      %p174 = por %p172, %p173
      %p175 = scmp.ne.s32.totalorder %s163, %s164
      %p176 = scmp.eq.s32.totalorder %s28, 1
      %p177 = por %p175, %p176
      %p179 = scmp.ne.s32.totalorder %s164, %s178
      %p180 = scmp.eq.s32.totalorder %s28, 0
      %p181 = por %p179, %p180
      %s183 = sadd.s32 %s182, 1
      %p186 = scmp.eq.s32.totalorder %s22, 1
      %p187 = scmp.ne.s32.totalorder %s182, %s184
      %p188 = scmp.eq.s32.totalorder %s22, 0
      %p189 = por %p187, %p188
      %p190 = scmp.ne.s32.totalorder %s182, %s184
      %p191 = scmp.eq.s32.totalorder %s27, 1
      %p192 = por %p190, %p191
      %p193 = scmp.ne.s32.totalorder %s184, %s185
      %p194 = scmp.eq.s32.totalorder %s27, 0
      %p195 = por %p193, %p194
      %p196 = scmp.ne.s32.totalorder %s184, %s185
      %p197 = scmp.eq.s32.totalorder %s28, 1
      %p198 = por %p196, %p197
      %p200 = scmp.ne.s32.totalorder %s185, %s199
      %p201 = scmp.eq.s32.totalorder %s28, 0
      %p202 = por %p200, %p201
      %s203 = ssub.s32 %s22, %s29
      %p204 = scmp.eq.s32.totalorder %s203, 0
      %s206 = sadd.s32 %s205, 1
      %s207 = scalar_select %p204, %s205, %s206
      %p210 = pneg %p204
      %p211 = scmp.eq.s32.totalorder %s22, 1
      %p212 = por %p210, %p211
      %p213 = scmp.ne.s32.totalorder %s205, %s208
      %p214 = scmp.eq.s32.totalorder %s22, 0
      %p215 = por %p213, %p214
      %p216 = scmp.ne.s32.totalorder %s205, %s208
      %p217 = scmp.eq.s32.totalorder %s27, 1
      %p218 = por %p216, %p217
      %p219 = scmp.ne.s32.totalorder %s208, %s209
      %p220 = scmp.eq.s32.totalorder %s27, 0
      %p221 = por %p219, %p220
      %p222 = scmp.ne.s32.totalorder %s208, %s209
      %p223 = scmp.eq.s32.totalorder %s28, 1
      %p224 = por %p222, %p223
      %p226 = scmp.ne.s32.totalorder %s209, %s225
      %p227 = scmp.eq.s32.totalorder %s28, 0
      %p228 = por %p226, %p227
      %p229 = scmp.le.s32.totalorder 1, %s22
      %p230 = scmp.lt.s32.totalorder %s22, 3
      %p231 = pnand %p229, %p230
      %p232 = pneg %p231
      // Predicated region
      $region9: #{tpu_custom_call.1} parent=5 // pred_check
        _
      $region10: #{tpu_custom_call.1} parent=5 // pred_check_branch
        %234 = sbr.rel (%p231) target = $region12
      $region11: #{tpu_custom_call.1} parent=5 // pred_region
        %s235 = ssub.s32 %s22, 1
        // Predicated region
        $region13: #{tpu_custom_call.1} parent=11 // pred_check
          %p236 = pneg %p69
        $region14: #{tpu_custom_call.1} parent=11 // pred_check_branch
          %238 = sbr.rel (%p236) target = $region16
        $region15: #{tpu_custom_call.1} parent=11 // pred_region
          %s240 = ssub.s32 1024, 1024
          %241 = vsyncadd [#allocation7], %s240
          %s242 = sshll.u32 [#allocation6], 4
          %s243 = int_to_ptr.vmem [resolvable:$true] %s242
          %248 = dma.hbm_to_vmem [thread:$0]  %s1, 1024, %s243, [#allocation7], 64, 64, 4
        $region16: #{tpu_custom_call.1} parent=11 // pred_fallthru
          _
        // Predicated region
        $region17: #{tpu_custom_call.1} parent=11 // pred_check
          %p249 = pneg %p90
        $region18: #{tpu_custom_call.1} parent=11 // pred_check_branch
          %251 = sbr.rel (%p249) target = $region20
        $region19: #{tpu_custom_call.1} parent=11 // pred_region
          %s253 = ssub.s32 9216, 9216
          %254 = vsyncadd [#allocation7], %s253
          %s255 = sshll.u32 [#allocation8], 4
          %s256 = int_to_ptr.vmem [resolvable:$true] %s255
          %261 = dma.hbm_to_vmem [thread:$0]  %s2, 9216, %s256, [#allocation7], 192, 192, 12
        $region20: #{tpu_custom_call.1} parent=11 // pred_fallthru
          _
        // Predicated region
        $region21: #{tpu_custom_call.1} parent=11 // pred_check
          %p262 = pneg %p111
        $region22: #{tpu_custom_call.1} parent=11 // pred_check_branch
          %264 = sbr.rel (%p262) target = $region24
        $region23: #{tpu_custom_call.1} parent=11 // pred_region
          %s266 = ssub.s32 9216, 9216
          %267 = vsyncadd [#allocation10], %s266
          %s268 = sshll.u32 [#allocation9], 4
          %s269 = int_to_ptr.vmem [resolvable:$true] %s268
          %274 = dma.hbm_to_vmem [thread:$0]  %s3, 9216, %s269, [#allocation10], 192, 192, 12
        $region24: #{tpu_custom_call.1} parent=11 // pred_fallthru
          _
        // Predicated region
        $region25: #{tpu_custom_call.1} parent=11 // pred_check
          %p275 = pneg %p132
        $region26: #{tpu_custom_call.1} parent=11 // pred_check_branch
          %277 = sbr.rel (%p275) target = $region28
        $region27: #{tpu_custom_call.1} parent=11 // pred_region
          _
        $region28: #{tpu_custom_call.1} parent=11 // pred_fallthru
          _
        // Predicated region
        $region29: #{tpu_custom_call.1} parent=11 // pred_check
          %p278 = pneg %p153
        $region30: #{tpu_custom_call.1} parent=11 // pred_check_branch
          %280 = sbr.rel (%p278) target = $region32
        $region31: #{tpu_custom_call.1} parent=11 // pred_region
          _
        $region32: #{tpu_custom_call.1} parent=11 // pred_fallthru
          _
        // Predicated region
        $region33: #{tpu_custom_call.1} parent=11 // pred_check
          %p281 = pneg %p174
        $region34: #{tpu_custom_call.1} parent=11 // pred_check_branch
          %283 = sbr.rel (%p281) target = $region36
        $region35: #{tpu_custom_call.1} parent=11 // pred_region
          _
        $region36: #{tpu_custom_call.1} parent=11 // pred_fallthru
          _
        // Predicated region
        $region37: #{tpu_custom_call.1} parent=11 // pred_check
          %p284 = pneg %p195
        $region38: #{tpu_custom_call.1} parent=11 // pred_check_branch
          %286 = sbr.rel (%p284) target = $region40
        $region39: #{tpu_custom_call.1} parent=11 // pred_region
          _
        $region40: #{tpu_custom_call.1} parent=11 // pred_fallthru
          _
      $region12: #{tpu_custom_call.1} parent=5 // pred_fallthru
        _
      %p287 = scmp.lt.s32.totalorder %s22, 2
      // Predicated region
      $region41: #{tpu_custom_call.1} parent=5 // pred_check
        %p288 = pneg %p287
      $region42: #{tpu_custom_call.1} parent=5 // pred_check_branch
        %290 = sbr.rel (%p288) target = $region44
      $region43: #{tpu_custom_call.1} parent=5 // pred_region
        // Predicated region
        $region45: #{tpu_custom_call.1} parent=43 // pred_check
          %p291 = pneg %p42
        $region46: #{tpu_custom_call.1} parent=43 // pred_check_branch
          %293 = sbr.rel (%p291) target = $region48
        $region47: #{tpu_custom_call.1} parent=43 // pred_region
          %s294 = sand.u32 %s32, 1
          %s295 = scalar_lea.sflag [#allocation4], %s294
          %s296 = sand.u32 %s32, 1
          %s297 = smul.addr %s296, 128
          %s298 = scalar_lea.vmem [#allocation3], %s297
          %s300 = ssub.s32 2048, 2048
          %301 = vsyncadd %s295, %s300
          %s302 = smul.addr %s22, 32
          %s303 = smul.addr %s302, 64
          %s304 = scalar_lea.hbm %s0, %s303
          %s305 = sshll.u32 %s298, 4
          %s306 = int_to_ptr.vmem [resolvable:$true] %s305
          %311 = dma.hbm_to_vmem [thread:$0]  %s304, 2048, %s306, %s295, 64, 64, 4
        $region48: #{tpu_custom_call.1} parent=43 // pred_fallthru
          _
      $region44: #{tpu_custom_call.1} parent=5 // pred_fallthru
        _
      %p312 = scmp.le.s32.totalorder 1, %s22
      %p313 = scmp.lt.s32.totalorder %s22, 3
      %p314 = pnand %p312, %p313
      %p315 = pneg %p314
      // Predicated region
      $region49: #{tpu_custom_call.1} parent=5 // pred_check
        _
      $region50: #{tpu_custom_call.1} parent=5 // pred_check_branch
        %317 = sbr.rel (%p314) target = $region52
      $region51: #{tpu_custom_call.1} parent=5 // pred_region
        %s318 = ssub.s32 %s22, 1
        %s319 = sand.u32 %s35, 1
        %s320 = scalar_lea.sflag [#allocation4], %s319
        %s321 = sand.u32 %s35, 1
        %s322 = smul.addr %s321, 128
        %s323 = scalar_lea.vmem [#allocation3], %s322
        // Predicated region
        $region53: #{tpu_custom_call.1} parent=51 // pred_check
          %p324 = pneg %p48
        $region54: #{tpu_custom_call.1} parent=51 // pred_check_branch
          %326 = sbr.rel (%p324) target = $region56
        $region55: #{tpu_custom_call.1} parent=51 // pred_region
          %327 = dma.done %s320, 2048
        $region56: #{tpu_custom_call.1} parent=51 // pred_fallthru
          _
        // Predicated region
        $region57: #{tpu_custom_call.1} parent=51 // pred_check
          %p328 = pneg %p69
        $region58: #{tpu_custom_call.1} parent=51 // pred_check_branch
          %330 = sbr.rel (%p328) target = $region60
        $region59: #{tpu_custom_call.1} parent=51 // pred_region
          %331 = dma.done [#allocation7], 1024
        $region60: #{tpu_custom_call.1} parent=51 // pred_fallthru
          _
        // Predicated region
        $region61: #{tpu_custom_call.1} parent=51 // pred_check
          %p332 = pneg %p90
        $region62: #{tpu_custom_call.1} parent=51 // pred_check_branch
          %334 = sbr.rel (%p332) target = $region64
        $region63: #{tpu_custom_call.1} parent=51 // pred_region
          %335 = dma.done [#allocation7], 9216
        $region64: #{tpu_custom_call.1} parent=51 // pred_fallthru
          _
        // Predicated region
        $region65: #{tpu_custom_call.1} parent=51 // pred_check
          %p336 = pneg %p111
        $region66: #{tpu_custom_call.1} parent=51 // pred_check_branch
          %338 = sbr.rel (%p336) target = $region68
        $region67: #{tpu_custom_call.1} parent=51 // pred_region
          %339 = dma.done [#allocation10], 9216
        $region68: #{tpu_custom_call.1} parent=51 // pred_fallthru
          _
        %s340 = sand.u32 %s35, 1
        %s341 = scalar_lea.sflag [#allocation4], %s340
        %s342 = sand.u32 %s35, 1
        %s343 = smul.addr %s342, 128
        %s344 = scalar_lea.vmem [#allocation3], %s343
        %p345 = pneg %p48
        %p346 = pneg %p45
        %p347 = pneg %p69
        %p348 = pneg %p66
        %p349 = pneg %p90
        %p350 = pneg %p87
        %p351 = pneg %p111
        %p352 = pneg %p108
        %p353 = pneg %p132
        %p354 = pneg %p129
        %p355 = pneg %p153
        %p356 = pneg %p150
        %p357 = pneg %p174
        %p358 = pneg %p171
        %p359 = pneg %p195
        %p360 = pneg %p192
        %p361 = pneg %p221
        %p362 = pneg %p218
        %s363 = sand.u32 %s208, 1
        %s364 = scalar_lea.sflag [#allocation5], %s363
        %s365 = sand.u32 %s208, 1
        %s366 = smul.addr %s365, 256
        %s367 = scalar_lea.vmem [#allocation11], %s366
        %v369 = vld [vmem:[%s323] sm:$0xf]
        %v370 = vld [vmem:[%s323 + $0x4] sm:$0xf]
        %v371 = vld [vmem:[%s323 + $0x8] sm:$0xf]
        %v372 = vld [vmem:[%s323 + $0xc] sm:$0xf]
        %v373 = vld [vmem:[%s323 + $0x10] sm:$0xf]
        %v374 = vld [vmem:[%s323 + $0x14] sm:$0xf]
        %v375 = vld [vmem:[%s323 + $0x18] sm:$0xf]
        %v376 = vld [vmem:[%s323 + $0x1c] sm:$0xf]
        %v377 = vld [vmem:[%s323 + $0x20] sm:$0xf]
        %v378 = vld [vmem:[%s323 + $0x24] sm:$0xf]
        %v379 = vld [vmem:[%s323 + $0x28] sm:$0xf]
        %v380 = vld [vmem:[%s323 + $0x2c] sm:$0xf]
        %v381 = vld [vmem:[%s323 + $0x30] sm:$0xf]
        %v382 = vld [vmem:[%s323 + $0x34] sm:$0xf]
        %v383 = vld [vmem:[%s323 + $0x38] sm:$0xf]
        %v384 = vld [vmem:[%s323 + $0x3c] sm:$0xf]
        %v385 = vld [vmem:[%s323 + $0x40] sm:$0xf]
        %v386 = vld [vmem:[%s323 + $0x44] sm:$0xf]
        %v387 = vld [vmem:[%s323 + $0x48] sm:$0xf]
        %v388 = vld [vmem:[%s323 + $0x4c] sm:$0xf]
        %v389 = vld [vmem:[%s323 + $0x50] sm:$0xf]
        %v390 = vld [vmem:[%s323 + $0x54] sm:$0xf]
        %v391 = vld [vmem:[%s323 + $0x58] sm:$0xf]
        %v392 = vld [vmem:[%s323 + $0x5c] sm:$0xf]
        %v393 = vld [vmem:[%s323 + $0x60] sm:$0xf]
        %v394 = vld [vmem:[%s323 + $0x64] sm:$0xf]
        %v395 = vld [vmem:[%s323 + $0x68] sm:$0xf]
        %v396 = vld [vmem:[%s323 + $0x6c] sm:$0xf]
        %v397 = vld [vmem:[%s323 + $0x70] sm:$0xf]
        %v398 = vld [vmem:[%s323 + $0x74] sm:$0xf]
        %v399 = vld [vmem:[%s323 + $0x78] sm:$0xf]
        %v400 = vld [vmem:[%s323 + $0x7c] sm:$0xf]
        %v401 = vlaneseq
        %v402 = vshrl.u32 %v401, 7
        %v403 = vadd.s32 %v402, 8
        %v404 = vadd.s32 %v402, 16
        %v405 = vadd.s32 %v402, 24
        %v406 = vadd.s32 %v402, 32
        %v407 = vadd.s32 %v402, 40
        %v408 = vadd.s32 %v402, 48
        %v409 = vadd.s32 %v402, 56
        %v410 = vadd.s32 %v402, 64
        %v411 = vadd.s32 %v402, 72
        %v412 = vadd.s32 %v402, 80
        %v413 = vadd.s32 %v402, 88
        %v414 = vadd.s32 %v402, 96
        %v415 = vadd.s32 %v402, 104
        %v416 = vadd.s32 %v402, 112
        %v417 = vadd.s32 %v402, 120
        %v418 = vadd.s32 %v402, 128
        %v419 = vadd.s32 %v402, 136
        %v420 = vadd.s32 %v402, 144
        %v421 = vadd.s32 %v402, 152
        %v422 = vadd.s32 %v402, 160
        %v423 = vadd.s32 %v402, 168
        %v424 = vadd.s32 %v402, 176
        %v425 = vadd.s32 %v402, 184
        %v426 = vadd.s32 %v402, 192
        %v427 = vadd.s32 %v402, 200
        %v428 = vadd.s32 %v402, 208
        %v429 = vadd.s32 %v402, 216
        %v430 = vadd.s32 %v402, 224
        %v431 = vadd.s32 %v402, 232
        %v432 = vadd.s32 %v402, 240
        %v433 = vadd.s32 %v402, 248
        %vm434 = vcmp.lt.s32.totalorder %v402, 0
        %v435 = vsub.s32 0, %v402
        %v436 = vsel %vm434, %v435, %v402
        %v437 = vshrl.u32 %v436, 4
        %v438 = vand.u32 %v436, 15
        %v439 = vsub.s32 0, %v438
        %v440 = vsel %vm434, %v439, %v438
        %vm441 = vcmp.lt.s32.totalorder %v403, 0
        %v442 = vsub.s32 0, %v403
        %v443 = vsel %vm441, %v442, %v403
        %v444 = vshrl.u32 %v443, 4
        %v445 = vand.u32 %v443, 15
        %v446 = vsub.s32 0, %v445
        %v447 = vsel %vm441, %v446, %v445
        %vm448 = vcmp.lt.s32.totalorder %v404, 0
        %v449 = vsub.s32 0, %v404
        %v450 = vsel %vm448, %v449, %v404
        %v451 = vshrl.u32 %v450, 4
        %v452 = vand.u32 %v450, 15
        %v453 = vsub.s32 0, %v452
        %v454 = vsel %vm448, %v453, %v452
        %vm455 = vcmp.lt.s32.totalorder %v405, 0
        %v456 = vsub.s32 0, %v405
        %v457 = vsel %vm455, %v456, %v405
        %v458 = vshrl.u32 %v457, 4
        %v459 = vand.u32 %v457, 15
        %v460 = vsub.s32 0, %v459
        %v461 = vsel %vm455, %v460, %v459
        %vm462 = vcmp.lt.s32.totalorder %v406, 0
        %v463 = vsub.s32 0, %v406
        %v464 = vsel %vm462, %v463, %v406
        %v465 = vshrl.u32 %v464, 4
        %v466 = vand.u32 %v464, 15
        %v467 = vsub.s32 0, %v466
        %v468 = vsel %vm462, %v467, %v466
        %vm469 = vcmp.lt.s32.totalorder %v407, 0
        %v470 = vsub.s32 0, %v407
        %v471 = vsel %vm469, %v470, %v407
        %v472 = vshrl.u32 %v471, 4
        %v473 = vand.u32 %v471, 15
        %v474 = vsub.s32 0, %v473
        %v475 = vsel %vm469, %v474, %v473
        %vm476 = vcmp.lt.s32.totalorder %v408, 0
        %v477 = vsub.s32 0, %v408
        %v478 = vsel %vm476, %v477, %v408
        %v479 = vshrl.u32 %v478, 4
        %v480 = vand.u32 %v478, 15
        %v481 = vsub.s32 0, %v480
        %v482 = vsel %vm476, %v481, %v480
        %vm483 = vcmp.lt.s32.totalorder %v409, 0
        %v484 = vsub.s32 0, %v409
        %v485 = vsel %vm483, %v484, %v409
        %v486 = vshrl.u32 %v485, 4
        %v487 = vand.u32 %v485, 15
        %v488 = vsub.s32 0, %v487
        %v489 = vsel %vm483, %v488, %v487
        %vm490 = vcmp.lt.s32.totalorder %v410, 0
        %v491 = vsub.s32 0, %v410
        %v492 = vsel %vm490, %v491, %v410
        %v493 = vshrl.u32 %v492, 4
        %v494 = vand.u32 %v492, 15
        %v495 = vsub.s32 0, %v494
        %v496 = vsel %vm490, %v495, %v494
        %vm497 = vcmp.lt.s32.totalorder %v411, 0
        %v498 = vsub.s32 0, %v411
        %v499 = vsel %vm497, %v498, %v411
        %v500 = vshrl.u32 %v499, 4
        %v501 = vand.u32 %v499, 15
        %v502 = vsub.s32 0, %v501
        %v503 = vsel %vm497, %v502, %v501
        %vm504 = vcmp.lt.s32.totalorder %v412, 0
        %v505 = vsub.s32 0, %v412
        %v506 = vsel %vm504, %v505, %v412
        %v507 = vshrl.u32 %v506, 4
        %v508 = vand.u32 %v506, 15
        %v509 = vsub.s32 0, %v508
        %v510 = vsel %vm504, %v509, %v508
        %vm511 = vcmp.lt.s32.totalorder %v413, 0
        %v512 = vsub.s32 0, %v413
        %v513 = vsel %vm511, %v512, %v413
        %v514 = vshrl.u32 %v513, 4
        %v515 = vand.u32 %v513, 15
        %v516 = vsub.s32 0, %v515
        %v517 = vsel %vm511, %v516, %v515
        %vm518 = vcmp.lt.s32.totalorder %v414, 0
        %v519 = vsub.s32 0, %v414
        %v520 = vsel %vm518, %v519, %v414
        %v521 = vshrl.u32 %v520, 4
        %v522 = vand.u32 %v520, 15
        %v523 = vsub.s32 0, %v522
        %v524 = vsel %vm518, %v523, %v522
        %vm525 = vcmp.lt.s32.totalorder %v415, 0
        %v526 = vsub.s32 0, %v415
        %v527 = vsel %vm525, %v526, %v415
        %v528 = vshrl.u32 %v527, 4
        %v529 = vand.u32 %v527, 15
        %v530 = vsub.s32 0, %v529
        %v531 = vsel %vm525, %v530, %v529
        %vm532 = vcmp.lt.s32.totalorder %v416, 0
        %v533 = vsub.s32 0, %v416
        %v534 = vsel %vm532, %v533, %v416
        %v535 = vshrl.u32 %v534, 4
        %v536 = vand.u32 %v534, 15
        %v537 = vsub.s32 0, %v536
        %v538 = vsel %vm532, %v537, %v536
        %vm539 = vcmp.lt.s32.totalorder %v417, 0
        %v540 = vsub.s32 0, %v417
        %v541 = vsel %vm539, %v540, %v417
        %v542 = vshrl.u32 %v541, 4
        %v543 = vand.u32 %v541, 15
        %v544 = vsub.s32 0, %v543
        %v545 = vsel %vm539, %v544, %v543
        %vm546 = vcmp.lt.s32.totalorder %v418, 0
        %v547 = vsub.s32 0, %v418
        %v548 = vsel %vm546, %v547, %v418
        %v549 = vshrl.u32 %v548, 4
        %v550 = vand.u32 %v548, 15
        %v551 = vsub.s32 0, %v550
        %v552 = vsel %vm546, %v551, %v550
        %vm553 = vcmp.lt.s32.totalorder %v419, 0
        %v554 = vsub.s32 0, %v419
        %v555 = vsel %vm553, %v554, %v419
        %v556 = vshrl.u32 %v555, 4
        %v557 = vand.u32 %v555, 15
        %v558 = vsub.s32 0, %v557
        %v559 = vsel %vm553, %v558, %v557
        %vm560 = vcmp.lt.s32.totalorder %v420, 0
        %v561 = vsub.s32 0, %v420
        %v562 = vsel %vm560, %v561, %v420
        %v563 = vshrl.u32 %v562, 4
        %v564 = vand.u32 %v562, 15
        %v565 = vsub.s32 0, %v564
        %v566 = vsel %vm560, %v565, %v564
        %vm567 = vcmp.lt.s32.totalorder %v421, 0
        %v568 = vsub.s32 0, %v421
        %v569 = vsel %vm567, %v568, %v421
        %v570 = vshrl.u32 %v569, 4
        %v571 = vand.u32 %v569, 15
        %v572 = vsub.s32 0, %v571
        %v573 = vsel %vm567, %v572, %v571
        %vm574 = vcmp.lt.s32.totalorder %v422, 0
        %v575 = vsub.s32 0, %v422
        %v576 = vsel %vm574, %v575, %v422
        %v577 = vshrl.u32 %v576, 4
        %v578 = vand.u32 %v576, 15
        %v579 = vsub.s32 0, %v578
        %v580 = vsel %vm574, %v579, %v578
        %vm581 = vcmp.lt.s32.totalorder %v423, 0
        %v582 = vsub.s32 0, %v423
        %v583 = vsel %vm581, %v582, %v423
        %v584 = vshrl.u32 %v583, 4
        %v585 = vand.u32 %v583, 15
        %v586 = vsub.s32 0, %v585
        %v587 = vsel %vm581, %v586, %v585
        %vm588 = vcmp.lt.s32.totalorder %v424, 0
        %v589 = vsub.s32 0, %v424
        %v590 = vsel %vm588, %v589, %v424
        %v591 = vshrl.u32 %v590, 4
        %v592 = vand.u32 %v590, 15
        %v593 = vsub.s32 0, %v592
        %v594 = vsel %vm588, %v593, %v592
        %vm595 = vcmp.lt.s32.totalorder %v425, 0
        %v596 = vsub.s32 0, %v425
        %v597 = vsel %vm595, %v596, %v425
        %v598 = vshrl.u32 %v597, 4
        %v599 = vand.u32 %v597, 15
        %v600 = vsub.s32 0, %v599
        %v601 = vsel %vm595, %v600, %v599
        %vm602 = vcmp.lt.s32.totalorder %v426, 0
        %v603 = vsub.s32 0, %v426
        %v604 = vsel %vm602, %v603, %v426
        %v605 = vshrl.u32 %v604, 4
        %v606 = vand.u32 %v604, 15
        %v607 = vsub.s32 0, %v606
        %v608 = vsel %vm602, %v607, %v606
        %vm609 = vcmp.lt.s32.totalorder %v427, 0
        %v610 = vsub.s32 0, %v427
        %v611 = vsel %vm609, %v610, %v427
        %v612 = vshrl.u32 %v611, 4
        %v613 = vand.u32 %v611, 15
        %v614 = vsub.s32 0, %v613
        %v615 = vsel %vm609, %v614, %v613
        %vm616 = vcmp.lt.s32.totalorder %v428, 0
        %v617 = vsub.s32 0, %v428
        %v618 = vsel %vm616, %v617, %v428
        %v619 = vshrl.u32 %v618, 4
        %v620 = vand.u32 %v618, 15
        %v621 = vsub.s32 0, %v620
        %v622 = vsel %vm616, %v621, %v620
        %vm623 = vcmp.lt.s32.totalorder %v429, 0
        %v624 = vsub.s32 0, %v429
        %v625 = vsel %vm623, %v624, %v429
        %v626 = vshrl.u32 %v625, 4
        %v627 = vand.u32 %v625, 15
        %v628 = vsub.s32 0, %v627
        %v629 = vsel %vm623, %v628, %v627
        %vm630 = vcmp.lt.s32.totalorder %v430, 0
        %v631 = vsub.s32 0, %v430
        %v632 = vsel %vm630, %v631, %v430
        %v633 = vshrl.u32 %v632, 4
        %v634 = vand.u32 %v632, 15
        %v635 = vsub.s32 0, %v634
        %v636 = vsel %vm630, %v635, %v634
        %vm637 = vcmp.lt.s32.totalorder %v431, 0
        %v638 = vsub.s32 0, %v431
        %v639 = vsel %vm637, %v638, %v431
        %v640 = vshrl.u32 %v639, 4
        %v641 = vand.u32 %v639, 15
        %v642 = vsub.s32 0, %v641
        %v643 = vsel %vm637, %v642, %v641
        %vm644 = vcmp.lt.s32.totalorder %v432, 0
        %v645 = vsub.s32 0, %v432
        %v646 = vsel %vm644, %v645, %v432
        %v647 = vshrl.u32 %v646, 4
        %v648 = vand.u32 %v646, 15
        %v649 = vsub.s32 0, %v648
        %v650 = vsel %vm644, %v649, %v648
        %vm651 = vcmp.lt.s32.totalorder %v433, 0
        %v652 = vsub.s32 0, %v433
        %v653 = vsel %vm651, %v652, %v433
        %v654 = vshrl.u32 %v653, 4
        %v655 = vand.u32 %v653, 15
        %v656 = vsub.s32 0, %v655
        %v657 = vsel %vm651, %v656, %v655
        %vm658 = vcmp.ne.s32.totalorder %v440, 0
        %vm659 = vcmp.ne.s32.totalorder %v447, 0
        %vm660 = vcmp.ne.s32.totalorder %v454, 0
        %vm661 = vcmp.ne.s32.totalorder %v461, 0
        %vm662 = vcmp.ne.s32.totalorder %v468, 0
        %vm663 = vcmp.ne.s32.totalorder %v475, 0
        %vm664 = vcmp.ne.s32.totalorder %v482, 0
        %vm665 = vcmp.ne.s32.totalorder %v489, 0
        %vm666 = vcmp.ne.s32.totalorder %v496, 0
        %vm667 = vcmp.ne.s32.totalorder %v503, 0
        %vm668 = vcmp.ne.s32.totalorder %v510, 0
        %vm669 = vcmp.ne.s32.totalorder %v517, 0
        %vm670 = vcmp.ne.s32.totalorder %v524, 0
        %vm671 = vcmp.ne.s32.totalorder %v531, 0
        %vm672 = vcmp.ne.s32.totalorder %v538, 0
        %vm673 = vcmp.ne.s32.totalorder %v545, 0
        %vm674 = vcmp.ne.s32.totalorder %v552, 0
        %vm675 = vcmp.ne.s32.totalorder %v559, 0
        %vm676 = vcmp.ne.s32.totalorder %v566, 0
        %vm677 = vcmp.ne.s32.totalorder %v573, 0
        %vm678 = vcmp.ne.s32.totalorder %v580, 0
        %vm679 = vcmp.ne.s32.totalorder %v587, 0
        %vm680 = vcmp.ne.s32.totalorder %v594, 0
        %vm681 = vcmp.ne.s32.totalorder %v601, 0
        %vm682 = vcmp.ne.s32.totalorder %v608, 0
        %vm683 = vcmp.ne.s32.totalorder %v615, 0
        %vm684 = vcmp.ne.s32.totalorder %v622, 0
        %vm685 = vcmp.ne.s32.totalorder %v629, 0
        %vm686 = vcmp.ne.s32.totalorder %v636, 0
        %vm687 = vcmp.ne.s32.totalorder %v643, 0
        %vm688 = vcmp.ne.s32.totalorder %v650, 0
        %vm689 = vcmp.ne.s32.totalorder %v657, 0
        %vm690 = vcmp.lt.s32.totalorder %v440, 0
        %vm691 = vcmp.lt.s32.totalorder %v447, 0
        %vm692 = vcmp.lt.s32.totalorder %v454, 0
        %vm693 = vcmp.lt.s32.totalorder %v461, 0
        %vm694 = vcmp.lt.s32.totalorder %v468, 0
        %vm695 = vcmp.lt.s32.totalorder %v475, 0
        %vm696 = vcmp.lt.s32.totalorder %v482, 0
        %vm697 = vcmp.lt.s32.totalorder %v489, 0
        %vm698 = vcmp.lt.s32.totalorder %v496, 0
        %vm699 = vcmp.lt.s32.totalorder %v503, 0
        %vm700 = vcmp.lt.s32.totalorder %v510, 0
        %vm701 = vcmp.lt.s32.totalorder %v517, 0
        %vm702 = vcmp.lt.s32.totalorder %v524, 0
        %vm703 = vcmp.lt.s32.totalorder %v531, 0
        %vm704 = vcmp.lt.s32.totalorder %v538, 0
        %vm705 = vcmp.lt.s32.totalorder %v545, 0
        %vm706 = vcmp.lt.s32.totalorder %v552, 0
        %vm707 = vcmp.lt.s32.totalorder %v559, 0
        %vm708 = vcmp.lt.s32.totalorder %v566, 0
        %vm709 = vcmp.lt.s32.totalorder %v573, 0
        %vm710 = vcmp.lt.s32.totalorder %v580, 0
        %vm711 = vcmp.lt.s32.totalorder %v587, 0
        %vm712 = vcmp.lt.s32.totalorder %v594, 0
        %vm713 = vcmp.lt.s32.totalorder %v601, 0
        %vm714 = vcmp.lt.s32.totalorder %v608, 0
        %vm715 = vcmp.lt.s32.totalorder %v615, 0
        %vm716 = vcmp.lt.s32.totalorder %v622, 0
        %vm717 = vcmp.lt.s32.totalorder %v629, 0
        %vm718 = vcmp.lt.s32.totalorder %v636, 0
        %vm719 = vcmp.lt.s32.totalorder %v643, 0
        %vm720 = vcmp.lt.s32.totalorder %v650, 0
        %vm721 = vcmp.lt.s32.totalorder %v657, 0
        %vm722 = vmand %vm690, %vm658
        %vm723 = vmand %vm691, %vm659
        %vm724 = vmand %vm692, %vm660
        %vm725 = vmand %vm693, %vm661
        %vm726 = vmand %vm694, %vm662
        %vm727 = vmand %vm695, %vm663
        %vm728 = vmand %vm696, %vm664
        %vm729 = vmand %vm697, %vm665
        %vm730 = vmand %vm698, %vm666
        %vm731 = vmand %vm699, %vm667
        %vm732 = vmand %vm700, %vm668
        %vm733 = vmand %vm701, %vm669
        %vm734 = vmand %vm702, %vm670
        %vm735 = vmand %vm703, %vm671
        %vm736 = vmand %vm704, %vm672
        %vm737 = vmand %vm705, %vm673
        %vm738 = vmand %vm706, %vm674
        %vm739 = vmand %vm707, %vm675
        %vm740 = vmand %vm708, %vm676
        %vm741 = vmand %vm709, %vm677
        %vm742 = vmand %vm710, %vm678
        %vm743 = vmand %vm711, %vm679
        %vm744 = vmand %vm712, %vm680
        %vm745 = vmand %vm713, %vm681
        %vm746 = vmand %vm714, %vm682
        %vm747 = vmand %vm715, %vm683
        %vm748 = vmand %vm716, %vm684
        %vm749 = vmand %vm717, %vm685
        %vm750 = vmand %vm718, %vm686
        %vm751 = vmand %vm719, %vm687
        %vm752 = vmand %vm720, %vm688
        %vm753 = vmand %vm721, %vm689
        %v754 = vadd.s32 %v440, 16
        %v755 = vadd.s32 %v447, 16
        %v756 = vadd.s32 %v454, 16
        %v757 = vadd.s32 %v461, 16
        %v758 = vadd.s32 %v468, 16
        %v759 = vadd.s32 %v475, 16
        %v760 = vadd.s32 %v482, 16
        %v761 = vadd.s32 %v489, 16
        %v762 = vadd.s32 %v496, 16
        %v763 = vadd.s32 %v503, 16
        %v764 = vadd.s32 %v510, 16
        %v765 = vadd.s32 %v517, 16
        %v766 = vadd.s32 %v524, 16
        %v767 = vadd.s32 %v531, 16
        %v768 = vadd.s32 %v538, 16
        %v769 = vadd.s32 %v545, 16
        %v770 = vadd.s32 %v552, 16
        %v771 = vadd.s32 %v559, 16
        %v772 = vadd.s32 %v566, 16
        %v773 = vadd.s32 %v573, 16
        %v774 = vadd.s32 %v580, 16
        %v775 = vadd.s32 %v587, 16
        %v776 = vadd.s32 %v594, 16
        %v777 = vadd.s32 %v601, 16
        %v778 = vadd.s32 %v608, 16
        %v779 = vadd.s32 %v615, 16
        %v780 = vadd.s32 %v622, 16
        %v781 = vadd.s32 %v629, 16
        %v782 = vadd.s32 %v636, 16
        %v783 = vadd.s32 %v643, 16
        %v784 = vadd.s32 %v650, 16
        %v785 = vadd.s32 %v657, 16
        %v786 = vsel %vm722, %v754, %v440
        %v787 = vsel %vm723, %v755, %v447
        %v788 = vsel %vm724, %v756, %v454
        %v789 = vsel %vm725, %v757, %v461
        %v790 = vsel %vm726, %v758, %v468
        %v791 = vsel %vm727, %v759, %v475
        %v792 = vsel %vm728, %v760, %v482
        %v793 = vsel %vm729, %v761, %v489
        %v794 = vsel %vm730, %v762, %v496
        %v795 = vsel %vm731, %v763, %v503
        %v796 = vsel %vm732, %v764, %v510
        %v797 = vsel %vm733, %v765, %v517
        %v798 = vsel %vm734, %v766, %v524
        %v799 = vsel %vm735, %v767, %v531
        %v800 = vsel %vm736, %v768, %v538
        %v801 = vsel %vm737, %v769, %v545
        %v802 = vsel %vm738, %v770, %v552
        %v803 = vsel %vm739, %v771, %v559
        %v804 = vsel %vm740, %v772, %v566
        %v805 = vsel %vm741, %v773, %v573
        %v806 = vsel %vm742, %v774, %v580
        %v807 = vsel %vm743, %v775, %v587
        %v808 = vsel %vm744, %v776, %v594
        %v809 = vsel %vm745, %v777, %v601
        %v810 = vsel %vm746, %v778, %v608
        %v811 = vsel %vm747, %v779, %v615
        %v812 = vsel %vm748, %v780, %v622
        %v813 = vsel %vm749, %v781, %v629
        %v814 = vsel %vm750, %v782, %v636
        %v815 = vsel %vm751, %v783, %v643
        %v816 = vsel %vm752, %v784, %v650
        %v817 = vsel %vm753, %v785, %v657
        %vm818 = vcmp.ne.s32.totalorder %v786, 0
        %vm819 = vcmp.ne.s32.totalorder %v787, 0
        %vm820 = vcmp.ne.s32.totalorder %v788, 0
        %vm821 = vcmp.ne.s32.totalorder %v789, 0
        %vm822 = vcmp.ne.s32.totalorder %v790, 0
        %vm823 = vcmp.ne.s32.totalorder %v791, 0
        %vm824 = vcmp.ne.s32.totalorder %v792, 0
        %vm825 = vcmp.ne.s32.totalorder %v793, 0
        %vm826 = vcmp.ne.s32.totalorder %v794, 0
        %vm827 = vcmp.ne.s32.totalorder %v795, 0
        %vm828 = vcmp.ne.s32.totalorder %v796, 0
        %vm829 = vcmp.ne.s32.totalorder %v797, 0
        %vm830 = vcmp.ne.s32.totalorder %v798, 0
        %vm831 = vcmp.ne.s32.totalorder %v799, 0
        %vm832 = vcmp.ne.s32.totalorder %v800, 0
        %vm833 = vcmp.ne.s32.totalorder %v801, 0
        %vm834 = vcmp.ne.s32.totalorder %v802, 0
        %vm835 = vcmp.ne.s32.totalorder %v803, 0
        %vm836 = vcmp.ne.s32.totalorder %v804, 0
        %vm837 = vcmp.ne.s32.totalorder %v805, 0
        %vm838 = vcmp.ne.s32.totalorder %v806, 0
        %vm839 = vcmp.ne.s32.totalorder %v807, 0
        %vm840 = vcmp.ne.s32.totalorder %v808, 0
        %vm841 = vcmp.ne.s32.totalorder %v809, 0
        %vm842 = vcmp.ne.s32.totalorder %v810, 0
        %vm843 = vcmp.ne.s32.totalorder %v811, 0
        %vm844 = vcmp.ne.s32.totalorder %v812, 0
        %vm845 = vcmp.ne.s32.totalorder %v813, 0
        %vm846 = vcmp.ne.s32.totalorder %v814, 0
        %vm847 = vcmp.ne.s32.totalorder %v815, 0
        %vm848 = vcmp.ne.s32.totalorder %v816, 0
        %vm849 = vcmp.ne.s32.totalorder %v817, 0
        %vm850 = vcmp.ne.s32.totalorder %v786, 15
        %vm851 = vcmp.ne.s32.totalorder %v787, 15
        %vm852 = vcmp.ne.s32.totalorder %v788, 15
        %vm853 = vcmp.ne.s32.totalorder %v789, 15
        %vm854 = vcmp.ne.s32.totalorder %v790, 15
        %vm855 = vcmp.ne.s32.totalorder %v791, 15
        %vm856 = vcmp.ne.s32.totalorder %v792, 15
        %vm857 = vcmp.ne.s32.totalorder %v793, 15
        %vm858 = vcmp.ne.s32.totalorder %v794, 15
        %vm859 = vcmp.ne.s32.totalorder %v795, 15
        %vm860 = vcmp.ne.s32.totalorder %v796, 15
        %vm861 = vcmp.ne.s32.totalorder %v797, 15
        %vm862 = vcmp.ne.s32.totalorder %v798, 15
        %vm863 = vcmp.ne.s32.totalorder %v799, 15
        %vm864 = vcmp.ne.s32.totalorder %v800, 15
        %vm865 = vcmp.ne.s32.totalorder %v801, 15
        %vm866 = vcmp.ne.s32.totalorder %v802, 15
        %vm867 = vcmp.ne.s32.totalorder %v803, 15
        %vm868 = vcmp.ne.s32.totalorder %v804, 15
        %vm869 = vcmp.ne.s32.totalorder %v805, 15
        %vm870 = vcmp.ne.s32.totalorder %v806, 15
        %vm871 = vcmp.ne.s32.totalorder %v807, 15
        %vm872 = vcmp.ne.s32.totalorder %v808, 15
        %vm873 = vcmp.ne.s32.totalorder %v809, 15
        %vm874 = vcmp.ne.s32.totalorder %v810, 15
        %vm875 = vcmp.ne.s32.totalorder %v811, 15
        %vm876 = vcmp.ne.s32.totalorder %v812, 15
        %vm877 = vcmp.ne.s32.totalorder %v813, 15
        %vm878 = vcmp.ne.s32.totalorder %v814, 15
        %vm879 = vcmp.ne.s32.totalorder %v815, 15
        %vm880 = vcmp.ne.s32.totalorder %v816, 15
        %vm881 = vcmp.ne.s32.totalorder %v817, 15
        %882 = vst [vmem:[#allocation2 + $0x18] sm:$0xff] 0
        %883 = vst [vmem:[#allocation2 + $0x20] sm:$0xff] 0
        %884 = vst [vmem:[#allocation2 + $0x28] sm:$0xff] 0
        %885 = vst [vmem:[#allocation2 + $0x180] sm:$0xff] 0
        %886 = vst [vmem:[#allocation2 + $0x188] sm:$0xff] 0
        %887 = vst [vmem:[#allocation2 + $0x190] sm:$0xff] 0
        %v888 = vunpack.c.l.bf16 %v369
        %v889 = vunpack.c.l.bf16 %v370
        %v890 = vunpack.c.l.bf16 %v371
        %v891 = vunpack.c.l.bf16 %v372
        %v892 = vunpack.c.l.bf16 %v373
        %v893 = vunpack.c.l.bf16 %v374
        %v894 = vunpack.c.l.bf16 %v375
        %v895 = vunpack.c.l.bf16 %v376
        %v896 = vunpack.c.l.bf16 %v377
        %v897 = vunpack.c.l.bf16 %v378
        %v898 = vunpack.c.l.bf16 %v379
        %v899 = vunpack.c.l.bf16 %v380
        %v900 = vunpack.c.l.bf16 %v381
        %v901 = vunpack.c.l.bf16 %v382
        %v902 = vunpack.c.l.bf16 %v383
        %v903 = vunpack.c.l.bf16 %v384
        %v904 = vunpack.c.l.bf16 %v385
        %v905 = vunpack.c.l.bf16 %v386
        %v906 = vunpack.c.l.bf16 %v387
        %v907 = vunpack.c.l.bf16 %v388
        %v908 = vunpack.c.l.bf16 %v389
        %v909 = vunpack.c.l.bf16 %v390
        %v910 = vunpack.c.l.bf16 %v391
        %v911 = vunpack.c.l.bf16 %v392
        %v912 = vunpack.c.l.bf16 %v393
        %v913 = vunpack.c.l.bf16 %v394
        %v914 = vunpack.c.l.bf16 %v395
        %v915 = vunpack.c.l.bf16 %v396
        %v916 = vunpack.c.l.bf16 %v397
        %v917 = vunpack.c.l.bf16 %v398
        %v918 = vunpack.c.l.bf16 %v399
        %v919 = vunpack.c.l.bf16 %v400
        %v920 = vld [vmem:[%s4] sm:$0x1]
        %v922 = vlaneseq
        %v923 = vshrl.u32 %v922, 7
        %v924 = vsub.s32 0, %v923
        %v925 = vrot.slane %v920, %v924
        %v927 = vmul.f32 %v888, %v925
        %v928 = vmul.f32 %v889, %v925
        %v929 = vmul.f32 %v890, %v925
        %v930 = vmul.f32 %v891, %v925
        %v931 = vmul.f32 %v892, %v925
        %v932 = vmul.f32 %v893, %v925
        %v933 = vmul.f32 %v894, %v925
        %v934 = vmul.f32 %v895, %v925
        %v935 = vmul.f32 %v896, %v925
        %v936 = vmul.f32 %v897, %v925
        %v937 = vmul.f32 %v898, %v925
        %v938 = vmul.f32 %v899, %v925
        %v939 = vmul.f32 %v900, %v925
        %v940 = vmul.f32 %v901, %v925
        %v941 = vmul.f32 %v902, %v925
        %v942 = vmul.f32 %v903, %v925
        %v943 = vmul.f32 %v904, %v925
        %v944 = vmul.f32 %v905, %v925
        %v945 = vmul.f32 %v906, %v925
        %v946 = vmul.f32 %v907, %v925
        %v947 = vmul.f32 %v908, %v925
        %v948 = vmul.f32 %v909, %v925
        %v949 = vmul.f32 %v910, %v925
        %v950 = vmul.f32 %v911, %v925
        %v951 = vmul.f32 %v912, %v925
        %v952 = vmul.f32 %v913, %v925
        %v953 = vmul.f32 %v914, %v925
        %v954 = vmul.f32 %v915, %v925
        %v955 = vmul.f32 %v916, %v925
        %v956 = vmul.f32 %v917, %v925
        %v957 = vmul.f32 %v918, %v925
        %v958 = vmul.f32 %v919, %v925
        %v959 = vld [vmem:[%s5] sm:$0x1]
        %v961 = vlaneseq
        %v962 = vshrl.u32 %v961, 7
        %v963 = vsub.s32 0, %v962
        %v964 = vrot.slane %v959, %v963
        %v966 = vadd.f32 %v927, %v964
        %v967 = vadd.f32 %v928, %v964
        %v968 = vadd.f32 %v929, %v964
        %v969 = vadd.f32 %v930, %v964
        %v970 = vadd.f32 %v931, %v964
        %v971 = vadd.f32 %v932, %v964
        %v972 = vadd.f32 %v933, %v964
        %v973 = vadd.f32 %v934, %v964
        %v974 = vadd.f32 %v935, %v964
        %v975 = vadd.f32 %v936, %v964
        %v976 = vadd.f32 %v937, %v964
        %v977 = vadd.f32 %v938, %v964
        %v978 = vadd.f32 %v939, %v964
        %v979 = vadd.f32 %v940, %v964
        %v980 = vadd.f32 %v941, %v964
        %v981 = vadd.f32 %v942, %v964
        %v982 = vadd.f32 %v943, %v964
        %v983 = vadd.f32 %v944, %v964
        %v984 = vadd.f32 %v945, %v964
        %v985 = vadd.f32 %v946, %v964
        %v986 = vadd.f32 %v947, %v964
        %v987 = vadd.f32 %v948, %v964
        %v988 = vadd.f32 %v949, %v964
        %v989 = vadd.f32 %v950, %v964
        %v990 = vadd.f32 %v951, %v964
        %v991 = vadd.f32 %v952, %v964
        %v992 = vadd.f32 %v953, %v964
        %v993 = vadd.f32 %v954, %v964
        %v994 = vadd.f32 %v955, %v964
        %v995 = vadd.f32 %v956, %v964
        %v996 = vadd.f32 %v957, %v964
        %v997 = vadd.f32 %v958, %v964
        %v998 = vmax.f32 %v966, 0.0
        %v999 = vmax.f32 %v967, 0.0
        %v1000 = vmax.f32 %v968, 0.0
        %v1001 = vmax.f32 %v969, 0.0
        %v1002 = vmax.f32 %v970, 0.0
        %v1003 = vmax.f32 %v971, 0.0
        %v1004 = vmax.f32 %v972, 0.0
        %v1005 = vmax.f32 %v973, 0.0
        %v1006 = vmax.f32 %v974, 0.0
        %v1007 = vmax.f32 %v975, 0.0
        %v1008 = vmax.f32 %v976, 0.0
        %v1009 = vmax.f32 %v977, 0.0
        %v1010 = vmax.f32 %v978, 0.0
        %v1011 = vmax.f32 %v979, 0.0
        %v1012 = vmax.f32 %v980, 0.0
        %v1013 = vmax.f32 %v981, 0.0
        %v1014 = vmax.f32 %v982, 0.0
        %v1015 = vmax.f32 %v983, 0.0
        %v1016 = vmax.f32 %v984, 0.0
        %v1017 = vmax.f32 %v985, 0.0
        %v1018 = vmax.f32 %v986, 0.0
        %v1019 = vmax.f32 %v987, 0.0
        %v1020 = vmax.f32 %v988, 0.0
        %v1021 = vmax.f32 %v989, 0.0
        %v1022 = vmax.f32 %v990, 0.0
        %v1023 = vmax.f32 %v991, 0.0
        %v1024 = vmax.f32 %v992, 0.0
        %v1025 = vmax.f32 %v993, 0.0
        %v1026 = vmax.f32 %v994, 0.0
        %v1027 = vmax.f32 %v995, 0.0
        %v1028 = vmax.f32 %v996, 0.0
        %v1029 = vmax.f32 %v997, 0.0
        %v1030 = vpack.c.bf16 %v999, %v998
        %v1031 = vpack.c.bf16 %v1001, %v1000
        %v1032 = vpack.c.bf16 %v1003, %v1002
        %v1033 = vpack.c.bf16 %v1005, %v1004
        %v1034 = vpack.c.bf16 %v1007, %v1006
        %v1035 = vpack.c.bf16 %v1009, %v1008
        %v1036 = vpack.c.bf16 %v1011, %v1010
        %v1037 = vpack.c.bf16 %v1013, %v1012
        %v1038 = vpack.c.bf16 %v1015, %v1014
        %v1039 = vpack.c.bf16 %v1017, %v1016
        %v1040 = vpack.c.bf16 %v1019, %v1018
        %v1041 = vpack.c.bf16 %v1021, %v1020
        %v1042 = vpack.c.bf16 %v1023, %v1022
        %v1043 = vpack.c.bf16 %v1025, %v1024
        %v1044 = vpack.c.bf16 %v1027, %v1026
        %v1045 = vpack.c.bf16 %v1029, %v1028
        %1046 = vst [vmem:[#allocation2 + $0x30] sm:$0xff] %v1030
        %1047 = vst [vmem:[#allocation2 + $0x48] sm:$0xff] %v1031
        %1048 = vst [vmem:[#allocation2 + $0x60] sm:$0xff] %v1032
        %1049 = vst [vmem:[#allocation2 + $0x78] sm:$0xff] %v1033
        %1050 = vst [vmem:[#allocation2 + $0x90] sm:$0xff] %v1034
        %1051 = vst [vmem:[#allocation2 + $0xa8] sm:$0xff] %v1035
        %1052 = vst [vmem:[#allocation2 + $0xc0] sm:$0xff] %v1036
        %1053 = vst [vmem:[#allocation2 + $0xd8] sm:$0xff] %v1037
        %1054 = vst [vmem:[#allocation2 + $0xf0] sm:$0xff] %v1038
        %1055 = vst [vmem:[#allocation2 + $0x108] sm:$0xff] %v1039
        %1056 = vst [vmem:[#allocation2 + $0x120] sm:$0xff] %v1040
        %1057 = vst [vmem:[#allocation2 + $0x138] sm:$0xff] %v1041
        %1058 = vst [vmem:[#allocation2 + $0x150] sm:$0xff] %v1042
        %1059 = vst [vmem:[#allocation2 + $0x168] sm:$0xff] %v1043
        %1060 = vst [vmem:[#allocation2 + $0x180] sm:$0xff] %v1044
        %1061 = vst [vmem:[#allocation2 + $0x198] sm:$0xff] %v1045
        %1062 = vst [vmem:[#allocation2 + $0x20] sm:$0xff] %v1030
        %1063 = vst [vmem:[#allocation2 + $0x38] sm:$0xff] %v1031
        %1064 = vst [vmem:[#allocation2 + $0x50] sm:$0xff] %v1032
        %1065 = vst [vmem:[#allocation2 + $0x68] sm:$0xff] %v1033
        %1066 = vst [vmem:[#allocation2 + $0x80] sm:$0xff] %v1034
        %1067 = vst [vmem:[#allocation2 + $0x98] sm:$0xff] %v1035
        %1068 = vst [vmem:[#allocation2 + $0xb0] sm:$0xff] %v1036
        %1069 = vst [vmem:[#allocation2 + $0xc8] sm:$0xff] %v1037
        %1070 = vst [vmem:[#allocation2 + $0xe0] sm:$0xff] %v1038
        %1071 = vst [vmem:[#allocation2 + $0xf8] sm:$0xff] %v1039
        %1072 = vst [vmem:[#allocation2 + $0x110] sm:$0xff] %v1040
        %1073 = vst [vmem:[#allocation2 + $0x128] sm:$0xff] %v1041
        %1074 = vst [vmem:[#allocation2 + $0x140] sm:$0xff] %v1042
        %1075 = vst [vmem:[#allocation2 + $0x158] sm:$0xff] %v1043
        %1076 = vst [vmem:[#allocation2 + $0x170] sm:$0xff] %v1044
        %1077 = vst [vmem:[#allocation2 + $0x188] sm:$0xff] %v1045
        %1078 = vst [vmem:[#allocation2 + $0x10] sm:$0xff] %v1030
        %1079 = vst [vmem:[#allocation2 + $0x28] sm:$0xff] %v1031
        %1080 = vst [vmem:[#allocation2 + $0x40] sm:$0xff] %v1032
        %1081 = vst [vmem:[#allocation2 + $0x58] sm:$0xff] %v1033
        %1082 = vst [vmem:[#allocation2 + $0x70] sm:$0xff] %v1034
        %1083 = vst [vmem:[#allocation2 + $0x88] sm:$0xff] %v1035
        %1084 = vst [vmem:[#allocation2 + $0xa0] sm:$0xff] %v1036
        %1085 = vst [vmem:[#allocation2 + $0xb8] sm:$0xff] %v1037
        %1086 = vst [vmem:[#allocation2 + $0xd0] sm:$0xff] %v1038
        %1087 = vst [vmem:[#allocation2 + $0xe8] sm:$0xff] %v1039
        %1088 = vst [vmem:[#allocation2 + $0x100] sm:$0xff] %v1040
        %1089 = vst [vmem:[#allocation2 + $0x118] sm:$0xff] %v1041
        %1090 = vst [vmem:[#allocation2 + $0x130] sm:$0xff] %v1042
        %1091 = vst [vmem:[#allocation2 + $0x148] sm:$0xff] %v1043
        %1092 = vst [vmem:[#allocation2 + $0x160] sm:$0xff] %v1044
        %1093 = vst [vmem:[#allocation2 + $0x178] sm:$0xff] %v1045
        %v1094 = vld [vmem:[#allocation2 + $0x18] sm:$0xff]
        %v1095 = vld [vmem:[#allocation2 + $0x20] sm:$0xff]
        %v1096 = vld [vmem:[#allocation2 + $0x28] sm:$0xff]
        %v1097 = vld [vmem:[#allocation2 + $0x30] sm:$0xff]
        %v1098 = vld [vmem:[#allocation2 + $0x38] sm:$0xff]
        %v1099 = vld [vmem:[#allocation2 + $0x40] sm:$0xff]
        %v1100 = vld [vmem:[#allocation2 + $0x48] sm:$0xff]
        %v1101 = vld [vmem:[#allocation2 + $0x50] sm:$0xff]
        %v1102 = vld [vmem:[#allocation2 + $0x58] sm:$0xff]
        %v1103 = vld [vmem:[#allocation2 + $0x60] sm:$0xff]
        %v1104 = vld [vmem:[#allocation2 + $0x68] sm:$0xff]
        %v1105 = vld [vmem:[#allocation2 + $0x70] sm:$0xff]
        %v1106 = vld [vmem:[#allocation2 + $0x78] sm:$0xff]
        %v1107 = vld [vmem:[#allocation2 + $0x80] sm:$0xff]
        %v1108 = vld [vmem:[#allocation2 + $0x88] sm:$0xff]
        %v1109 = vld [vmem:[#allocation2 + $0x90] sm:$0xff]
        %v1110 = vld [vmem:[#allocation2 + $0x98] sm:$0xff]
        %v1111 = vld [vmem:[#allocation2 + $0xa0] sm:$0xff]
        %v1112 = vld [vmem:[#allocation2 + $0xa8] sm:$0xff]
        %v1113 = vld [vmem:[#allocation2 + $0xb0] sm:$0xff]
        %v1114 = vld [vmem:[#allocation2 + $0xb8] sm:$0xff]
        %v1115 = vld [vmem:[#allocation2 + $0xc0] sm:$0xff]
        %v1116 = vld [vmem:[#allocation2 + $0xc8] sm:$0xff]
        %v1117 = vld [vmem:[#allocation2 + $0xd0] sm:$0xff]
        %v1118 = vld [vmem:[#allocation2 + $0xd8] sm:$0xff]
        %v1119 = vld [vmem:[#allocation2 + $0xe0] sm:$0xff]
        %v1120 = vld [vmem:[#allocation2 + $0xe8] sm:$0xff]
        %v1121 = vld [vmem:[#allocation2 + $0xf0] sm:$0xff]
        %v1122 = vld [vmem:[#allocation2 + $0xf8] sm:$0xff]
        %v1123 = vld [vmem:[#allocation2 + $0x100] sm:$0xff]
        %v1124 = vld [vmem:[#allocation2 + $0x108] sm:$0xff]
        %v1125 = vld [vmem:[#allocation2 + $0x110] sm:$0xff]
        %v1126 = vld [vmem:[#allocation2 + $0x118] sm:$0xff]
        %v1127 = vld [vmem:[#allocation2 + $0x120] sm:$0xff]
        %v1128 = vld [vmem:[#allocation2 + $0x128] sm:$0xff]
        %v1129 = vld [vmem:[#allocation2 + $0x130] sm:$0xff]
        %v1130 = vld [vmem:[#allocation2 + $0x138] sm:$0xff]
        %v1131 = vld [vmem:[#allocation2 + $0x140] sm:$0xff]
        %v1132 = vld [vmem:[#allocation2 + $0x148] sm:$0xff]
        %v1133 = vld [vmem:[#allocation2 + $0x150] sm:$0xff]
        %v1134 = vld [vmem:[#allocation2 + $0x158] sm:$0xff]
        %v1135 = vld [vmem:[#allocation2 + $0x160] sm:$0xff]
        %v1136 = vld [vmem:[#allocation2 + $0x168] sm:$0xff]
        %v1137 = vld [vmem:[#allocation2 + $0x170] sm:$0xff]
        %v1138 = vld [vmem:[#allocation2 + $0x178] sm:$0xff]
        %v1139 = vld [vmem:[#allocation2 + $0x180] sm:$0xff]
        %v1140 = vld [vmem:[#allocation2 + $0x188] sm:$0xff]
        %v1141 = vld [vmem:[#allocation2 + $0x190] sm:$0xff]
        %v1142 = vld [vmem:[#allocation8] sm:$0xff]
        %v1143 = vld [vmem:[#allocation8 + $0x8] sm:$0xf]
        %v1144 = vld [vmem:[#allocation8 + $0xc] sm:$0xff]
        %v1145 = vld [vmem:[#allocation8 + $0x14] sm:$0xf]
        %v1146 = vld [vmem:[#allocation8 + $0x18] sm:$0xff]
        %v1147 = vld [vmem:[#allocation8 + $0x20] sm:$0xf]
        %v1148 = vld [vmem:[#allocation8 + $0x24] sm:$0xff]
        %v1149 = vld [vmem:[#allocation8 + $0x2c] sm:$0xf]
        %v1150 = vld [vmem:[#allocation8 + $0x30] sm:$0xff]
        %v1151 = vld [vmem:[#allocation8 + $0x38] sm:$0xf]
        %v1152 = vld [vmem:[#allocation8 + $0x3c] sm:$0xff]
        %v1153 = vld [vmem:[#allocation8 + $0x44] sm:$0xf]
        %v1154 = vld [vmem:[#allocation8 + $0x48] sm:$0xff]
        %v1155 = vld [vmem:[#allocation8 + $0x50] sm:$0xf]
        %v1156 = vld [vmem:[#allocation8 + $0x54] sm:$0xff]
        %v1157 = vld [vmem:[#allocation8 + $0x5c] sm:$0xf]
        %v1158 = vld [vmem:[#allocation8 + $0x60] sm:$0xff]
        %v1159 = vld [vmem:[#allocation8 + $0x68] sm:$0xf]
        %v1160 = vld [vmem:[#allocation8 + $0x6c] sm:$0xff]
        %v1161 = vld [vmem:[#allocation8 + $0x74] sm:$0xf]
        %v1162 = vld [vmem:[#allocation8 + $0x78] sm:$0xff]
        %v1163 = vld [vmem:[#allocation8 + $0x80] sm:$0xf]
        %v1164 = vld [vmem:[#allocation8 + $0x84] sm:$0xff]
        %v1165 = vld [vmem:[#allocation8 + $0x8c] sm:$0xf]
        %v1166 = vld [vmem:[#allocation8 + $0x90] sm:$0xff]
        %v1167 = vld [vmem:[#allocation8 + $0x98] sm:$0xf]
        %v1168 = vld [vmem:[#allocation8 + $0x9c] sm:$0xff]
        %v1169 = vld [vmem:[#allocation8 + $0xa4] sm:$0xf]
        %v1170 = vld [vmem:[#allocation8 + $0xa8] sm:$0xff]
        %v1171 = vld [vmem:[#allocation8 + $0xb0] sm:$0xf]
        %v1172 = vld [vmem:[#allocation8 + $0xb4] sm:$0xff]
        %v1173 = vld [vmem:[#allocation8 + $0xbc] sm:$0xf]
        %v1174 = vld [vmem:[#allocation8 + $0xc0] sm:$0xff]
        %v1175 = vld [vmem:[#allocation8 + $0xc8] sm:$0xf]
        %v1176 = vld [vmem:[#allocation8 + $0xcc] sm:$0xff]
        %v1177 = vld [vmem:[#allocation8 + $0xd4] sm:$0xf]
        %v1178 = vld [vmem:[#allocation8 + $0xd8] sm:$0xff]
        %v1179 = vld [vmem:[#allocation8 + $0xe0] sm:$0xf]
        %v1180 = vld [vmem:[#allocation8 + $0xe4] sm:$0xff]
        %v1181 = vld [vmem:[#allocation8 + $0xec] sm:$0xf]
        %v1182 = vld [vmem:[#allocation8 + $0xf0] sm:$0xff]
        %v1183 = vld [vmem:[#allocation8 + $0xf8] sm:$0xf]
        %v1184 = vld [vmem:[#allocation8 + $0xfc] sm:$0xff]
        %v1185 = vld [vmem:[#allocation8 + $0x104] sm:$0xf]
        %v1186 = vld [vmem:[#allocation8 + $0x108] sm:$0xff]
        %v1187 = vld [vmem:[#allocation8 + $0x110] sm:$0xf]
        %v1188 = vld [vmem:[#allocation8 + $0x114] sm:$0xff]
        %v1189 = vld [vmem:[#allocation8 + $0x11c] sm:$0xf]
        %v1190 = vld [vmem:[#allocation8 + $0x120] sm:$0xff]
        %v1191 = vld [vmem:[#allocation8 + $0x128] sm:$0xf]
        %v1192 = vld [vmem:[#allocation8 + $0x12c] sm:$0xff]
        %v1193 = vld [vmem:[#allocation8 + $0x134] sm:$0xf]
        %v1194 = vld [vmem:[#allocation8 + $0x138] sm:$0xff]
        %v1195 = vld [vmem:[#allocation8 + $0x140] sm:$0xf]
        %v1196 = vld [vmem:[#allocation8 + $0x144] sm:$0xff]
        %v1197 = vld [vmem:[#allocation8 + $0x14c] sm:$0xf]
        %v1198 = vld [vmem:[#allocation8 + $0x150] sm:$0xff]
        %v1199 = vld [vmem:[#allocation8 + $0x158] sm:$0xf]
        %v1200 = vld [vmem:[#allocation8 + $0x15c] sm:$0xff]
        %v1201 = vld [vmem:[#allocation8 + $0x164] sm:$0xf]
        %v1202 = vld [vmem:[#allocation8 + $0x168] sm:$0xff]
        %v1203 = vld [vmem:[#allocation8 + $0x170] sm:$0xf]
        %v1204 = vld [vmem:[#allocation8 + $0x174] sm:$0xff]
        %v1205 = vld [vmem:[#allocation8 + $0x17c] sm:$0xf]
        %v1206 = vld [vmem:[#allocation8 + $0x180] sm:$0xff]
        %v1207 = vld [vmem:[#allocation8 + $0x188] sm:$0xf]
        %v1208 = vld [vmem:[#allocation8 + $0x18c] sm:$0xff]
        %v1209 = vld [vmem:[#allocation8 + $0x194] sm:$0xf]
        %v1210 = vld [vmem:[#allocation8 + $0x198] sm:$0xff]
        %v1211 = vld [vmem:[#allocation8 + $0x1a0] sm:$0xf]
        %v1212 = vld [vmem:[#allocation8 + $0x1a4] sm:$0xff]
        %v1213 = vld [vmem:[#allocation8 + $0x1ac] sm:$0xf]
        %v1214 = vld [vmem:[#allocation8 + $0x1b0] sm:$0xff]
        %v1215 = vld [vmem:[#allocation8 + $0x1b8] sm:$0xf]
        %v1216 = vld [vmem:[#allocation8 + $0x1bc] sm:$0xff]
        %v1217 = vld [vmem:[#allocation8 + $0x1c4] sm:$0xf]
        %v1218 = vld [vmem:[#allocation8 + $0x1c8] sm:$0xff]
        %v1219 = vld [vmem:[#allocation8 + $0x1d0] sm:$0xf]
        %v1220 = vld [vmem:[#allocation8 + $0x1d4] sm:$0xff]
        %v1221 = vld [vmem:[#allocation8 + $0x1dc] sm:$0xf]
        %v1222 = vld [vmem:[#allocation8 + $0x1e0] sm:$0xff]
        %v1223 = vld [vmem:[#allocation8 + $0x1e8] sm:$0xf]
        %v1224 = vld [vmem:[#allocation8 + $0x1ec] sm:$0xff]
        %v1225 = vld [vmem:[#allocation8 + $0x1f4] sm:$0xf]
        %v1226 = vld [vmem:[#allocation8 + $0x1f8] sm:$0xff]
        %v1227 = vld [vmem:[#allocation8 + $0x200] sm:$0xf]
        %v1228 = vld [vmem:[#allocation8 + $0x204] sm:$0xff]
        %v1229 = vld [vmem:[#allocation8 + $0x20c] sm:$0xf]
        %v1230 = vld [vmem:[#allocation8 + $0x210] sm:$0xff]
        %v1231 = vld [vmem:[#allocation8 + $0x218] sm:$0xf]
        %v1232 = vld [vmem:[#allocation8 + $0x21c] sm:$0xff]
        %v1233 = vld [vmem:[#allocation8 + $0x224] sm:$0xf]
        %v1234 = vld [vmem:[#allocation8 + $0x228] sm:$0xff]
        %v1235 = vld [vmem:[#allocation8 + $0x230] sm:$0xf]
        %v1236 = vld [vmem:[#allocation8 + $0x234] sm:$0xff]
        %v1237 = vld [vmem:[#allocation8 + $0x23c] sm:$0xf]
        %v1334 = vunpack.c.l.b16 %v1142
        %v1335 = vunpack.c.h.b16 %v1142
        %v1336 = vunpack.c.l.b16 %v1143
        %v1337 = vunpack.c.l.b16 %v1144
        %v1338 = vunpack.c.h.b16 %v1144
        %v1339 = vunpack.c.l.b16 %v1145
        %v1340 = vunpack.c.l.b16 %v1146
        %v1341 = vunpack.c.h.b16 %v1146
        %v1342 = vunpack.c.l.b16 %v1147
        %v1343 = vunpack.c.l.b16 %v1148
        %v1344 = vunpack.c.h.b16 %v1148
        %v1345 = vunpack.c.l.b16 %v1149
        %v1346 = vunpack.c.l.b16 %v1150
        %v1347 = vunpack.c.h.b16 %v1150
        %v1348 = vunpack.c.l.b16 %v1151
        %v1349 = vunpack.c.l.b16 %v1152
        %v1350 = vunpack.c.h.b16 %v1152
        %v1351 = vunpack.c.l.b16 %v1153
        %v1352 = vunpack.c.l.b16 %v1154
        %v1353 = vunpack.c.h.b16 %v1154
        %v1354 = vunpack.c.l.b16 %v1155
        %v1355 = vunpack.c.l.b16 %v1156
        %v1356 = vunpack.c.h.b16 %v1156
        %v1357 = vunpack.c.l.b16 %v1157
        %v1358 = vunpack.c.l.b16 %v1158
        %v1359 = vunpack.c.h.b16 %v1158
        %v1360 = vunpack.c.l.b16 %v1159
        %v1361 = vunpack.c.l.b16 %v1160
        %v1362 = vunpack.c.h.b16 %v1160
        %v1363 = vunpack.c.l.b16 %v1161
        %v1364 = vunpack.c.l.b16 %v1162
        %v1365 = vunpack.c.h.b16 %v1162
        %v1366 = vunpack.c.l.b16 %v1163
        %v1367 = vunpack.c.l.b16 %v1164
        %v1368 = vunpack.c.h.b16 %v1164
        %v1369 = vunpack.c.l.b16 %v1165
        %v1370 = vunpack.c.l.b16 %v1166
        %v1371 = vunpack.c.h.b16 %v1166
        %v1372 = vunpack.c.l.b16 %v1167
        %v1373 = vunpack.c.l.b16 %v1168
        %v1374 = vunpack.c.h.b16 %v1168
        %v1375 = vunpack.c.l.b16 %v1169
        %v1376 = vunpack.c.l.b16 %v1170
        %v1377 = vunpack.c.h.b16 %v1170
        %v1378 = vunpack.c.l.b16 %v1171
        %v1379 = vunpack.c.l.b16 %v1172
        %v1380 = vunpack.c.h.b16 %v1172
        %v1381 = vunpack.c.l.b16 %v1173
        %v1382 = vunpack.c.l.b16 %v1174
        %v1383 = vunpack.c.h.b16 %v1174
        %v1384 = vunpack.c.l.b16 %v1175
        %v1385 = vunpack.c.l.b16 %v1176
        %v1386 = vunpack.c.h.b16 %v1176
        %v1387 = vunpack.c.l.b16 %v1177
        %v1388 = vunpack.c.l.b16 %v1178
        %v1389 = vunpack.c.h.b16 %v1178
        %v1390 = vunpack.c.l.b16 %v1179
        %v1391 = vunpack.c.l.b16 %v1180
        %v1392 = vunpack.c.h.b16 %v1180
        %v1393 = vunpack.c.l.b16 %v1181
        %v1394 = vunpack.c.l.b16 %v1182
        %v1395 = vunpack.c.h.b16 %v1182
        %v1396 = vunpack.c.l.b16 %v1183
        %v1397 = vunpack.c.l.b16 %v1184
        %v1398 = vunpack.c.h.b16 %v1184
        %v1399 = vunpack.c.l.b16 %v1185
        %v1400 = vunpack.c.l.b16 %v1186
        %v1401 = vunpack.c.h.b16 %v1186
        %v1402 = vunpack.c.l.b16 %v1187
        %v1403 = vunpack.c.l.b16 %v1188
        %v1404 = vunpack.c.h.b16 %v1188
        %v1405 = vunpack.c.l.b16 %v1189
        %v1406 = vunpack.c.l.b16 %v1190
        %v1407 = vunpack.c.h.b16 %v1190
        %v1408 = vunpack.c.l.b16 %v1191
        %v1409 = vunpack.c.l.b16 %v1192
        %v1410 = vunpack.c.h.b16 %v1192
        %v1411 = vunpack.c.l.b16 %v1193
        %v1412 = vunpack.c.l.b16 %v1194
        %v1413 = vunpack.c.h.b16 %v1194
        %v1414 = vunpack.c.l.b16 %v1195
        %v1415 = vunpack.c.l.b16 %v1196
        %v1416 = vunpack.c.h.b16 %v1196
        %v1417 = vunpack.c.l.b16 %v1197
        %v1418 = vunpack.c.l.b16 %v1198
        %v1419 = vunpack.c.h.b16 %v1198
        %v1420 = vunpack.c.l.b16 %v1199
        %v1421 = vunpack.c.l.b16 %v1200
        %v1422 = vunpack.c.h.b16 %v1200
        %v1423 = vunpack.c.l.b16 %v1201
        %v1424 = vunpack.c.l.b16 %v1202
        %v1425 = vunpack.c.h.b16 %v1202
        %v1426 = vunpack.c.l.b16 %v1203
        %v1427 = vunpack.c.l.b16 %v1204
        %v1428 = vunpack.c.h.b16 %v1204
        %v1429 = vunpack.c.l.b16 %v1205
        %v1430 = vunpack.c.l.b16 %v1206
        %v1431 = vunpack.c.h.b16 %v1206
        %v1432 = vunpack.c.l.b16 %v1207
        %v1433 = vunpack.c.l.b16 %v1208
        %v1434 = vunpack.c.h.b16 %v1208
        %v1435 = vunpack.c.l.b16 %v1209
        %v1436 = vunpack.c.l.b16 %v1210
        %v1437 = vunpack.c.h.b16 %v1210
        %v1438 = vunpack.c.l.b16 %v1211
        %v1439 = vunpack.c.l.b16 %v1212
        %v1440 = vunpack.c.h.b16 %v1212
        %v1441 = vunpack.c.l.b16 %v1213
        %v1442 = vunpack.c.l.b16 %v1214
        %v1443 = vunpack.c.h.b16 %v1214
        %v1444 = vunpack.c.l.b16 %v1215
        %v1445 = vunpack.c.l.b16 %v1216
        %v1446 = vunpack.c.h.b16 %v1216
        %v1447 = vunpack.c.l.b16 %v1217
        %v1448 = vunpack.c.l.b16 %v1218
        %v1449 = vunpack.c.h.b16 %v1218
        %v1450 = vunpack.c.l.b16 %v1219
        %v1451 = vunpack.c.l.b16 %v1220
        %v1452 = vunpack.c.h.b16 %v1220
        %v1453 = vunpack.c.l.b16 %v1221
        %v1454 = vunpack.c.l.b16 %v1222
        %v1455 = vunpack.c.h.b16 %v1222
        %v1456 = vunpack.c.l.b16 %v1223
        %v1457 = vunpack.c.l.b16 %v1224
        %v1458 = vunpack.c.h.b16 %v1224
        %v1459 = vunpack.c.l.b16 %v1225
        %v1460 = vunpack.c.l.b16 %v1226
        %v1461 = vunpack.c.h.b16 %v1226
        %v1462 = vunpack.c.l.b16 %v1227
        %v1463 = vunpack.c.l.b16 %v1228
        %v1464 = vunpack.c.h.b16 %v1228
        %v1465 = vunpack.c.l.b16 %v1229
        %v1466 = vunpack.c.l.b16 %v1230
        %v1467 = vunpack.c.h.b16 %v1230
        %v1468 = vunpack.c.l.b16 %v1231
        %v1469 = vunpack.c.l.b16 %v1232
        %v1470 = vunpack.c.h.b16 %v1232
        %v1471 = vunpack.c.l.b16 %v1233
        %v1472 = vunpack.c.l.b16 %v1234
        %v1473 = vunpack.c.h.b16 %v1234
        %v1474 = vunpack.c.l.b16 %v1235
        %v1475 = vunpack.c.l.b16 %v1236
        %v1476 = vunpack.c.h.b16 %v1236
        %v1477 = vunpack.c.l.b16 %v1237
        %v1478 = vpack.c.b16 %v1337, %v1334
        %v1479 = vpack.c.b16 %v1338, %v1335
        %v1480 = vpack.c.b16 %v1339, %v1336
        %v1481 = vpack.c.b16 %v1343, %v1340
        %v1482 = vpack.c.b16 %v1344, %v1341
        %v1483 = vpack.c.b16 %v1345, %v1342
        %v1484 = vpack.c.b16 %v1349, %v1346
        %v1485 = vpack.c.b16 %v1350, %v1347
        %v1486 = vpack.c.b16 %v1351, %v1348
        %v1487 = vpack.c.b16 %v1355, %v1352
        %v1488 = vpack.c.b16 %v1356, %v1353
        %v1489 = vpack.c.b16 %v1357, %v1354
        %v1490 = vpack.c.b16 %v1361, %v1358
        %v1491 = vpack.c.b16 %v1362, %v1359
        %v1492 = vpack.c.b16 %v1363, %v1360
        %v1493 = vpack.c.b16 %v1367, %v1364
        %v1494 = vpack.c.b16 %v1368, %v1365
        %v1495 = vpack.c.b16 %v1369, %v1366
        %v1496 = vpack.c.b16 %v1373, %v1370
        %v1497 = vpack.c.b16 %v1374, %v1371
        %v1498 = vpack.c.b16 %v1375, %v1372
        %v1499 = vpack.c.b16 %v1379, %v1376
        %v1500 = vpack.c.b16 %v1380, %v1377
        %v1501 = vpack.c.b16 %v1381, %v1378
        %v1502 = vpack.c.b16 %v1385, %v1382
        %v1503 = vpack.c.b16 %v1386, %v1383
        %v1504 = vpack.c.b16 %v1387, %v1384
        %v1505 = vpack.c.b16 %v1391, %v1388
        %v1506 = vpack.c.b16 %v1392, %v1389
        %v1507 = vpack.c.b16 %v1393, %v1390
        %v1508 = vpack.c.b16 %v1397, %v1394
        %v1509 = vpack.c.b16 %v1398, %v1395
        %v1510 = vpack.c.b16 %v1399, %v1396
        %v1511 = vpack.c.b16 %v1403, %v1400
        %v1512 = vpack.c.b16 %v1404, %v1401
        %v1513 = vpack.c.b16 %v1405, %v1402
        %v1514 = vpack.c.b16 %v1409, %v1406
        %v1515 = vpack.c.b16 %v1410, %v1407
        %v1516 = vpack.c.b16 %v1411, %v1408
        %v1517 = vpack.c.b16 %v1415, %v1412
        %v1518 = vpack.c.b16 %v1416, %v1413
        %v1519 = vpack.c.b16 %v1417, %v1414
        %v1520 = vpack.c.b16 %v1421, %v1418
        %v1521 = vpack.c.b16 %v1422, %v1419
        %v1522 = vpack.c.b16 %v1423, %v1420
        %v1523 = vpack.c.b16 %v1427, %v1424
        %v1524 = vpack.c.b16 %v1428, %v1425
        %v1525 = vpack.c.b16 %v1429, %v1426
        %v1526 = vpack.c.b16 %v1433, %v1430
        %v1527 = vpack.c.b16 %v1434, %v1431
        %v1528 = vpack.c.b16 %v1435, %v1432
        %v1529 = vpack.c.b16 %v1439, %v1436
        %v1530 = vpack.c.b16 %v1440, %v1437
        %v1531 = vpack.c.b16 %v1441, %v1438
        %v1532 = vpack.c.b16 %v1445, %v1442
        %v1533 = vpack.c.b16 %v1446, %v1443
        %v1534 = vpack.c.b16 %v1447, %v1444
        %v1535 = vpack.c.b16 %v1451, %v1448
        %v1536 = vpack.c.b16 %v1452, %v1449
        %v1537 = vpack.c.b16 %v1453, %v1450
        %v1538 = vpack.c.b16 %v1457, %v1454
        %v1539 = vpack.c.b16 %v1458, %v1455
        %v1540 = vpack.c.b16 %v1459, %v1456
        %v1541 = vpack.c.b16 %v1463, %v1460
        %v1542 = vpack.c.b16 %v1464, %v1461
        %v1543 = vpack.c.b16 %v1465, %v1462
        %v1544 = vpack.c.b16 %v1469, %v1466
        %v1545 = vpack.c.b16 %v1470, %v1467
        %v1546 = vpack.c.b16 %v1471, %v1468
        %v1547 = vpack.c.b16 %v1475, %v1472
        %v1548 = vpack.c.b16 %v1476, %v1473
        %v1549 = vpack.c.b16 %v1477, %v1474
        %1622 = vmatprep.subr.bf16.mxu0 %v1479
        %1623 = vmatpush1.bf16.msra.mxu0 %v1478
        %1624 = vmatprep.subr.bf16.mxu0 %v1482
        %1625 = vmatpush1.bf16.msra.mxu0 %v1481
        %1626 = vmatprep.subr.bf16.mxu0 %v1485
        %1627 = vmatpush1.bf16.msra.mxu0 %v1484
        %1628 = vmatprep.subr.bf16.mxu0 %v1488
        %1629 = vmatpush1.bf16.msra.mxu0 %v1487
        %1630 = vmatprep.subr.bf16.mxu0 %v1491
        %1631 = vmatpush1.bf16.msra.mxu0 %v1490
        %1632 = vmatprep.subr.bf16.mxu0 %v1494
        %1633 = vmatpush1.bf16.msra.mxu0 %v1493
        %1634 = vmatprep.subr.bf16.mxu0 %v1497
        %1635 = vmatpush1.bf16.msra.mxu0 %v1496
        %1636 = vmatprep.subr.bf16.mxu0 %v1500
        %1637 = vmatpush1.bf16.msra.mxu0 %v1499
        %1638 = vmatprep.subr.bf16.mxu0 %v1503
        %1639 = vmatpush1.bf16.msra.mxu0 %v1502
        %1640 = vmatprep.subr.bf16.mxu0 %v1506
        %1641 = vmatpush1.bf16.msra.mxu0 %v1505
        %1642 = vmatprep.subr.bf16.mxu0 %v1509
        %1643 = vmatpush1.bf16.msra.mxu0 %v1508
        %1644 = vmatprep.subr.bf16.mxu0 %v1512
        %1645 = vmatpush1.bf16.msra.mxu0 %v1511
        %1646 = vmatprep.subr.bf16.mxu0 %v1515
        %1647 = vmatpush1.bf16.msra.mxu0 %v1514
        %1648 = vmatprep.subr.bf16.mxu0 %v1518
        %1649 = vmatpush1.bf16.msra.mxu0 %v1517
        %1650 = vmatprep.subr.bf16.mxu0 %v1521
        %1651 = vmatpush1.bf16.msra.mxu0 %v1520
        %1652 = vmatprep.subr.bf16.mxu0 %v1524
        %1653 = vmatpush1.bf16.msra.mxu0 %v1523
        %1654 = vmatprep.mubr.bf16.mxu0 %v1095
        %1655 = vmatmul.mubr.bf16.gmra.mrb[0].mxu0 %v1094
        %v1656 = vpop.f32.mrb[0].mxu0
        %v1657 = vadd.f32 0.0, %v1656
        %v1658 = vpop.f32.mrb[0].mxu0
        %v1659 = vadd.f32 0.0, %v1658
        %v1660 = vpop.f32.mrb[0].mxu0
        %v1661 = vadd.f32 0.0, %v1660
        %v1662 = vpop.f32.mrb[0].mxu0
        %v1663 = vadd.f32 0.0, %v1662
        %1664 = vmatprep.mubr.bf16.mxu0 %v1098
        %1665 = vmatmul.mubr.bf16.gmra.mrb[0].mxu0 %v1097
        %v1666 = vpop.f32.mrb[0].mxu0
        %v1667 = vadd.f32 0.0, %v1666
        %v1668 = vpop.f32.mrb[0].mxu0
        %v1669 = vadd.f32 0.0, %v1668
        %v1670 = vpop.f32.mrb[0].mxu0
        %v1671 = vadd.f32 0.0, %v1670
        %v1672 = vpop.f32.mrb[0].mxu0
        %v1673 = vadd.f32 0.0, %v1672
        %1674 = vmatprep.mubr.bf16.mxu0 %v1101
        %1675 = vmatmul.mubr.bf16.gmra.mrb[0].mxu0 %v1100
        %v1676 = vpop.f32.mrb[0].mxu0
        %v1677 = vadd.f32 0.0, %v1676
        %v1678 = vpop.f32.mrb[0].mxu0
        %v1679 = vadd.f32 0.0, %v1678
        %v1680 = vpop.f32.mrb[0].mxu0
        %v1681 = vadd.f32 0.0, %v1680
        %v1682 = vpop.f32.mrb[0].mxu0
        %v1683 = vadd.f32 0.0, %v1682
        %1684 = vmatprep.mubr.bf16.mxu0 %v1104
        %1685 = vmatmul.mubr.bf16.gmra.mrb[0].mxu0 %v1103
        %v1686 = vpop.f32.mrb[0].mxu0
        %v1687 = vadd.f32 0.0, %v1686
        %v1688 = vpop.f32.mrb[0].mxu0
        %v1689 = vadd.f32 0.0, %v1688
        %v1690 = vpop.f32.mrb[0].mxu0
        %v1691 = vadd.f32 0.0, %v1690
        %v1692 = vpop.f32.mrb[0].mxu0
        %v1693 = vadd.f32 0.0, %v1692
        %1694 = vmatprep.mubr.bf16.mxu0 %v1107
        %1695 = vmatmul.mubr.bf16.gmra.mrb[0].mxu0 %v1106
        %v1696 = vpop.f32.mrb[0].mxu0
        %v1697 = vadd.f32 0.0, %v1696
        %v1698 = vpop.f32.mrb[0].mxu0
        %v1699 = vadd.f32 0.0, %v1698
        %v1700 = vpop.f32.mrb[0].mxu0
        %v1701 = vadd.f32 0.0, %v1700
        %v1702 = vpop.f32.mrb[0].mxu0
        %v1703 = vadd.f32 0.0, %v1702
        %1704 = vmatprep.mubr.bf16.mxu0 %v1110
        %1705 = vmatmul.mubr.bf16.gmra.mrb[0].mxu0 %v1109
        %v1706 = vpop.f32.mrb[0].mxu0
        %v1707 = vadd.f32 0.0, %v1706
        %v1708 = vpop.f32.mrb[0].mxu0
        %v1709 = vadd.f32 0.0, %v1708
        %v1710 = vpop.f32.mrb[0].mxu0
        %v1711 = vadd.f32 0.0, %v1710
        %v1712 = vpop.f32.mrb[0].mxu0
        %v1713 = vadd.f32 0.0, %v1712
        %1714 = vmatprep.mubr.bf16.mxu0 %v1113
        %1715 = vmatmul.mubr.bf16.gmra.mrb[0].mxu0 %v1112
        %v1716 = vpop.f32.mrb[0].mxu0
        %v1717 = vadd.f32 0.0, %v1716
        %v1718 = vpop.f32.mrb[0].mxu0
        %v1719 = vadd.f32 0.0, %v1718
        %v1720 = vpop.f32.mrb[0].mxu0
        %v1721 = vadd.f32 0.0, %v1720
        %v1722 = vpop.f32.mrb[0].mxu0
        %v1723 = vadd.f32 0.0, %v1722
        %1724 = vmatprep.mubr.bf16.mxu0 %v1116
        %1725 = vmatmul.mubr.bf16.gmra.mrb[0].mxu0 %v1115
        %v1726 = vpop.f32.mrb[0].mxu0
        %v1727 = vadd.f32 0.0, %v1726
        %v1728 = vpop.f32.mrb[0].mxu0
        %v1729 = vadd.f32 0.0, %v1728
        %v1730 = vpop.f32.mrb[0].mxu0
        %v1731 = vadd.f32 0.0, %v1730
        %v1732 = vpop.f32.mrb[0].mxu0
        %v1733 = vadd.f32 0.0, %v1732
        %1734 = vmatprep.mubr.bf16.mxu0 %v1119
        %1735 = vmatmul.mubr.bf16.gmra.mrb[0].mxu0 %v1118
        %v1736 = vpop.f32.mrb[0].mxu0
        %v1737 = vadd.f32 0.0, %v1736
        %v1738 = vpop.f32.mrb[0].mxu0
        %v1739 = vadd.f32 0.0, %v1738
        %v1740 = vpop.f32.mrb[0].mxu0
        %v1741 = vadd.f32 0.0, %v1740
        %v1742 = vpop.f32.mrb[0].mxu0
        %v1743 = vadd.f32 0.0, %v1742
        %1744 = vmatprep.mubr.bf16.mxu0 %v1122
        %1745 = vmatmul.mubr.bf16.gmra.mrb[0].mxu0 %v1121
        %v1746 = vpop.f32.mrb[0].mxu0
        %v1747 = vadd.f32 0.0, %v1746
        %v1748 = vpop.f32.mrb[0].mxu0
        %v1749 = vadd.f32 0.0, %v1748
        %v1750 = vpop.f32.mrb[0].mxu0
        %v1751 = vadd.f32 0.0, %v1750
        %v1752 = vpop.f32.mrb[0].mxu0
        %v1753 = vadd.f32 0.0, %v1752
        %1754 = vmatprep.mubr.bf16.mxu0 %v1125
        %1755 = vmatmul.mubr.bf16.gmra.mrb[0].mxu0 %v1124
        %v1756 = vpop.f32.mrb[0].mxu0
        %v1757 = vadd.f32 0.0, %v1756
        %v1758 = vpop.f32.mrb[0].mxu0
        %v1759 = vadd.f32 0.0, %v1758
        %v1760 = vpop.f32.mrb[0].mxu0
        %v1761 = vadd.f32 0.0, %v1760
        %v1762 = vpop.f32.mrb[0].mxu0
        %v1763 = vadd.f32 0.0, %v1762
        %1764 = vmatprep.mubr.bf16.mxu0 %v1128
        %1765 = vmatmul.mubr.bf16.gmra.mrb[0].mxu0 %v1127
        %v1766 = vpop.f32.mrb[0].mxu0
        %v1767 = vadd.f32 0.0, %v1766
        %v1768 = vpop.f32.mrb[0].mxu0
        %v1769 = vadd.f32 0.0, %v1768
        %v1770 = vpop.f32.mrb[0].mxu0
        %v1771 = vadd.f32 0.0, %v1770
        %v1772 = vpop.f32.mrb[0].mxu0
        %v1773 = vadd.f32 0.0, %v1772
        %1774 = vmatprep.mubr.bf16.mxu0 %v1131
        %1775 = vmatmul.mubr.bf16.gmra.mrb[0].mxu0 %v1130
        %v1776 = vpop.f32.mrb[0].mxu0
        %v1777 = vadd.f32 0.0, %v1776
        %v1778 = vpop.f32.mrb[0].mxu0
        %v1779 = vadd.f32 0.0, %v1778
        %v1780 = vpop.f32.mrb[0].mxu0
        %v1781 = vadd.f32 0.0, %v1780
        %v1782 = vpop.f32.mrb[0].mxu0
        %v1783 = vadd.f32 0.0, %v1782
        %1784 = vmatprep.mubr.bf16.mxu0 %v1134
        %1785 = vmatmul.mubr.bf16.gmra.mrb[0].mxu0 %v1133
        %v1786 = vpop.f32.mrb[0].mxu0
        %v1787 = vadd.f32 0.0, %v1786
        %v1788 = vpop.f32.mrb[0].mxu0
        %v1789 = vadd.f32 0.0, %v1788
        %v1790 = vpop.f32.mrb[0].mxu0
        %v1791 = vadd.f32 0.0, %v1790
        %v1792 = vpop.f32.mrb[0].mxu0
        %v1793 = vadd.f32 0.0, %v1792
        %1794 = vmatprep.mubr.bf16.mxu0 %v1137
        %1795 = vmatmul.mubr.bf16.gmra.mrb[0].mxu0 %v1136
        %v1796 = vpop.f32.mrb[0].mxu0
        %v1797 = vadd.f32 0.0, %v1796
        %v1798 = vpop.f32.mrb[0].mxu0
        %v1799 = vadd.f32 0.0, %v1798
        %v1800 = vpop.f32.mrb[0].mxu0
        %v1801 = vadd.f32 0.0, %v1800
        %v1802 = vpop.f32.mrb[0].mxu0
        %v1803 = vadd.f32 0.0, %v1802
        %1804 = vmatprep.mubr.bf16.mxu0 %v1140
        %1805 = vmatmul.mubr.bf16.gmra.mrb[0].mxu0 %v1139
        %v1806 = vpop.f32.mrb[0].mxu0
        %v1807 = vadd.f32 0.0, %v1806
        %v1808 = vpop.f32.mrb[0].mxu0
        %v1809 = vadd.f32 0.0, %v1808
        %v1810 = vpop.f32.mrb[0].mxu0
        %v1811 = vadd.f32 0.0, %v1810
        %v1812 = vpop.f32.mrb[0].mxu0
        %v1813 = vadd.f32 0.0, %v1812
        %1814 = vdwg.mxu0
        %1815 = vmatprep.subr.bf16.mxu0 %v1527
        %1816 = vmatpush1.bf16.msra.mxu0 %v1526
        %1817 = vmatprep.subr.bf16.mxu0 %v1530
        %1818 = vmatpush1.bf16.msra.mxu0 %v1529
        %1819 = vmatprep.subr.bf16.mxu0 %v1533
        %1820 = vmatpush1.bf16.msra.mxu0 %v1532
        %1821 = vmatprep.subr.bf16.mxu0 %v1536
        %1822 = vmatpush1.bf16.msra.mxu0 %v1535
        %1823 = vmatprep.subr.bf16.mxu0 %v1539
        %1824 = vmatpush1.bf16.msra.mxu0 %v1538
        %1825 = vmatprep.subr.bf16.mxu0 %v1542
        %1826 = vmatpush1.bf16.msra.mxu0 %v1541
        %1827 = vmatprep.subr.bf16.mxu0 %v1545
        %1828 = vmatpush1.bf16.msra.mxu0 %v1544
        %1829 = vmatprep.subr.bf16.mxu0 %v1548
        %1830 = vmatpush1.bf16.msra.mxu0 %v1547
        %1831 = vmatprep.subr.bf16.mxu0 0
        %1832 = vmatpush1.bf16.msra.mxu0 0
        %1833 = vmatprep.subr.bf16.mxu0 0
        %1834 = vmatpush1.bf16.msra.mxu0 0
        %1835 = vmatprep.subr.bf16.mxu0 0
        %1836 = vmatpush1.bf16.msra.mxu0 0
        %1837 = vmatprep.subr.bf16.mxu0 0
        %1838 = vmatpush1.bf16.msra.mxu0 0
        %1839 = vmatprep.subr.bf16.mxu0 0
        %1840 = vmatpush1.bf16.msra.mxu0 0
        %1841 = vmatprep.subr.bf16.mxu0 0
        %1842 = vmatpush1.bf16.msra.mxu0 0
        %1843 = vmatprep.subr.bf16.mxu0 0
        %1844 = vmatpush1.bf16.msra.mxu0 0
        %1845 = vmatprep.subr.bf16.mxu0 0
        %1846 = vmatpush1.bf16.msra.mxu0 0
        %1847 = vmatprep.mubr.bf16.mxu0 0
        %1848 = vmatmul.mubr.bf16.gmra.mrb[0].mxu0 %v1096
        %v1849 = vpop.f32.mrb[0].mxu0
        %v1850 = vadd.f32 %v1657, %v1849
        %v1851 = vpop.f32.mrb[0].mxu0
        %v1852 = vadd.f32 %v1659, %v1851
        %v1853 = vpop.f32.mrb[0].mxu0
        %v1854 = vadd.f32 %v1661, %v1853
        %v1855 = vpop.f32.mrb[0].mxu0
        %v1856 = vadd.f32 %v1663, %v1855
        %1857 = vmatprep.mubr.bf16.mxu0 0
        %1858 = vmatmul.mubr.bf16.gmra.mrb[0].mxu0 %v1099
        %v1859 = vpop.f32.mrb[0].mxu0
        %v1860 = vadd.f32 %v1667, %v1859
        %v1861 = vpop.f32.mrb[0].mxu0
        %v1862 = vadd.f32 %v1669, %v1861
        %v1863 = vpop.f32.mrb[0].mxu0
        %v1864 = vadd.f32 %v1671, %v1863
        %v1865 = vpop.f32.mrb[0].mxu0
        %v1866 = vadd.f32 %v1673, %v1865
        %1867 = vmatprep.mubr.bf16.mxu0 0
        %1868 = vmatmul.mubr.bf16.gmra.mrb[0].mxu0 %v1102
        %v1869 = vpop.f32.mrb[0].mxu0
        %v1870 = vadd.f32 %v1677, %v1869
        %v1871 = vpop.f32.mrb[0].mxu0
        %v1872 = vadd.f32 %v1679, %v1871
        %v1873 = vpop.f32.mrb[0].mxu0
        %v1874 = vadd.f32 %v1681, %v1873
        %v1875 = vpop.f32.mrb[0].mxu0
        %v1876 = vadd.f32 %v1683, %v1875
        %1877 = vmatprep.mubr.bf16.mxu0 0
        %1878 = vmatmul.mubr.bf16.gmra.mrb[0].mxu0 %v1105
        %v1879 = vpop.f32.mrb[0].mxu0
        %v1880 = vadd.f32 %v1687, %v1879
        %v1881 = vpop.f32.mrb[0].mxu0
        %v1882 = vadd.f32 %v1689, %v1881
        %v1883 = vpop.f32.mrb[0].mxu0
        %v1884 = vadd.f32 %v1691, %v1883
        %v1885 = vpop.f32.mrb[0].mxu0
        %v1886 = vadd.f32 %v1693, %v1885
        %1887 = vmatprep.mubr.bf16.mxu0 0
        %1888 = vmatmul.mubr.bf16.gmra.mrb[0].mxu0 %v1108
        %v1889 = vpop.f32.mrb[0].mxu0
        %v1890 = vadd.f32 %v1697, %v1889
        %v1891 = vpop.f32.mrb[0].mxu0
        %v1892 = vadd.f32 %v1699, %v1891
        %v1893 = vpop.f32.mrb[0].mxu0
        %v1894 = vadd.f32 %v1701, %v1893
        %v1895 = vpop.f32.mrb[0].mxu0
        %v1896 = vadd.f32 %v1703, %v1895
        %1897 = vmatprep.mubr.bf16.mxu0 0
        %1898 = vmatmul.mubr.bf16.gmra.mrb[0].mxu0 %v1111
        %v1899 = vpop.f32.mrb[0].mxu0
        %v1900 = vadd.f32 %v1707, %v1899
        %v1901 = vpop.f32.mrb[0].mxu0
        %v1902 = vadd.f32 %v1709, %v1901
        %v1903 = vpop.f32.mrb[0].mxu0
        %v1904 = vadd.f32 %v1711, %v1903
        %v1905 = vpop.f32.mrb[0].mxu0
        %v1906 = vadd.f32 %v1713, %v1905
        %1907 = vmatprep.mubr.bf16.mxu0 0
        %1908 = vmatmul.mubr.bf16.gmra.mrb[0].mxu0 %v1114
        %v1909 = vpop.f32.mrb[0].mxu0
        %v1910 = vadd.f32 %v1717, %v1909
        %v1911 = vpop.f32.mrb[0].mxu0
        %v1912 = vadd.f32 %v1719, %v1911
        %v1913 = vpop.f32.mrb[0].mxu0
        %v1914 = vadd.f32 %v1721, %v1913
        %v1915 = vpop.f32.mrb[0].mxu0
        %v1916 = vadd.f32 %v1723, %v1915
        %1917 = vmatprep.mubr.bf16.mxu0 0
        %1918 = vmatmul.mubr.bf16.gmra.mrb[0].mxu0 %v1117
        %v1919 = vpop.f32.mrb[0].mxu0
        %v1920 = vadd.f32 %v1727, %v1919
        %v1921 = vpop.f32.mrb[0].mxu0
        %v1922 = vadd.f32 %v1729, %v1921
        %v1923 = vpop.f32.mrb[0].mxu0
        %v1924 = vadd.f32 %v1731, %v1923
        %v1925 = vpop.f32.mrb[0].mxu0
        %v1926 = vadd.f32 %v1733, %v1925
        %1927 = vmatprep.mubr.bf16.mxu0 0
        %1928 = vmatmul.mubr.bf16.gmra.mrb[0].mxu0 %v1120
        %v1929 = vpop.f32.mrb[0].mxu0
        %v1930 = vadd.f32 %v1737, %v1929
        %v1931 = vpop.f32.mrb[0].mxu0
        %v1932 = vadd.f32 %v1739, %v1931
        %v1933 = vpop.f32.mrb[0].mxu0
        %v1934 = vadd.f32 %v1741, %v1933
        %v1935 = vpop.f32.mrb[0].mxu0
        %v1936 = vadd.f32 %v1743, %v1935
        %1937 = vmatprep.mubr.bf16.mxu0 0
        %1938 = vmatmul.mubr.bf16.gmra.mrb[0].mxu0 %v1123
        %v1939 = vpop.f32.mrb[0].mxu0
        %v1940 = vadd.f32 %v1747, %v1939
        %v1941 = vpop.f32.mrb[0].mxu0
        %v1942 = vadd.f32 %v1749, %v1941
        %v1943 = vpop.f32.mrb[0].mxu0
        %v1944 = vadd.f32 %v1751, %v1943
        %v1945 = vpop.f32.mrb[0].mxu0
        %v1946 = vadd.f32 %v1753, %v1945
        %1947 = vmatprep.mubr.bf16.mxu0 0
        %1948 = vmatmul.mubr.bf16.gmra.mrb[0].mxu0 %v1126
        %v1949 = vpop.f32.mrb[0].mxu0
        %v1950 = vadd.f32 %v1757, %v1949
        %v1951 = vpop.f32.mrb[0].mxu0
        %v1952 = vadd.f32 %v1759, %v1951
        %v1953 = vpop.f32.mrb[0].mxu0
        %v1954 = vadd.f32 %v1761, %v1953
        %v1955 = vpop.f32.mrb[0].mxu0
        %v1956 = vadd.f32 %v1763, %v1955
        %1957 = vmatprep.mubr.bf16.mxu0 0
        %1958 = vmatmul.mubr.bf16.gmra.mrb[0].mxu0 %v1129
        %v1959 = vpop.f32.mrb[0].mxu0
        %v1960 = vadd.f32 %v1767, %v1959
        %v1961 = vpop.f32.mrb[0].mxu0
        %v1962 = vadd.f32 %v1769, %v1961
        %v1963 = vpop.f32.mrb[0].mxu0
        %v1964 = vadd.f32 %v1771, %v1963
        %v1965 = vpop.f32.mrb[0].mxu0
        %v1966 = vadd.f32 %v1773, %v1965
        %1967 = vmatprep.mubr.bf16.mxu0 0
        %1968 = vmatmul.mubr.bf16.gmra.mrb[0].mxu0 %v1132
        %v1969 = vpop.f32.mrb[0].mxu0
        %v1970 = vadd.f32 %v1777, %v1969
        %v1971 = vpop.f32.mrb[0].mxu0
        %v1972 = vadd.f32 %v1779, %v1971
        %v1973 = vpop.f32.mrb[0].mxu0
        %v1974 = vadd.f32 %v1781, %v1973
        %v1975 = vpop.f32.mrb[0].mxu0
        %v1976 = vadd.f32 %v1783, %v1975
        %1977 = vmatprep.mubr.bf16.mxu0 0
        %1978 = vmatmul.mubr.bf16.gmra.mrb[0].mxu0 %v1135
        %v1979 = vpop.f32.mrb[0].mxu0
        %v1980 = vadd.f32 %v1787, %v1979
        %v1981 = vpop.f32.mrb[0].mxu0
        %v1982 = vadd.f32 %v1789, %v1981
        %v1983 = vpop.f32.mrb[0].mxu0
        %v1984 = vadd.f32 %v1791, %v1983
        %v1985 = vpop.f32.mrb[0].mxu0
        %v1986 = vadd.f32 %v1793, %v1985
        %1987 = vmatprep.mubr.bf16.mxu0 0
        %1988 = vmatmul.mubr.bf16.gmra.mrb[0].mxu0 %v1138
        %v1989 = vpop.f32.mrb[0].mxu0
        %v1990 = vadd.f32 %v1797, %v1989
        %v1991 = vpop.f32.mrb[0].mxu0
        %v1992 = vadd.f32 %v1799, %v1991
        %v1993 = vpop.f32.mrb[0].mxu0
        %v1994 = vadd.f32 %v1801, %v1993
        %v1995 = vpop.f32.mrb[0].mxu0
        %v1996 = vadd.f32 %v1803, %v1995
        %1997 = vmatprep.mubr.bf16.mxu0 0
        %1998 = vmatmul.mubr.bf16.gmra.mrb[0].mxu0 %v1141
        %v1999 = vpop.f32.mrb[0].mxu0
        %v2000 = vadd.f32 %v1807, %v1999
        %v2001 = vpop.f32.mrb[0].mxu0
        %v2002 = vadd.f32 %v1809, %v2001
        %v2003 = vpop.f32.mrb[0].mxu0
        %v2004 = vadd.f32 %v1811, %v2003
        %v2005 = vpop.f32.mrb[0].mxu0
        %v2006 = vadd.f32 %v1813, %v2005
        %2007 = vdwg.mxu0
        %2008 = vmatprep.subr.bf16.mxu0 0
        %2009 = vmatpush1.bf16.msra.mxu0 %v1480
        %2010 = vmatprep.subr.bf16.mxu0 0
        %2011 = vmatpush1.bf16.msra.mxu0 %v1483
        %2012 = vmatprep.subr.bf16.mxu0 0
        %2013 = vmatpush1.bf16.msra.mxu0 %v1486
        %2014 = vmatprep.subr.bf16.mxu0 0
        %2015 = vmatpush1.bf16.msra.mxu0 %v1489
        %2016 = vmatprep.subr.bf16.mxu0 0
        %2017 = vmatpush1.bf16.msra.mxu0 %v1492
        %2018 = vmatprep.subr.bf16.mxu0 0
        %2019 = vmatpush1.bf16.msra.mxu0 %v1495
        %2020 = vmatprep.subr.bf16.mxu0 0
        %2021 = vmatpush1.bf16.msra.mxu0 %v1498
        %2022 = vmatprep.subr.bf16.mxu0 0
        %2023 = vmatpush1.bf16.msra.mxu0 %v1501
        %2024 = vmatprep.subr.bf16.mxu0 0
        %2025 = vmatpush1.bf16.msra.mxu0 %v1504
        %2026 = vmatprep.subr.bf16.mxu0 0
        %2027 = vmatpush1.bf16.msra.mxu0 %v1507
        %2028 = vmatprep.subr.bf16.mxu0 0
        %2029 = vmatpush1.bf16.msra.mxu0 %v1510
        %2030 = vmatprep.subr.bf16.mxu0 0
        %2031 = vmatpush1.bf16.msra.mxu0 %v1513
        %2032 = vmatprep.subr.bf16.mxu0 0
        %2033 = vmatpush1.bf16.msra.mxu0 %v1516
        %2034 = vmatprep.subr.bf16.mxu0 0
        %2035 = vmatpush1.bf16.msra.mxu0 %v1519
        %2036 = vmatprep.subr.bf16.mxu0 0
        %2037 = vmatpush1.bf16.msra.mxu0 %v1522
        %2038 = vmatprep.subr.bf16.mxu0 0
        %2039 = vmatpush1.bf16.msra.mxu0 %v1525
        %2040 = vmatprep.mubr.bf16.mxu0 %v1095
        %2041 = vmatmul.mubr.bf16.gmra.mrb[0].mxu0 %v1094
        %v2042 = vpop.f32.mrb[0].mxu0
        %v2043 = vadd.f32 0.0, %v2042
        %v2044 = vpop.f32.mrb[0].mxu0
        %v2045 = vpop.f32.mrb[0].mxu0
        %v2046 = vadd.f32 0.0, %v2045
        %v2047 = vpop.f32.mrb[0].mxu0
        %2048 = vmatprep.mubr.bf16.mxu0 %v1098
        %2049 = vmatmul.mubr.bf16.gmra.mrb[0].mxu0 %v1097
        %v2050 = vpop.f32.mrb[0].mxu0
        %v2051 = vadd.f32 0.0, %v2050
        %v2052 = vpop.f32.mrb[0].mxu0
        %v2053 = vpop.f32.mrb[0].mxu0
        %v2054 = vadd.f32 0.0, %v2053
        %v2055 = vpop.f32.mrb[0].mxu0
        %2056 = vmatprep.mubr.bf16.mxu0 %v1101
        %2057 = vmatmul.mubr.bf16.gmra.mrb[0].mxu0 %v1100
        %v2058 = vpop.f32.mrb[0].mxu0
        %v2059 = vadd.f32 0.0, %v2058
        %v2060 = vpop.f32.mrb[0].mxu0
        %v2061 = vpop.f32.mrb[0].mxu0
        %v2062 = vadd.f32 0.0, %v2061
        %v2063 = vpop.f32.mrb[0].mxu0
        %2064 = vmatprep.mubr.bf16.mxu0 %v1104
        %2065 = vmatmul.mubr.bf16.gmra.mrb[0].mxu0 %v1103
        %v2066 = vpop.f32.mrb[0].mxu0
        %v2067 = vadd.f32 0.0, %v2066
        %v2068 = vpop.f32.mrb[0].mxu0
        %v2069 = vpop.f32.mrb[0].mxu0
        %v2070 = vadd.f32 0.0, %v2069
        %v2071 = vpop.f32.mrb[0].mxu0
        %2072 = vmatprep.mubr.bf16.mxu0 %v1107
        %2073 = vmatmul.mubr.bf16.gmra.mrb[0].mxu0 %v1106
        %v2074 = vpop.f32.mrb[0].mxu0
        %v2075 = vadd.f32 0.0, %v2074
        %v2076 = vpop.f32.mrb[0].mxu0
        %v2077 = vpop.f32.mrb[0].mxu0
        %v2078 = vadd.f32 0.0, %v2077
        %v2079 = vpop.f32.mrb[0].mxu0
        %2080 = vmatprep.mubr.bf16.mxu0 %v1110
        %2081 = vmatmul.mubr.bf16.gmra.mrb[0].mxu0 %v1109
        %v2082 = vpop.f32.mrb[0].mxu0
        %v2083 = vadd.f32 0.0, %v2082
        %v2084 = vpop.f32.mrb[0].mxu0
        %v2085 = vpop.f32.mrb[0].mxu0
        %v2086 = vadd.f32 0.0, %v2085
        %v2087 = vpop.f32.mrb[0].mxu0
        %2088 = vmatprep.mubr.bf16.mxu0 %v1113
        %2089 = vmatmul.mubr.bf16.gmra.mrb[0].mxu0 %v1112
        %v2090 = vpop.f32.mrb[0].mxu0
        %v2091 = vadd.f32 0.0, %v2090
        %v2092 = vpop.f32.mrb[0].mxu0
        %v2093 = vpop.f32.mrb[0].mxu0
        %v2094 = vadd.f32 0.0, %v2093
        %v2095 = vpop.f32.mrb[0].mxu0
        %2096 = vmatprep.mubr.bf16.mxu0 %v1116
        %2097 = vmatmul.mubr.bf16.gmra.mrb[0].mxu0 %v1115
        %v2098 = vpop.f32.mrb[0].mxu0
        %v2099 = vadd.f32 0.0, %v2098
        %v2100 = vpop.f32.mrb[0].mxu0
        %v2101 = vpop.f32.mrb[0].mxu0
        %v2102 = vadd.f32 0.0, %v2101
        %v2103 = vpop.f32.mrb[0].mxu0
        %2104 = vmatprep.mubr.bf16.mxu0 %v1119
        %2105 = vmatmul.mubr.bf16.gmra.mrb[0].mxu0 %v1118
        %v2106 = vpop.f32.mrb[0].mxu0
        %v2107 = vadd.f32 0.0, %v2106
        %v2108 = vpop.f32.mrb[0].mxu0
        %v2109 = vpop.f32.mrb[0].mxu0
        %v2110 = vadd.f32 0.0, %v2109
        %v2111 = vpop.f32.mrb[0].mxu0
        %2112 = vmatprep.mubr.bf16.mxu0 %v1122
        %2113 = vmatmul.mubr.bf16.gmra.mrb[0].mxu0 %v1121
        %v2114 = vpop.f32.mrb[0].mxu0
        %v2115 = vadd.f32 0.0, %v2114
        %v2116 = vpop.f32.mrb[0].mxu0
        %v2117 = vpop.f32.mrb[0].mxu0
        %v2118 = vadd.f32 0.0, %v2117
        %v2119 = vpop.f32.mrb[0].mxu0
        %2120 = vmatprep.mubr.bf16.mxu0 %v1125
        %2121 = vmatmul.mubr.bf16.gmra.mrb[0].mxu0 %v1124
        %v2122 = vpop.f32.mrb[0].mxu0
        %v2123 = vadd.f32 0.0, %v2122
        %v2124 = vpop.f32.mrb[0].mxu0
        %v2125 = vpop.f32.mrb[0].mxu0
        %v2126 = vadd.f32 0.0, %v2125
        %v2127 = vpop.f32.mrb[0].mxu0
        %2128 = vmatprep.mubr.bf16.mxu0 %v1128
        %2129 = vmatmul.mubr.bf16.gmra.mrb[0].mxu0 %v1127
        %v2130 = vpop.f32.mrb[0].mxu0
        %v2131 = vadd.f32 0.0, %v2130
        %v2132 = vpop.f32.mrb[0].mxu0
        %v2133 = vpop.f32.mrb[0].mxu0
        %v2134 = vadd.f32 0.0, %v2133
        %v2135 = vpop.f32.mrb[0].mxu0
        %2136 = vmatprep.mubr.bf16.mxu0 %v1131
        %2137 = vmatmul.mubr.bf16.gmra.mrb[0].mxu0 %v1130
        %v2138 = vpop.f32.mrb[0].mxu0
        %v2139 = vadd.f32 0.0, %v2138
        %v2140 = vpop.f32.mrb[0].mxu0
        %v2141 = vpop.f32.mrb[0].mxu0
        %v2142 = vadd.f32 0.0, %v2141
        %v2143 = vpop.f32.mrb[0].mxu0
        %2144 = vmatprep.mubr.bf16.mxu0 %v1134
        %2145 = vmatmul.mubr.bf16.gmra.mrb[0].mxu0 %v1133
        %v2146 = vpop.f32.mrb[0].mxu0
        %v2147 = vadd.f32 0.0, %v2146
        %v2148 = vpop.f32.mrb[0].mxu0
        %v2149 = vpop.f32.mrb[0].mxu0
        %v2150 = vadd.f32 0.0, %v2149
        %v2151 = vpop.f32.mrb[0].mxu0
        %2152 = vmatprep.mubr.bf16.mxu0 %v1137
        %2153 = vmatmul.mubr.bf16.gmra.mrb[0].mxu0 %v1136
        %v2154 = vpop.f32.mrb[0].mxu0
        %v2155 = vadd.f32 0.0, %v2154
        %v2156 = vpop.f32.mrb[0].mxu0
        %v2157 = vpop.f32.mrb[0].mxu0
        %v2158 = vadd.f32 0.0, %v2157
        %v2159 = vpop.f32.mrb[0].mxu0
        %2160 = vmatprep.mubr.bf16.mxu0 %v1140
        %2161 = vmatmul.mubr.bf16.gmra.mrb[0].mxu0 %v1139
        %v2162 = vpop.f32.mrb[0].mxu0
        %v2163 = vadd.f32 0.0, %v2162
        %v2164 = vpop.f32.mrb[0].mxu0
        %v2165 = vpop.f32.mrb[0].mxu0
        %v2166 = vadd.f32 0.0, %v2165
        %v2167 = vpop.f32.mrb[0].mxu0
        %2168 = vdwg.mxu0
        %2169 = vmatprep.subr.bf16.mxu0 0
        %2170 = vmatpush1.bf16.msra.mxu0 %v1528
        %2171 = vmatprep.subr.bf16.mxu0 0
        %2172 = vmatpush1.bf16.msra.mxu0 %v1531
        %2173 = vmatprep.subr.bf16.mxu0 0
        %2174 = vmatpush1.bf16.msra.mxu0 %v1534
        %2175 = vmatprep.subr.bf16.mxu0 0
        %2176 = vmatpush1.bf16.msra.mxu0 %v1537
        %2177 = vmatprep.subr.bf16.mxu0 0
        %2178 = vmatpush1.bf16.msra.mxu0 %v1540
        %2179 = vmatprep.subr.bf16.mxu0 0
        %2180 = vmatpush1.bf16.msra.mxu0 %v1543
        %2181 = vmatprep.subr.bf16.mxu0 0
        %2182 = vmatpush1.bf16.msra.mxu0 %v1546
        %2183 = vmatprep.subr.bf16.mxu0 0
        %2184 = vmatpush1.bf16.msra.mxu0 %v1549
        %2185 = vmatprep.subr.bf16.mxu0 0
        %2186 = vmatpush1.bf16.msra.mxu0 0
        %2187 = vmatprep.subr.bf16.mxu0 0
        %2188 = vmatpush1.bf16.msra.mxu0 0
        %2189 = vmatprep.subr.bf16.mxu0 0
        %2190 = vmatpush1.bf16.msra.mxu0 0
        %2191 = vmatprep.subr.bf16.mxu0 0
        %2192 = vmatpush1.bf16.msra.mxu0 0
        %2193 = vmatprep.subr.bf16.mxu0 0
        %2194 = vmatpush1.bf16.msra.mxu0 0
        %2195 = vmatprep.subr.bf16.mxu0 0
        %2196 = vmatpush1.bf16.msra.mxu0 0
        %2197 = vmatprep.subr.bf16.mxu0 0
        %2198 = vmatpush1.bf16.msra.mxu0 0
        %2199 = vmatprep.subr.bf16.mxu0 0
        %2200 = vmatpush1.bf16.msra.mxu0 0
        %2201 = vmatprep.mubr.bf16.mxu0 0
        %2202 = vmatmul.mubr.bf16.gmra.mrb[0].mxu0 %v1096
        %v2203 = vpop.f32.mrb[0].mxu0
        %v2204 = vadd.f32 %v2043, %v2203
        %v2205 = vpop.f32.mrb[0].mxu0
        %v2206 = vpop.f32.mrb[0].mxu0
        %v2207 = vadd.f32 %v2046, %v2206
        %v2208 = vpop.f32.mrb[0].mxu0
        %2209 = vmatprep.mubr.bf16.mxu0 0
        %2210 = vmatmul.mubr.bf16.gmra.mrb[0].mxu0 %v1099
        %v2211 = vpop.f32.mrb[0].mxu0
        %v2212 = vadd.f32 %v2051, %v2211
        %v2213 = vpop.f32.mrb[0].mxu0
        %v2214 = vpop.f32.mrb[0].mxu0
        %v2215 = vadd.f32 %v2054, %v2214
        %v2216 = vpop.f32.mrb[0].mxu0
        %2217 = vmatprep.mubr.bf16.mxu0 0
        %2218 = vmatmul.mubr.bf16.gmra.mrb[0].mxu0 %v1102
        %v2219 = vpop.f32.mrb[0].mxu0
        %v2220 = vadd.f32 %v2059, %v2219
        %v2221 = vpop.f32.mrb[0].mxu0
        %v2222 = vpop.f32.mrb[0].mxu0
        %v2223 = vadd.f32 %v2062, %v2222
        %v2224 = vpop.f32.mrb[0].mxu0
        %2225 = vmatprep.mubr.bf16.mxu0 0
        %2226 = vmatmul.mubr.bf16.gmra.mrb[0].mxu0 %v1105
        %v2227 = vpop.f32.mrb[0].mxu0
        %v2228 = vadd.f32 %v2067, %v2227
        %v2229 = vpop.f32.mrb[0].mxu0
        %v2230 = vpop.f32.mrb[0].mxu0
        %v2231 = vadd.f32 %v2070, %v2230
        %v2232 = vpop.f32.mrb[0].mxu0
        %2233 = vmatprep.mubr.bf16.mxu0 0
        %2234 = vmatmul.mubr.bf16.gmra.mrb[0].mxu0 %v1108
        %v2235 = vpop.f32.mrb[0].mxu0
        %v2236 = vadd.f32 %v2075, %v2235
        %v2237 = vpop.f32.mrb[0].mxu0
        %v2238 = vpop.f32.mrb[0].mxu0
        %v2239 = vadd.f32 %v2078, %v2238
        %v2240 = vpop.f32.mrb[0].mxu0
        %2241 = vmatprep.mubr.bf16.mxu0 0
        %2242 = vmatmul.mubr.bf16.gmra.mrb[0].mxu0 %v1111
        %v2243 = vpop.f32.mrb[0].mxu0
        %v2244 = vadd.f32 %v2083, %v2243
        %v2245 = vpop.f32.mrb[0].mxu0
        %v2246 = vpop.f32.mrb[0].mxu0
        %v2247 = vadd.f32 %v2086, %v2246
        %v2248 = vpop.f32.mrb[0].mxu0
        %2249 = vmatprep.mubr.bf16.mxu0 0
        %2250 = vmatmul.mubr.bf16.gmra.mrb[0].mxu0 %v1114
        %v2251 = vpop.f32.mrb[0].mxu0
        %v2252 = vadd.f32 %v2091, %v2251
        %v2253 = vpop.f32.mrb[0].mxu0
        %v2254 = vpop.f32.mrb[0].mxu0
        %v2255 = vadd.f32 %v2094, %v2254
        %v2256 = vpop.f32.mrb[0].mxu0
        %2257 = vmatprep.mubr.bf16.mxu0 0
        %2258 = vmatmul.mubr.bf16.gmra.mrb[0].mxu0 %v1117
        %v2259 = vpop.f32.mrb[0].mxu0
        %v2260 = vadd.f32 %v2099, %v2259
        %v2261 = vpop.f32.mrb[0].mxu0
        %v2262 = vpop.f32.mrb[0].mxu0
        %v2263 = vadd.f32 %v2102, %v2262
        %v2264 = vpop.f32.mrb[0].mxu0
        %2265 = vmatprep.mubr.bf16.mxu0 0
        %2266 = vmatmul.mubr.bf16.gmra.mrb[0].mxu0 %v1120
        %v2267 = vpop.f32.mrb[0].mxu0
        %v2268 = vadd.f32 %v2107, %v2267
        %v2269 = vpop.f32.mrb[0].mxu0
        %v2270 = vpop.f32.mrb[0].mxu0
        %v2271 = vadd.f32 %v2110, %v2270
        %v2272 = vpop.f32.mrb[0].mxu0
        %2273 = vmatprep.mubr.bf16.mxu0 0
        %2274 = vmatmul.mubr.bf16.gmra.mrb[0].mxu0 %v1123
        %v2275 = vpop.f32.mrb[0].mxu0
        %v2276 = vadd.f32 %v2115, %v2275
        %v2277 = vpop.f32.mrb[0].mxu0
        %v2278 = vpop.f32.mrb[0].mxu0
        %v2279 = vadd.f32 %v2118, %v2278
        %v2280 = vpop.f32.mrb[0].mxu0
        %2281 = vmatprep.mubr.bf16.mxu0 0
        %2282 = vmatmul.mubr.bf16.gmra.mrb[0].mxu0 %v1126
        %v2283 = vpop.f32.mrb[0].mxu0
        %v2284 = vadd.f32 %v2123, %v2283
        %v2285 = vpop.f32.mrb[0].mxu0
        %v2286 = vpop.f32.mrb[0].mxu0
        %v2287 = vadd.f32 %v2126, %v2286
        %v2288 = vpop.f32.mrb[0].mxu0
        %2289 = vmatprep.mubr.bf16.mxu0 0
        %2290 = vmatmul.mubr.bf16.gmra.mrb[0].mxu0 %v1129
        %v2291 = vpop.f32.mrb[0].mxu0
        %v2292 = vadd.f32 %v2131, %v2291
        %v2293 = vpop.f32.mrb[0].mxu0
        %v2294 = vpop.f32.mrb[0].mxu0
        %v2295 = vadd.f32 %v2134, %v2294
        %v2296 = vpop.f32.mrb[0].mxu0
        %2297 = vmatprep.mubr.bf16.mxu0 0
        %2298 = vmatmul.mubr.bf16.gmra.mrb[0].mxu0 %v1132
        %v2299 = vpop.f32.mrb[0].mxu0
        %v2300 = vadd.f32 %v2139, %v2299
        %v2301 = vpop.f32.mrb[0].mxu0
        %v2302 = vpop.f32.mrb[0].mxu0
        %v2303 = vadd.f32 %v2142, %v2302
        %v2304 = vpop.f32.mrb[0].mxu0
        %2305 = vmatprep.mubr.bf16.mxu0 0
        %2306 = vmatmul.mubr.bf16.gmra.mrb[0].mxu0 %v1135
        %v2307 = vpop.f32.mrb[0].mxu0
        %v2308 = vadd.f32 %v2147, %v2307
        %v2309 = vpop.f32.mrb[0].mxu0
        %v2310 = vpop.f32.mrb[0].mxu0
        %v2311 = vadd.f32 %v2150, %v2310
        %v2312 = vpop.f32.mrb[0].mxu0
        %2313 = vmatprep.mubr.bf16.mxu0 0
        %2314 = vmatmul.mubr.bf16.gmra.mrb[0].mxu0 %v1138
        %v2315 = vpop.f32.mrb[0].mxu0
        %v2316 = vadd.f32 %v2155, %v2315
        %v2317 = vpop.f32.mrb[0].mxu0
        %v2318 = vpop.f32.mrb[0].mxu0
        %v2319 = vadd.f32 %v2158, %v2318
        %v2320 = vpop.f32.mrb[0].mxu0
        %2321 = vmatprep.mubr.bf16.mxu0 0
        %2322 = vmatmul.mubr.bf16.gmra.mrb[0].mxu0 %v1141
        %v2323 = vpop.f32.mrb[0].mxu0
        %v2324 = vadd.f32 %v2163, %v2323
        %v2325 = vpop.f32.mrb[0].mxu0
        %v2326 = vpop.f32.mrb[0].mxu0
        %v2327 = vadd.f32 %v2166, %v2326
        %v2328 = vpop.f32.mrb[0].mxu0
        %2329 = vdwg.mxu0
        %v2330 = vrot.slane %v1850, 7
        %v2331 = vrot.slane %v1854, 7
        %v2332 = vrot.slane %v1860, 7
        %v2333 = vrot.slane %v1864, 7
        %v2334 = vrot.slane %v1870, 7
        %v2335 = vrot.slane %v1874, 7
        %v2336 = vrot.slane %v1880, 7
        %v2337 = vrot.slane %v1884, 7
        %v2338 = vrot.slane %v1890, 7
        %v2339 = vrot.slane %v1894, 7
        %v2340 = vrot.slane %v1900, 7
        %v2341 = vrot.slane %v1904, 7
        %v2342 = vrot.slane %v1910, 7
        %v2343 = vrot.slane %v1914, 7
        %v2344 = vrot.slane %v1920, 7
        %v2345 = vrot.slane %v1924, 7
        %v2346 = vrot.slane %v1930, 7
        %v2347 = vrot.slane %v1934, 7
        %v2348 = vrot.slane %v1940, 7
        %v2349 = vrot.slane %v1944, 7
        %v2350 = vrot.slane %v1950, 7
        %v2351 = vrot.slane %v1954, 7
        %v2352 = vrot.slane %v1960, 7
        %v2353 = vrot.slane %v1964, 7
        %v2354 = vrot.slane %v1970, 7
        %v2355 = vrot.slane %v1974, 7
        %v2356 = vrot.slane %v1980, 7
        %v2357 = vrot.slane %v1984, 7
        %v2358 = vrot.slane %v1990, 7
        %v2359 = vrot.slane %v1994, 7
        %v2360 = vrot.slane %v2000, 7
        %v2361 = vrot.slane %v2004, 7
        %vm2362 = vcmp.lt.s32.totalorder %v402, 1
        %v2363 = vsel %vm2362, %v2360, %v2361
        %v2364 = vsel %vm2362, %v2359, %v2360
        %v2365 = vsel %vm2362, %v2358, %v2359
        %v2366 = vsel %vm2362, %v2357, %v2358
        %v2367 = vsel %vm2362, %v2356, %v2357
        %v2368 = vsel %vm2362, %v2355, %v2356
        %v2369 = vsel %vm2362, %v2354, %v2355
        %v2370 = vsel %vm2362, %v2353, %v2354
        %v2371 = vsel %vm2362, %v2352, %v2353
        %v2372 = vsel %vm2362, %v2351, %v2352
        %v2373 = vsel %vm2362, %v2350, %v2351
        %v2374 = vsel %vm2362, %v2349, %v2350
        %v2375 = vsel %vm2362, %v2348, %v2349
        %v2376 = vsel %vm2362, %v2347, %v2348
        %v2377 = vsel %vm2362, %v2346, %v2347
        %v2378 = vsel %vm2362, %v2345, %v2346
        %v2379 = vsel %vm2362, %v2344, %v2345
        %v2380 = vsel %vm2362, %v2343, %v2344
        %v2381 = vsel %vm2362, %v2342, %v2343
        %v2382 = vsel %vm2362, %v2341, %v2342
        %v2383 = vsel %vm2362, %v2340, %v2341
        %v2384 = vsel %vm2362, %v2339, %v2340
        %v2385 = vsel %vm2362, %v2338, %v2339
        %v2386 = vsel %vm2362, %v2337, %v2338
        %v2387 = vsel %vm2362, %v2336, %v2337
        %v2388 = vsel %vm2362, %v2335, %v2336
        %v2389 = vsel %vm2362, %v2334, %v2335
        %v2390 = vsel %vm2362, %v2333, %v2334
        %v2391 = vsel %vm2362, %v2332, %v2333
        %v2392 = vsel %vm2362, %v2331, %v2332
        %v2393 = vsel %vm2362, %v2330, %v2331
        %v2394 = vsel %vm2362, %v2361, %v2330
        %v2395 = vsel %vm818, 1, 0
        %v2396 = vsel %vm819, 1, 0
        %v2397 = vsel %vm820, 1, 0
        %v2398 = vsel %vm821, 1, 0
        %v2399 = vsel %vm822, 1, 0
        %v2400 = vsel %vm823, 1, 0
        %v2401 = vsel %vm824, 1, 0
        %v2402 = vsel %vm825, 1, 0
        %v2403 = vsel %vm826, 1, 0
        %v2404 = vsel %vm827, 1, 0
        %v2405 = vsel %vm828, 1, 0
        %v2406 = vsel %vm829, 1, 0
        %v2407 = vsel %vm830, 1, 0
        %v2408 = vsel %vm831, 1, 0
        %v2409 = vsel %vm832, 1, 0
        %v2410 = vsel %vm833, 1, 0
        %v2411 = vsel %vm834, 1, 0
        %v2412 = vsel %vm835, 1, 0
        %v2413 = vsel %vm836, 1, 0
        %v2414 = vsel %vm837, 1, 0
        %v2415 = vsel %vm838, 1, 0
        %v2416 = vsel %vm839, 1, 0
        %v2417 = vsel %vm840, 1, 0
        %v2418 = vsel %vm841, 1, 0
        %v2419 = vsel %vm842, 1, 0
        %v2420 = vsel %vm843, 1, 0
        %v2421 = vsel %vm844, 1, 0
        %v2422 = vsel %vm845, 1, 0
        %v2423 = vsel %vm846, 1, 0
        %v2424 = vsel %vm847, 1, 0
        %v2425 = vsel %vm848, 1, 0
        %v2426 = vsel %vm849, 1, 0
        %vm2427 = vcmp.eq.s32.totalorder %v2395, 1
        %vm2428 = vcmp.eq.s32.totalorder %v2396, 1
        %vm2429 = vcmp.eq.s32.totalorder %v2397, 1
        %vm2430 = vcmp.eq.s32.totalorder %v2398, 1
        %vm2431 = vcmp.eq.s32.totalorder %v2399, 1
        %vm2432 = vcmp.eq.s32.totalorder %v2400, 1
        %vm2433 = vcmp.eq.s32.totalorder %v2401, 1
        %vm2434 = vcmp.eq.s32.totalorder %v2402, 1
        %vm2435 = vcmp.eq.s32.totalorder %v2403, 1
        %vm2436 = vcmp.eq.s32.totalorder %v2404, 1
        %vm2437 = vcmp.eq.s32.totalorder %v2405, 1
        %vm2438 = vcmp.eq.s32.totalorder %v2406, 1
        %vm2439 = vcmp.eq.s32.totalorder %v2407, 1
        %vm2440 = vcmp.eq.s32.totalorder %v2408, 1
        %vm2441 = vcmp.eq.s32.totalorder %v2409, 1
        %vm2442 = vcmp.eq.s32.totalorder %v2410, 1
        %vm2443 = vcmp.eq.s32.totalorder %v2411, 1
        %vm2444 = vcmp.eq.s32.totalorder %v2412, 1
        %vm2445 = vcmp.eq.s32.totalorder %v2413, 1
        %vm2446 = vcmp.eq.s32.totalorder %v2414, 1
        %vm2447 = vcmp.eq.s32.totalorder %v2415, 1
        %vm2448 = vcmp.eq.s32.totalorder %v2416, 1
        %vm2449 = vcmp.eq.s32.totalorder %v2417, 1
        %vm2450 = vcmp.eq.s32.totalorder %v2418, 1
        %vm2451 = vcmp.eq.s32.totalorder %v2419, 1
        %vm2452 = vcmp.eq.s32.totalorder %v2420, 1
        %vm2453 = vcmp.eq.s32.totalorder %v2421, 1
        %vm2454 = vcmp.eq.s32.totalorder %v2422, 1
        %vm2455 = vcmp.eq.s32.totalorder %v2423, 1
        %vm2456 = vcmp.eq.s32.totalorder %v2424, 1
        %vm2457 = vcmp.eq.s32.totalorder %v2425, 1
        %vm2458 = vcmp.eq.s32.totalorder %v2426, 1
        %v2459 = vsel %vm2427, %v2394, 0.0
        %v2460 = vsel %vm2428, %v2393, 0.0
        %v2461 = vsel %vm2429, %v2392, 0.0
        %v2462 = vsel %vm2430, %v2391, 0.0
        %v2463 = vsel %vm2431, %v2390, 0.0
        %v2464 = vsel %vm2432, %v2389, 0.0
        %v2465 = vsel %vm2433, %v2388, 0.0
        %v2466 = vsel %vm2434, %v2387, 0.0
        %v2467 = vsel %vm2435, %v2386, 0.0
        %v2468 = vsel %vm2436, %v2385, 0.0
        %v2469 = vsel %vm2437, %v2384, 0.0
        %v2470 = vsel %vm2438, %v2383, 0.0
        %v2471 = vsel %vm2439, %v2382, 0.0
        %v2472 = vsel %vm2440, %v2381, 0.0
        %v2473 = vsel %vm2441, %v2380, 0.0
        %v2474 = vsel %vm2442, %v2379, 0.0
        %v2475 = vsel %vm2443, %v2378, 0.0
        %v2476 = vsel %vm2444, %v2377, 0.0
        %v2477 = vsel %vm2445, %v2376, 0.0
        %v2478 = vsel %vm2446, %v2375, 0.0
        %v2479 = vsel %vm2447, %v2374, 0.0
        %v2480 = vsel %vm2448, %v2373, 0.0
        %v2481 = vsel %vm2449, %v2372, 0.0
        %v2482 = vsel %vm2450, %v2371, 0.0
        %v2483 = vsel %vm2451, %v2370, 0.0
        %v2484 = vsel %vm2452, %v2369, 0.0
        %v2485 = vsel %vm2453, %v2368, 0.0
        %v2486 = vsel %vm2454, %v2367, 0.0
        %v2487 = vsel %vm2455, %v2366, 0.0
        %v2488 = vsel %vm2456, %v2365, 0.0
        %v2489 = vsel %vm2457, %v2364, 0.0
        %v2490 = vsel %vm2458, %v2363, 0.0
        %v2491 = vrot.slane %v2204, 1
        %v2492 = vrot.slane %v2207, 1
        %v2493 = vrot.slane %v2212, 1
        %v2494 = vrot.slane %v2215, 1
        %v2495 = vrot.slane %v2220, 1
        %v2496 = vrot.slane %v2223, 1
        %v2497 = vrot.slane %v2228, 1
        %v2498 = vrot.slane %v2231, 1
        %v2499 = vrot.slane %v2236, 1
        %v2500 = vrot.slane %v2239, 1
        %v2501 = vrot.slane %v2244, 1
        %v2502 = vrot.slane %v2247, 1
        %v2503 = vrot.slane %v2252, 1
        %v2504 = vrot.slane %v2255, 1
        %v2505 = vrot.slane %v2260, 1
        %v2506 = vrot.slane %v2263, 1
        %v2507 = vrot.slane %v2268, 1
        %v2508 = vrot.slane %v2271, 1
        %v2509 = vrot.slane %v2276, 1
        %v2510 = vrot.slane %v2279, 1
        %v2511 = vrot.slane %v2284, 1
        %v2512 = vrot.slane %v2287, 1
        %v2513 = vrot.slane %v2292, 1
        %v2514 = vrot.slane %v2295, 1
        %v2515 = vrot.slane %v2300, 1
        %v2516 = vrot.slane %v2303, 1
        %v2517 = vrot.slane %v2308, 1
        %v2518 = vrot.slane %v2311, 1
        %v2519 = vrot.slane %v2316, 1
        %v2520 = vrot.slane %v2319, 1
        %v2521 = vrot.slane %v2324, 1
        %v2522 = vrot.slane %v2327, 1
        %vm2523 = vcmp.lt.s32.totalorder %v402, 7
        %v2524 = vsel %vm2523, %v2521, %v2522
        %v2525 = vsel %vm2523, %v2520, %v2521
        %v2526 = vsel %vm2523, %v2519, %v2520
        %v2527 = vsel %vm2523, %v2518, %v2519
        %v2528 = vsel %vm2523, %v2517, %v2518
        %v2529 = vsel %vm2523, %v2516, %v2517
        %v2530 = vsel %vm2523, %v2515, %v2516
        %v2531 = vsel %vm2523, %v2514, %v2515
        %v2532 = vsel %vm2523, %v2513, %v2514
        %v2533 = vsel %vm2523, %v2512, %v2513
        %v2534 = vsel %vm2523, %v2511, %v2512
        %v2535 = vsel %vm2523, %v2510, %v2511
        %v2536 = vsel %vm2523, %v2509, %v2510
        %v2537 = vsel %vm2523, %v2508, %v2509
        %v2538 = vsel %vm2523, %v2507, %v2508
        %v2539 = vsel %vm2523, %v2506, %v2507
        %v2540 = vsel %vm2523, %v2505, %v2506
        %v2541 = vsel %vm2523, %v2504, %v2505
        %v2542 = vsel %vm2523, %v2503, %v2504
        %v2543 = vsel %vm2523, %v2502, %v2503
        %v2544 = vsel %vm2523, %v2501, %v2502
        %v2545 = vsel %vm2523, %v2500, %v2501
        %v2546 = vsel %vm2523, %v2499, %v2500
        %v2547 = vsel %vm2523, %v2498, %v2499
        %v2548 = vsel %vm2523, %v2497, %v2498
        %v2549 = vsel %vm2523, %v2496, %v2497
        %v2550 = vsel %vm2523, %v2495, %v2496
        %v2551 = vsel %vm2523, %v2494, %v2495
        %v2552 = vsel %vm2523, %v2493, %v2494
        %v2553 = vsel %vm2523, %v2492, %v2493
        %v2554 = vsel %vm2523, %v2491, %v2492
        %v2555 = vsel %vm2523, %v2522, %v2491
        %v2556 = vsel %vm850, 1, 0
        %v2557 = vsel %vm851, 1, 0
        %v2558 = vsel %vm852, 1, 0
        %v2559 = vsel %vm853, 1, 0
        %v2560 = vsel %vm854, 1, 0
        %v2561 = vsel %vm855, 1, 0
        %v2562 = vsel %vm856, 1, 0
        %v2563 = vsel %vm857, 1, 0
        %v2564 = vsel %vm858, 1, 0
        %v2565 = vsel %vm859, 1, 0
        %v2566 = vsel %vm860, 1, 0
        %v2567 = vsel %vm861, 1, 0
        %v2568 = vsel %vm862, 1, 0
        %v2569 = vsel %vm863, 1, 0
        %v2570 = vsel %vm864, 1, 0
        %v2571 = vsel %vm865, 1, 0
        %v2572 = vsel %vm866, 1, 0
        %v2573 = vsel %vm867, 1, 0
        %v2574 = vsel %vm868, 1, 0
        %v2575 = vsel %vm869, 1, 0
        %v2576 = vsel %vm870, 1, 0
        %v2577 = vsel %vm871, 1, 0
        %v2578 = vsel %vm872, 1, 0
        %v2579 = vsel %vm873, 1, 0
        %v2580 = vsel %vm874, 1, 0
        %v2581 = vsel %vm875, 1, 0
        %v2582 = vsel %vm876, 1, 0
        %v2583 = vsel %vm877, 1, 0
        %v2584 = vsel %vm878, 1, 0
        %v2585 = vsel %vm879, 1, 0
        %v2586 = vsel %vm880, 1, 0
        %v2587 = vsel %vm881, 1, 0
        %vm2588 = vcmp.eq.s32.totalorder %v2556, 1
        %vm2589 = vcmp.eq.s32.totalorder %v2557, 1
        %vm2590 = vcmp.eq.s32.totalorder %v2558, 1
        %vm2591 = vcmp.eq.s32.totalorder %v2559, 1
        %vm2592 = vcmp.eq.s32.totalorder %v2560, 1
        %vm2593 = vcmp.eq.s32.totalorder %v2561, 1
        %vm2594 = vcmp.eq.s32.totalorder %v2562, 1
        %vm2595 = vcmp.eq.s32.totalorder %v2563, 1
        %vm2596 = vcmp.eq.s32.totalorder %v2564, 1
        %vm2597 = vcmp.eq.s32.totalorder %v2565, 1
        %vm2598 = vcmp.eq.s32.totalorder %v2566, 1
        %vm2599 = vcmp.eq.s32.totalorder %v2567, 1
        %vm2600 = vcmp.eq.s32.totalorder %v2568, 1
        %vm2601 = vcmp.eq.s32.totalorder %v2569, 1
        %vm2602 = vcmp.eq.s32.totalorder %v2570, 1
        %vm2603 = vcmp.eq.s32.totalorder %v2571, 1
        %vm2604 = vcmp.eq.s32.totalorder %v2572, 1
        %vm2605 = vcmp.eq.s32.totalorder %v2573, 1
        %vm2606 = vcmp.eq.s32.totalorder %v2574, 1
        %vm2607 = vcmp.eq.s32.totalorder %v2575, 1
        %vm2608 = vcmp.eq.s32.totalorder %v2576, 1
        %vm2609 = vcmp.eq.s32.totalorder %v2577, 1
        %vm2610 = vcmp.eq.s32.totalorder %v2578, 1
        %vm2611 = vcmp.eq.s32.totalorder %v2579, 1
        %vm2612 = vcmp.eq.s32.totalorder %v2580, 1
        %vm2613 = vcmp.eq.s32.totalorder %v2581, 1
        %vm2614 = vcmp.eq.s32.totalorder %v2582, 1
        %vm2615 = vcmp.eq.s32.totalorder %v2583, 1
        %vm2616 = vcmp.eq.s32.totalorder %v2584, 1
        %vm2617 = vcmp.eq.s32.totalorder %v2585, 1
        %vm2618 = vcmp.eq.s32.totalorder %v2586, 1
        %vm2619 = vcmp.eq.s32.totalorder %v2587, 1
        %v2620 = vsel %vm2588, %v2554, 0.0
        %v2621 = vsel %vm2589, %v2553, 0.0
        %v2622 = vsel %vm2590, %v2552, 0.0
        %v2623 = vsel %vm2591, %v2551, 0.0
        %v2624 = vsel %vm2592, %v2550, 0.0
        %v2625 = vsel %vm2593, %v2549, 0.0
        %v2626 = vsel %vm2594, %v2548, 0.0
        %v2627 = vsel %vm2595, %v2547, 0.0
        %v2628 = vsel %vm2596, %v2546, 0.0
        %v2629 = vsel %vm2597, %v2545, 0.0
        %v2630 = vsel %vm2598, %v2544, 0.0
        %v2631 = vsel %vm2599, %v2543, 0.0
        %v2632 = vsel %vm2600, %v2542, 0.0
        %v2633 = vsel %vm2601, %v2541, 0.0
        %v2634 = vsel %vm2602, %v2540, 0.0
        %v2635 = vsel %vm2603, %v2539, 0.0
        %v2636 = vsel %vm2604, %v2538, 0.0
        %v2637 = vsel %vm2605, %v2537, 0.0
        %v2638 = vsel %vm2606, %v2536, 0.0
        %v2639 = vsel %vm2607, %v2535, 0.0
        %v2640 = vsel %vm2608, %v2534, 0.0
        %v2641 = vsel %vm2609, %v2533, 0.0
        %v2642 = vsel %vm2610, %v2532, 0.0
        %v2643 = vsel %vm2611, %v2531, 0.0
        %v2644 = vsel %vm2612, %v2530, 0.0
        %v2645 = vsel %vm2613, %v2529, 0.0
        %v2646 = vsel %vm2614, %v2528, 0.0
        %v2647 = vsel %vm2615, %v2527, 0.0
        %v2648 = vsel %vm2616, %v2526, 0.0
        %v2649 = vsel %vm2617, %v2525, 0.0
        %v2650 = vsel %vm2618, %v2524, 0.0
        %v2651 = vsel %vm2619, %v2555, 0.0
        %v2652 = vadd.f32 %v2459, %v1852
        %v2653 = vadd.f32 %v2460, %v1856
        %v2654 = vadd.f32 %v2461, %v1862
        %v2655 = vadd.f32 %v2462, %v1866
        %v2656 = vadd.f32 %v2463, %v1872
        %v2657 = vadd.f32 %v2464, %v1876
        %v2658 = vadd.f32 %v2465, %v1882
        %v2659 = vadd.f32 %v2466, %v1886
        %v2660 = vadd.f32 %v2467, %v1892
        %v2661 = vadd.f32 %v2468, %v1896
        %v2662 = vadd.f32 %v2469, %v1902
        %v2663 = vadd.f32 %v2470, %v1906
        %v2664 = vadd.f32 %v2471, %v1912
        %v2665 = vadd.f32 %v2472, %v1916
        %v2666 = vadd.f32 %v2473, %v1922
        %v2667 = vadd.f32 %v2474, %v1926
        %v2668 = vadd.f32 %v2475, %v1932
        %v2669 = vadd.f32 %v2476, %v1936
        %v2670 = vadd.f32 %v2477, %v1942
        %v2671 = vadd.f32 %v2478, %v1946
        %v2672 = vadd.f32 %v2479, %v1952
        %v2673 = vadd.f32 %v2480, %v1956
        %v2674 = vadd.f32 %v2481, %v1962
        %v2675 = vadd.f32 %v2482, %v1966
        %v2676 = vadd.f32 %v2483, %v1972
        %v2677 = vadd.f32 %v2484, %v1976
        %v2678 = vadd.f32 %v2485, %v1982
        %v2679 = vadd.f32 %v2486, %v1986
        %v2680 = vadd.f32 %v2487, %v1992
        %v2681 = vadd.f32 %v2488, %v1996
        %v2682 = vadd.f32 %v2489, %v2002
        %v2683 = vadd.f32 %v2490, %v2006
        %v2684 = vadd.f32 %v2652, %v2620
        %v2685 = vadd.f32 %v2653, %v2621
        %v2686 = vadd.f32 %v2654, %v2622
        %v2687 = vadd.f32 %v2655, %v2623
        %v2688 = vadd.f32 %v2656, %v2624
        %v2689 = vadd.f32 %v2657, %v2625
        %v2690 = vadd.f32 %v2658, %v2626
        %v2691 = vadd.f32 %v2659, %v2627
        %v2692 = vadd.f32 %v2660, %v2628
        %v2693 = vadd.f32 %v2661, %v2629
        %v2694 = vadd.f32 %v2662, %v2630
        %v2695 = vadd.f32 %v2663, %v2631
        %v2696 = vadd.f32 %v2664, %v2632
        %v2697 = vadd.f32 %v2665, %v2633
        %v2698 = vadd.f32 %v2666, %v2634
        %v2699 = vadd.f32 %v2667, %v2635
        %v2700 = vadd.f32 %v2668, %v2636
        %v2701 = vadd.f32 %v2669, %v2637
        %v2702 = vadd.f32 %v2670, %v2638
        %v2703 = vadd.f32 %v2671, %v2639
        %v2704 = vadd.f32 %v2672, %v2640
        %v2705 = vadd.f32 %v2673, %v2641
        %v2706 = vadd.f32 %v2674, %v2642
        %v2707 = vadd.f32 %v2675, %v2643
        %v2708 = vadd.f32 %v2676, %v2644
        %v2709 = vadd.f32 %v2677, %v2645
        %v2710 = vadd.f32 %v2678, %v2646
        %v2711 = vadd.f32 %v2679, %v2647
        %v2712 = vadd.f32 %v2680, %v2648
        %v2713 = vadd.f32 %v2681, %v2649
        %v2714 = vadd.f32 %v2682, %v2650
        %v2715 = vadd.f32 %v2683, %v2651
        %v2716 = vld [vmem:[%s6] sm:$0x1]
        %v2718 = vlaneseq
        %v2719 = vshrl.u32 %v2718, 7
        %v2720 = vsub.s32 0, %v2719
        %v2721 = vrot.slane %v2716, %v2720
        %v2723 = vmul.f32 %v2684, %v2721
        %v2724 = vmul.f32 %v2685, %v2721
        %v2725 = vmul.f32 %v2686, %v2721
        %v2726 = vmul.f32 %v2687, %v2721
        %v2727 = vmul.f32 %v2688, %v2721
        %v2728 = vmul.f32 %v2689, %v2721
        %v2729 = vmul.f32 %v2690, %v2721
        %v2730 = vmul.f32 %v2691, %v2721
        %v2731 = vmul.f32 %v2692, %v2721
        %v2732 = vmul.f32 %v2693, %v2721
        %v2733 = vmul.f32 %v2694, %v2721
        %v2734 = vmul.f32 %v2695, %v2721
        %v2735 = vmul.f32 %v2696, %v2721
        %v2736 = vmul.f32 %v2697, %v2721
        %v2737 = vmul.f32 %v2698, %v2721
        %v2738 = vmul.f32 %v2699, %v2721
        %v2739 = vmul.f32 %v2700, %v2721
        %v2740 = vmul.f32 %v2701, %v2721
        %v2741 = vmul.f32 %v2702, %v2721
        %v2742 = vmul.f32 %v2703, %v2721
        %v2743 = vmul.f32 %v2704, %v2721
        %v2744 = vmul.f32 %v2705, %v2721
        %v2745 = vmul.f32 %v2706, %v2721
        %v2746 = vmul.f32 %v2707, %v2721
        %v2747 = vmul.f32 %v2708, %v2721
        %v2748 = vmul.f32 %v2709, %v2721
        %v2749 = vmul.f32 %v2710, %v2721
        %v2750 = vmul.f32 %v2711, %v2721
        %v2751 = vmul.f32 %v2712, %v2721
        %v2752 = vmul.f32 %v2713, %v2721
        %v2753 = vmul.f32 %v2714, %v2721
        %v2754 = vmul.f32 %v2715, %v2721
        %v2755 = vld [vmem:[%s7] sm:$0x1]
        %v2757 = vlaneseq
        %v2758 = vshrl.u32 %v2757, 7
        %v2759 = vsub.s32 0, %v2758
        %v2760 = vrot.slane %v2755, %v2759
        %v2762 = vadd.f32 %v2723, %v2760
        %v2763 = vadd.f32 %v2724, %v2760
        %v2764 = vadd.f32 %v2725, %v2760
        %v2765 = vadd.f32 %v2726, %v2760
        %v2766 = vadd.f32 %v2727, %v2760
        %v2767 = vadd.f32 %v2728, %v2760
        %v2768 = vadd.f32 %v2729, %v2760
        %v2769 = vadd.f32 %v2730, %v2760
        %v2770 = vadd.f32 %v2731, %v2760
        %v2771 = vadd.f32 %v2732, %v2760
        %v2772 = vadd.f32 %v2733, %v2760
        %v2773 = vadd.f32 %v2734, %v2760
        %v2774 = vadd.f32 %v2735, %v2760
        %v2775 = vadd.f32 %v2736, %v2760
        %v2776 = vadd.f32 %v2737, %v2760
        %v2777 = vadd.f32 %v2738, %v2760
        %v2778 = vadd.f32 %v2739, %v2760
        %v2779 = vadd.f32 %v2740, %v2760
        %v2780 = vadd.f32 %v2741, %v2760
        %v2781 = vadd.f32 %v2742, %v2760
        %v2782 = vadd.f32 %v2743, %v2760
        %v2783 = vadd.f32 %v2744, %v2760
        %v2784 = vadd.f32 %v2745, %v2760
        %v2785 = vadd.f32 %v2746, %v2760
        %v2786 = vadd.f32 %v2747, %v2760
        %v2787 = vadd.f32 %v2748, %v2760
        %v2788 = vadd.f32 %v2749, %v2760
        %v2789 = vadd.f32 %v2750, %v2760
        %v2790 = vadd.f32 %v2751, %v2760
        %v2791 = vadd.f32 %v2752, %v2760
        %v2792 = vadd.f32 %v2753, %v2760
        %v2793 = vadd.f32 %v2754, %v2760
        %v2794 = vmax.f32 %v2762, 0.0
        %v2795 = vmax.f32 %v2763, 0.0
        %v2796 = vmax.f32 %v2764, 0.0
        %v2797 = vmax.f32 %v2765, 0.0
        %v2798 = vmax.f32 %v2766, 0.0
        %v2799 = vmax.f32 %v2767, 0.0
        %v2800 = vmax.f32 %v2768, 0.0
        %v2801 = vmax.f32 %v2769, 0.0
        %v2802 = vmax.f32 %v2770, 0.0
        %v2803 = vmax.f32 %v2771, 0.0
        %v2804 = vmax.f32 %v2772, 0.0
        %v2805 = vmax.f32 %v2773, 0.0
        %v2806 = vmax.f32 %v2774, 0.0
        %v2807 = vmax.f32 %v2775, 0.0
        %v2808 = vmax.f32 %v2776, 0.0
        %v2809 = vmax.f32 %v2777, 0.0
        %v2810 = vmax.f32 %v2778, 0.0
        %v2811 = vmax.f32 %v2779, 0.0
        %v2812 = vmax.f32 %v2780, 0.0
        %v2813 = vmax.f32 %v2781, 0.0
        %v2814 = vmax.f32 %v2782, 0.0
        %v2815 = vmax.f32 %v2783, 0.0
        %v2816 = vmax.f32 %v2784, 0.0
        %v2817 = vmax.f32 %v2785, 0.0
        %v2818 = vmax.f32 %v2786, 0.0
        %v2819 = vmax.f32 %v2787, 0.0
        %v2820 = vmax.f32 %v2788, 0.0
        %v2821 = vmax.f32 %v2789, 0.0
        %v2822 = vmax.f32 %v2790, 0.0
        %v2823 = vmax.f32 %v2791, 0.0
        %v2824 = vmax.f32 %v2792, 0.0
        %v2825 = vmax.f32 %v2793, 0.0
        %v2826 = vpack.c.bf16 %v2795, %v2794
        %v2827 = vpack.c.bf16 %v2797, %v2796
        %v2828 = vpack.c.bf16 %v2799, %v2798
        %v2829 = vpack.c.bf16 %v2801, %v2800
        %v2830 = vpack.c.bf16 %v2803, %v2802
        %v2831 = vpack.c.bf16 %v2805, %v2804
        %v2832 = vpack.c.bf16 %v2807, %v2806
        %v2833 = vpack.c.bf16 %v2809, %v2808
        %v2834 = vpack.c.bf16 %v2811, %v2810
        %v2835 = vpack.c.bf16 %v2813, %v2812
        %v2836 = vpack.c.bf16 %v2815, %v2814
        %v2837 = vpack.c.bf16 %v2817, %v2816
        %v2838 = vpack.c.bf16 %v2819, %v2818
        %v2839 = vpack.c.bf16 %v2821, %v2820
        %v2840 = vpack.c.bf16 %v2823, %v2822
        %v2841 = vpack.c.bf16 %v2825, %v2824
        %2842 = vst [vmem:[#allocation2 + $0x30] sm:$0xff] %v2826
        %2843 = vst [vmem:[#allocation2 + $0x48] sm:$0xff] %v2827
        %2844 = vst [vmem:[#allocation2 + $0x60] sm:$0xff] %v2828
        %2845 = vst [vmem:[#allocation2 + $0x78] sm:$0xff] %v2829
        %2846 = vst [vmem:[#allocation2 + $0x90] sm:$0xff] %v2830
        %2847 = vst [vmem:[#allocation2 + $0xa8] sm:$0xff] %v2831
        %2848 = vst [vmem:[#allocation2 + $0xc0] sm:$0xff] %v2832
        %2849 = vst [vmem:[#allocation2 + $0xd8] sm:$0xff] %v2833
        %2850 = vst [vmem:[#allocation2 + $0xf0] sm:$0xff] %v2834
        %2851 = vst [vmem:[#allocation2 + $0x108] sm:$0xff] %v2835
        %2852 = vst [vmem:[#allocation2 + $0x120] sm:$0xff] %v2836
        %2853 = vst [vmem:[#allocation2 + $0x138] sm:$0xff] %v2837
        %2854 = vst [vmem:[#allocation2 + $0x150] sm:$0xff] %v2838
        %2855 = vst [vmem:[#allocation2 + $0x168] sm:$0xff] %v2839
        %2856 = vst [vmem:[#allocation2 + $0x180] sm:$0xff] %v2840
        %2857 = vst [vmem:[#allocation2 + $0x198] sm:$0xff] %v2841
        %2858 = vst [vmem:[#allocation2 + $0x20] sm:$0xff] %v2826
        %2859 = vst [vmem:[#allocation2 + $0x38] sm:$0xff] %v2827
        %2860 = vst [vmem:[#allocation2 + $0x50] sm:$0xff] %v2828
        %2861 = vst [vmem:[#allocation2 + $0x68] sm:$0xff] %v2829
        %2862 = vst [vmem:[#allocation2 + $0x80] sm:$0xff] %v2830
        %2863 = vst [vmem:[#allocation2 + $0x98] sm:$0xff] %v2831
        %2864 = vst [vmem:[#allocation2 + $0xb0] sm:$0xff] %v2832
        %2865 = vst [vmem:[#allocation2 + $0xc8] sm:$0xff] %v2833
        %2866 = vst [vmem:[#allocation2 + $0xe0] sm:$0xff] %v2834
        %2867 = vst [vmem:[#allocation2 + $0xf8] sm:$0xff] %v2835
        %2868 = vst [vmem:[#allocation2 + $0x110] sm:$0xff] %v2836
        %2869 = vst [vmem:[#allocation2 + $0x128] sm:$0xff] %v2837
        %2870 = vst [vmem:[#allocation2 + $0x140] sm:$0xff] %v2838
        %2871 = vst [vmem:[#allocation2 + $0x158] sm:$0xff] %v2839
        %2872 = vst [vmem:[#allocation2 + $0x170] sm:$0xff] %v2840
        %2873 = vst [vmem:[#allocation2 + $0x188] sm:$0xff] %v2841
        %2874 = vst [vmem:[#allocation2 + $0x10] sm:$0xff] %v2826
        %2875 = vst [vmem:[#allocation2 + $0x28] sm:$0xff] %v2827
        %2876 = vst [vmem:[#allocation2 + $0x40] sm:$0xff] %v2828
        %2877 = vst [vmem:[#allocation2 + $0x58] sm:$0xff] %v2829
        %2878 = vst [vmem:[#allocation2 + $0x70] sm:$0xff] %v2830
        %2879 = vst [vmem:[#allocation2 + $0x88] sm:$0xff] %v2831
        %2880 = vst [vmem:[#allocation2 + $0xa0] sm:$0xff] %v2832
        %2881 = vst [vmem:[#allocation2 + $0xb8] sm:$0xff] %v2833
        %2882 = vst [vmem:[#allocation2 + $0xd0] sm:$0xff] %v2834
        %2883 = vst [vmem:[#allocation2 + $0xe8] sm:$0xff] %v2835
        %2884 = vst [vmem:[#allocation2 + $0x100] sm:$0xff] %v2836
        %2885 = vst [vmem:[#allocation2 + $0x118] sm:$0xff] %v2837
        %2886 = vst [vmem:[#allocation2 + $0x130] sm:$0xff] %v2838
        %2887 = vst [vmem:[#allocation2 + $0x148] sm:$0xff] %v2839
        %2888 = vst [vmem:[#allocation2 + $0x160] sm:$0xff] %v2840
        %2889 = vst [vmem:[#allocation2 + $0x178] sm:$0xff] %v2841
        %v2890 = vld [vmem:[#allocation2 + $0x18] sm:$0xff]
        %v2891 = vld [vmem:[#allocation2 + $0x20] sm:$0xff]
        %v2892 = vld [vmem:[#allocation2 + $0x28] sm:$0xff]
        %v2893 = vld [vmem:[#allocation2 + $0x30] sm:$0xff]
        %v2894 = vld [vmem:[#allocation2 + $0x38] sm:$0xff]
        %v2895 = vld [vmem:[#allocation2 + $0x40] sm:$0xff]
        %v2896 = vld [vmem:[#allocation2 + $0x48] sm:$0xff]
        %v2897 = vld [vmem:[#allocation2 + $0x50] sm:$0xff]
        %v2898 = vld [vmem:[#allocation2 + $0x58] sm:$0xff]
        %v2899 = vld [vmem:[#allocation2 + $0x60] sm:$0xff]
        %v2900 = vld [vmem:[#allocation2 + $0x68] sm:$0xff]
        %v2901 = vld [vmem:[#allocation2 + $0x70] sm:$0xff]
        %v2902 = vld [vmem:[#allocation2 + $0x78] sm:$0xff]
        %v2903 = vld [vmem:[#allocation2 + $0x80] sm:$0xff]
        %v2904 = vld [vmem:[#allocation2 + $0x88] sm:$0xff]
        %v2905 = vld [vmem:[#allocation2 + $0x90] sm:$0xff]
        %v2906 = vld [vmem:[#allocation2 + $0x98] sm:$0xff]
        %v2907 = vld [vmem:[#allocation2 + $0xa0] sm:$0xff]
        %v2908 = vld [vmem:[#allocation2 + $0xa8] sm:$0xff]
        %v2909 = vld [vmem:[#allocation2 + $0xb0] sm:$0xff]
        %v2910 = vld [vmem:[#allocation2 + $0xb8] sm:$0xff]
        %v2911 = vld [vmem:[#allocation2 + $0xc0] sm:$0xff]
        %v2912 = vld [vmem:[#allocation2 + $0xc8] sm:$0xff]
        %v2913 = vld [vmem:[#allocation2 + $0xd0] sm:$0xff]
        %v2914 = vld [vmem:[#allocation2 + $0xd8] sm:$0xff]
        %v2915 = vld [vmem:[#allocation2 + $0xe0] sm:$0xff]
        %v2916 = vld [vmem:[#allocation2 + $0xe8] sm:$0xff]
        %v2917 = vld [vmem:[#allocation2 + $0xf0] sm:$0xff]
        %v2918 = vld [vmem:[#allocation2 + $0xf8] sm:$0xff]
        %v2919 = vld [vmem:[#allocation2 + $0x100] sm:$0xff]
        %v2920 = vld [vmem:[#allocation2 + $0x108] sm:$0xff]
        %v2921 = vld [vmem:[#allocation2 + $0x110] sm:$0xff]
        %v2922 = vld [vmem:[#allocation2 + $0x118] sm:$0xff]
        %v2923 = vld [vmem:[#allocation2 + $0x120] sm:$0xff]
        %v2924 = vld [vmem:[#allocation2 + $0x128] sm:$0xff]
        %v2925 = vld [vmem:[#allocation2 + $0x130] sm:$0xff]
        %v2926 = vld [vmem:[#allocation2 + $0x138] sm:$0xff]
        %v2927 = vld [vmem:[#allocation2 + $0x140] sm:$0xff]
        %v2928 = vld [vmem:[#allocation2 + $0x148] sm:$0xff]
        %v2929 = vld [vmem:[#allocation2 + $0x150] sm:$0xff]
        %v2930 = vld [vmem:[#allocation2 + $0x158] sm:$0xff]
        %v2931 = vld [vmem:[#allocation2 + $0x160] sm:$0xff]
        %v2932 = vld [vmem:[#allocation2 + $0x168] sm:$0xff]
        %v2933 = vld [vmem:[#allocation2 + $0x170] sm:$0xff]
        %v2934 = vld [vmem:[#allocation2 + $0x178] sm:$0xff]
        %v2935 = vld [vmem:[#allocation2 + $0x180] sm:$0xff]
        %v2936 = vld [vmem:[#allocation2 + $0x188] sm:$0xff]
        %v2937 = vld [vmem:[#allocation2 + $0x190] sm:$0xff]
        %v2938 = vld [vmem:[#allocation9] sm:$0xff]
        %v2939 = vld [vmem:[#allocation9 + $0x8] sm:$0xf]
        %v2940 = vld [vmem:[#allocation9 + $0xc] sm:$0xff]
        %v2941 = vld [vmem:[#allocation9 + $0x14] sm:$0xf]
        %v2942 = vld [vmem:[#allocation9 + $0x18] sm:$0xff]
        %v2943 = vld [vmem:[#allocation9 + $0x20] sm:$0xf]
        %v2944 = vld [vmem:[#allocation9 + $0x24] sm:$0xff]
        %v2945 = vld [vmem:[#allocation9 + $0x2c] sm:$0xf]
        %v2946 = vld [vmem:[#allocation9 + $0x30] sm:$0xff]
        %v2947 = vld [vmem:[#allocation9 + $0x38] sm:$0xf]
        %v2948 = vld [vmem:[#allocation9 + $0x3c] sm:$0xff]
        %v2949 = vld [vmem:[#allocation9 + $0x44] sm:$0xf]
        %v2950 = vld [vmem:[#allocation9 + $0x48] sm:$0xff]
        %v2951 = vld [vmem:[#allocation9 + $0x50] sm:$0xf]
        %v2952 = vld [vmem:[#allocation9 + $0x54] sm:$0xff]
        %v2953 = vld [vmem:[#allocation9 + $0x5c] sm:$0xf]
        %v2954 = vld [vmem:[#allocation9 + $0x60] sm:$0xff]
        %v2955 = vld [vmem:[#allocation9 + $0x68] sm:$0xf]
        %v2956 = vld [vmem:[#allocation9 + $0x6c] sm:$0xff]
        %v2957 = vld [vmem:[#allocation9 + $0x74] sm:$0xf]
        %v2958 = vld [vmem:[#allocation9 + $0x78] sm:$0xff]
        %v2959 = vld [vmem:[#allocation9 + $0x80] sm:$0xf]
        %v2960 = vld [vmem:[#allocation9 + $0x84] sm:$0xff]
        %v2961 = vld [vmem:[#allocation9 + $0x8c] sm:$0xf]
        %v2962 = vld [vmem:[#allocation9 + $0x90] sm:$0xff]
        %v2963 = vld [vmem:[#allocation9 + $0x98] sm:$0xf]
        %v2964 = vld [vmem:[#allocation9 + $0x9c] sm:$0xff]
        %v2965 = vld [vmem:[#allocation9 + $0xa4] sm:$0xf]
        %v2966 = vld [vmem:[#allocation9 + $0xa8] sm:$0xff]
        %v2967 = vld [vmem:[#allocation9 + $0xb0] sm:$0xf]
        %v2968 = vld [vmem:[#allocation9 + $0xb4] sm:$0xff]
        %v2969 = vld [vmem:[#allocation9 + $0xbc] sm:$0xf]
        %v2970 = vld [vmem:[#allocation9 + $0xc0] sm:$0xff]
        %v2971 = vld [vmem:[#allocation9 + $0xc8] sm:$0xf]
        %v2972 = vld [vmem:[#allocation9 + $0xcc] sm:$0xff]
        %v2973 = vld [vmem:[#allocation9 + $0xd4] sm:$0xf]
        %v2974 = vld [vmem:[#allocation9 + $0xd8] sm:$0xff]
        %v2975 = vld [vmem:[#allocation9 + $0xe0] sm:$0xf]
        %v2976 = vld [vmem:[#allocation9 + $0xe4] sm:$0xff]
        %v2977 = vld [vmem:[#allocation9 + $0xec] sm:$0xf]
        %v2978 = vld [vmem:[#allocation9 + $0xf0] sm:$0xff]
        %v2979 = vld [vmem:[#allocation9 + $0xf8] sm:$0xf]
        %v2980 = vld [vmem:[#allocation9 + $0xfc] sm:$0xff]
        %v2981 = vld [vmem:[#allocation9 + $0x104] sm:$0xf]
        %v2982 = vld [vmem:[#allocation9 + $0x108] sm:$0xff]
        %v2983 = vld [vmem:[#allocation9 + $0x110] sm:$0xf]
        %v2984 = vld [vmem:[#allocation9 + $0x114] sm:$0xff]
        %v2985 = vld [vmem:[#allocation9 + $0x11c] sm:$0xf]
        %v2986 = vld [vmem:[#allocation9 + $0x120] sm:$0xff]
        %v2987 = vld [vmem:[#allocation9 + $0x128] sm:$0xf]
        %v2988 = vld [vmem:[#allocation9 + $0x12c] sm:$0xff]
        %v2989 = vld [vmem:[#allocation9 + $0x134] sm:$0xf]
        %v2990 = vld [vmem:[#allocation9 + $0x138] sm:$0xff]
        %v2991 = vld [vmem:[#allocation9 + $0x140] sm:$0xf]
        %v2992 = vld [vmem:[#allocation9 + $0x144] sm:$0xff]
        %v2993 = vld [vmem:[#allocation9 + $0x14c] sm:$0xf]
        %v2994 = vld [vmem:[#allocation9 + $0x150] sm:$0xff]
        %v2995 = vld [vmem:[#allocation9 + $0x158] sm:$0xf]
        %v2996 = vld [vmem:[#allocation9 + $0x15c] sm:$0xff]
        %v2997 = vld [vmem:[#allocation9 + $0x164] sm:$0xf]
        %v2998 = vld [vmem:[#allocation9 + $0x168] sm:$0xff]
        %v2999 = vld [vmem:[#allocation9 + $0x170] sm:$0xf]
        %v3000 = vld [vmem:[#allocation9 + $0x174] sm:$0xff]
        %v3001 = vld [vmem:[#allocation9 + $0x17c] sm:$0xf]
        %v3002 = vld [vmem:[#allocation9 + $0x180] sm:$0xff]
        %v3003 = vld [vmem:[#allocation9 + $0x188] sm:$0xf]
        %v3004 = vld [vmem:[#allocation9 + $0x18c] sm:$0xff]
        %v3005 = vld [vmem:[#allocation9 + $0x194] sm:$0xf]
        %v3006 = vld [vmem:[#allocation9 + $0x198] sm:$0xff]
        %v3007 = vld [vmem:[#allocation9 + $0x1a0] sm:$0xf]
        %v3008 = vld [vmem:[#allocation9 + $0x1a4] sm:$0xff]
        %v3009 = vld [vmem:[#allocation9 + $0x1ac] sm:$0xf]
        %v3010 = vld [vmem:[#allocation9 + $0x1b0] sm:$0xff]
        %v3011 = vld [vmem:[#allocation9 + $0x1b8] sm:$0xf]
        %v3012 = vld [vmem:[#allocation9 + $0x1bc] sm:$0xff]
        %v3013 = vld [vmem:[#allocation9 + $0x1c4] sm:$0xf]
        %v3014 = vld [vmem:[#allocation9 + $0x1c8] sm:$0xff]
        %v3015 = vld [vmem:[#allocation9 + $0x1d0] sm:$0xf]
        %v3016 = vld [vmem:[#allocation9 + $0x1d4] sm:$0xff]
        %v3017 = vld [vmem:[#allocation9 + $0x1dc] sm:$0xf]
        %v3018 = vld [vmem:[#allocation9 + $0x1e0] sm:$0xff]
        %v3019 = vld [vmem:[#allocation9 + $0x1e8] sm:$0xf]
        %v3020 = vld [vmem:[#allocation9 + $0x1ec] sm:$0xff]
        %v3021 = vld [vmem:[#allocation9 + $0x1f4] sm:$0xf]
        %v3022 = vld [vmem:[#allocation9 + $0x1f8] sm:$0xff]
        %v3023 = vld [vmem:[#allocation9 + $0x200] sm:$0xf]
        %v3024 = vld [vmem:[#allocation9 + $0x204] sm:$0xff]
        %v3025 = vld [vmem:[#allocation9 + $0x20c] sm:$0xf]
        %v3026 = vld [vmem:[#allocation9 + $0x210] sm:$0xff]
        %v3027 = vld [vmem:[#allocation9 + $0x218] sm:$0xf]
        %v3028 = vld [vmem:[#allocation9 + $0x21c] sm:$0xff]
        %v3029 = vld [vmem:[#allocation9 + $0x224] sm:$0xf]
        %v3030 = vld [vmem:[#allocation9 + $0x228] sm:$0xff]
        %v3031 = vld [vmem:[#allocation9 + $0x230] sm:$0xf]
        %v3032 = vld [vmem:[#allocation9 + $0x234] sm:$0xff]
        %v3033 = vld [vmem:[#allocation9 + $0x23c] sm:$0xf]
        %v3130 = vunpack.c.l.b16 %v2938
        %v3131 = vunpack.c.h.b16 %v2938
        %v3132 = vunpack.c.l.b16 %v2939
        %v3133 = vunpack.c.l.b16 %v2940
        %v3134 = vunpack.c.h.b16 %v2940
        %v3135 = vunpack.c.l.b16 %v2941
        %v3136 = vunpack.c.l.b16 %v2942
        %v3137 = vunpack.c.h.b16 %v2942
        %v3138 = vunpack.c.l.b16 %v2943
        %v3139 = vunpack.c.l.b16 %v2944
        %v3140 = vunpack.c.h.b16 %v2944
        %v3141 = vunpack.c.l.b16 %v2945
        %v3142 = vunpack.c.l.b16 %v2946
        %v3143 = vunpack.c.h.b16 %v2946
        %v3144 = vunpack.c.l.b16 %v2947
        %v3145 = vunpack.c.l.b16 %v2948
        %v3146 = vunpack.c.h.b16 %v2948
        %v3147 = vunpack.c.l.b16 %v2949
        %v3148 = vunpack.c.l.b16 %v2950
        %v3149 = vunpack.c.h.b16 %v2950
        %v3150 = vunpack.c.l.b16 %v2951
        %v3151 = vunpack.c.l.b16 %v2952
        %v3152 = vunpack.c.h.b16 %v2952
        %v3153 = vunpack.c.l.b16 %v2953
        %v3154 = vunpack.c.l.b16 %v2954
        %v3155 = vunpack.c.h.b16 %v2954
        %v3156 = vunpack.c.l.b16 %v2955
        %v3157 = vunpack.c.l.b16 %v2956
        %v3158 = vunpack.c.h.b16 %v2956
        %v3159 = vunpack.c.l.b16 %v2957
        %v3160 = vunpack.c.l.b16 %v2958
        %v3161 = vunpack.c.h.b16 %v2958
        %v3162 = vunpack.c.l.b16 %v2959
        %v3163 = vunpack.c.l.b16 %v2960
        %v3164 = vunpack.c.h.b16 %v2960
        %v3165 = vunpack.c.l.b16 %v2961
        %v3166 = vunpack.c.l.b16 %v2962
        %v3167 = vunpack.c.h.b16 %v2962
        %v3168 = vunpack.c.l.b16 %v2963
        %v3169 = vunpack.c.l.b16 %v2964
        %v3170 = vunpack.c.h.b16 %v2964
        %v3171 = vunpack.c.l.b16 %v2965
        %v3172 = vunpack.c.l.b16 %v2966
        %v3173 = vunpack.c.h.b16 %v2966
        %v3174 = vunpack.c.l.b16 %v2967
        %v3175 = vunpack.c.l.b16 %v2968
        %v3176 = vunpack.c.h.b16 %v2968
        %v3177 = vunpack.c.l.b16 %v2969
        %v3178 = vunpack.c.l.b16 %v2970
        %v3179 = vunpack.c.h.b16 %v2970
        %v3180 = vunpack.c.l.b16 %v2971
        %v3181 = vunpack.c.l.b16 %v2972
        %v3182 = vunpack.c.h.b16 %v2972
        %v3183 = vunpack.c.l.b16 %v2973
        %v3184 = vunpack.c.l.b16 %v2974
        %v3185 = vunpack.c.h.b16 %v2974
        %v3186 = vunpack.c.l.b16 %v2975
        %v3187 = vunpack.c.l.b16 %v2976
        %v3188 = vunpack.c.h.b16 %v2976
        %v3189 = vunpack.c.l.b16 %v2977
        %v3190 = vunpack.c.l.b16 %v2978
        %v3191 = vunpack.c.h.b16 %v2978
        %v3192 = vunpack.c.l.b16 %v2979
        %v3193 = vunpack.c.l.b16 %v2980
        %v3194 = vunpack.c.h.b16 %v2980
        %v3195 = vunpack.c.l.b16 %v2981
        %v3196 = vunpack.c.l.b16 %v2982
        %v3197 = vunpack.c.h.b16 %v2982
        %v3198 = vunpack.c.l.b16 %v2983
        %v3199 = vunpack.c.l.b16 %v2984
        %v3200 = vunpack.c.h.b16 %v2984
        %v3201 = vunpack.c.l.b16 %v2985
        %v3202 = vunpack.c.l.b16 %v2986
        %v3203 = vunpack.c.h.b16 %v2986
        %v3204 = vunpack.c.l.b16 %v2987
        %v3205 = vunpack.c.l.b16 %v2988
        %v3206 = vunpack.c.h.b16 %v2988
        %v3207 = vunpack.c.l.b16 %v2989
        %v3208 = vunpack.c.l.b16 %v2990
        %v3209 = vunpack.c.h.b16 %v2990
        %v3210 = vunpack.c.l.b16 %v2991
        %v3211 = vunpack.c.l.b16 %v2992
        %v3212 = vunpack.c.h.b16 %v2992
        %v3213 = vunpack.c.l.b16 %v2993
        %v3214 = vunpack.c.l.b16 %v2994
        %v3215 = vunpack.c.h.b16 %v2994
        %v3216 = vunpack.c.l.b16 %v2995
        %v3217 = vunpack.c.l.b16 %v2996
        %v3218 = vunpack.c.h.b16 %v2996
        %v3219 = vunpack.c.l.b16 %v2997
        %v3220 = vunpack.c.l.b16 %v2998
        %v3221 = vunpack.c.h.b16 %v2998
        %v3222 = vunpack.c.l.b16 %v2999
        %v3223 = vunpack.c.l.b16 %v3000
        %v3224 = vunpack.c.h.b16 %v3000
        %v3225 = vunpack.c.l.b16 %v3001
        %v3226 = vunpack.c.l.b16 %v3002
        %v3227 = vunpack.c.h.b16 %v3002
        %v3228 = vunpack.c.l.b16 %v3003
        %v3229 = vunpack.c.l.b16 %v3004
        %v3230 = vunpack.c.h.b16 %v3004
        %v3231 = vunpack.c.l.b16 %v3005
        %v3232 = vunpack.c.l.b16 %v3006
        %v3233 = vunpack.c.h.b16 %v3006
        %v3234 = vunpack.c.l.b16 %v3007
        %v3235 = vunpack.c.l.b16 %v3008
        %v3236 = vunpack.c.h.b16 %v3008
        %v3237 = vunpack.c.l.b16 %v3009
        %v3238 = vunpack.c.l.b16 %v3010
        %v3239 = vunpack.c.h.b16 %v3010
        %v3240 = vunpack.c.l.b16 %v3011
        %v3241 = vunpack.c.l.b16 %v3012
        %v3242 = vunpack.c.h.b16 %v3012
        %v3243 = vunpack.c.l.b16 %v3013
        %v3244 = vunpack.c.l.b16 %v3014
        %v3245 = vunpack.c.h.b16 %v3014
        %v3246 = vunpack.c.l.b16 %v3015
        %v3247 = vunpack.c.l.b16 %v3016
        %v3248 = vunpack.c.h.b16 %v3016
        %v3249 = vunpack.c.l.b16 %v3017
        %v3250 = vunpack.c.l.b16 %v3018
        %v3251 = vunpack.c.h.b16 %v3018
        %v3252 = vunpack.c.l.b16 %v3019
        %v3253 = vunpack.c.l.b16 %v3020
        %v3254 = vunpack.c.h.b16 %v3020
        %v3255 = vunpack.c.l.b16 %v3021
        %v3256 = vunpack.c.l.b16 %v3022
        %v3257 = vunpack.c.h.b16 %v3022
        %v3258 = vunpack.c.l.b16 %v3023
        %v3259 = vunpack.c.l.b16 %v3024
        %v3260 = vunpack.c.h.b16 %v3024
        %v3261 = vunpack.c.l.b16 %v3025
        %v3262 = vunpack.c.l.b16 %v3026
        %v3263 = vunpack.c.h.b16 %v3026
        %v3264 = vunpack.c.l.b16 %v3027
        %v3265 = vunpack.c.l.b16 %v3028
        %v3266 = vunpack.c.h.b16 %v3028
        %v3267 = vunpack.c.l.b16 %v3029
        %v3268 = vunpack.c.l.b16 %v3030
        %v3269 = vunpack.c.h.b16 %v3030
        %v3270 = vunpack.c.l.b16 %v3031
        %v3271 = vunpack.c.l.b16 %v3032
        %v3272 = vunpack.c.h.b16 %v3032
        %v3273 = vunpack.c.l.b16 %v3033
        %v3274 = vpack.c.b16 %v3133, %v3130
        %v3275 = vpack.c.b16 %v3134, %v3131
        %v3276 = vpack.c.b16 %v3135, %v3132
        %v3277 = vpack.c.b16 %v3139, %v3136
        %v3278 = vpack.c.b16 %v3140, %v3137
        %v3279 = vpack.c.b16 %v3141, %v3138
        %v3280 = vpack.c.b16 %v3145, %v3142
        %v3281 = vpack.c.b16 %v3146, %v3143
        %v3282 = vpack.c.b16 %v3147, %v3144
        %v3283 = vpack.c.b16 %v3151, %v3148
        %v3284 = vpack.c.b16 %v3152, %v3149
        %v3285 = vpack.c.b16 %v3153, %v3150
        %v3286 = vpack.c.b16 %v3157, %v3154
        %v3287 = vpack.c.b16 %v3158, %v3155
        %v3288 = vpack.c.b16 %v3159, %v3156
        %v3289 = vpack.c.b16 %v3163, %v3160
        %v3290 = vpack.c.b16 %v3164, %v3161
        %v3291 = vpack.c.b16 %v3165, %v3162
        %v3292 = vpack.c.b16 %v3169, %v3166
        %v3293 = vpack.c.b16 %v3170, %v3167
        %v3294 = vpack.c.b16 %v3171, %v3168
        %v3295 = vpack.c.b16 %v3175, %v3172
        %v3296 = vpack.c.b16 %v3176, %v3173
        %v3297 = vpack.c.b16 %v3177, %v3174
        %v3298 = vpack.c.b16 %v3181, %v3178
        %v3299 = vpack.c.b16 %v3182, %v3179
        %v3300 = vpack.c.b16 %v3183, %v3180
        %v3301 = vpack.c.b16 %v3187, %v3184
        %v3302 = vpack.c.b16 %v3188, %v3185
        %v3303 = vpack.c.b16 %v3189, %v3186
        %v3304 = vpack.c.b16 %v3193, %v3190
        %v3305 = vpack.c.b16 %v3194, %v3191
        %v3306 = vpack.c.b16 %v3195, %v3192
        %v3307 = vpack.c.b16 %v3199, %v3196
        %v3308 = vpack.c.b16 %v3200, %v3197
        %v3309 = vpack.c.b16 %v3201, %v3198
        %v3310 = vpack.c.b16 %v3205, %v3202
        %v3311 = vpack.c.b16 %v3206, %v3203
        %v3312 = vpack.c.b16 %v3207, %v3204
        %v3313 = vpack.c.b16 %v3211, %v3208
        %v3314 = vpack.c.b16 %v3212, %v3209
        %v3315 = vpack.c.b16 %v3213, %v3210
        %v3316 = vpack.c.b16 %v3217, %v3214
        %v3317 = vpack.c.b16 %v3218, %v3215
        %v3318 = vpack.c.b16 %v3219, %v3216
        %v3319 = vpack.c.b16 %v3223, %v3220
        %v3320 = vpack.c.b16 %v3224, %v3221
        %v3321 = vpack.c.b16 %v3225, %v3222
        %v3322 = vpack.c.b16 %v3229, %v3226
        %v3323 = vpack.c.b16 %v3230, %v3227
        %v3324 = vpack.c.b16 %v3231, %v3228
        %v3325 = vpack.c.b16 %v3235, %v3232
        %v3326 = vpack.c.b16 %v3236, %v3233
        %v3327 = vpack.c.b16 %v3237, %v3234
        %v3328 = vpack.c.b16 %v3241, %v3238
        %v3329 = vpack.c.b16 %v3242, %v3239
        %v3330 = vpack.c.b16 %v3243, %v3240
        %v3331 = vpack.c.b16 %v3247, %v3244
        %v3332 = vpack.c.b16 %v3248, %v3245
        %v3333 = vpack.c.b16 %v3249, %v3246
        %v3334 = vpack.c.b16 %v3253, %v3250
        %v3335 = vpack.c.b16 %v3254, %v3251
        %v3336 = vpack.c.b16 %v3255, %v3252
        %v3337 = vpack.c.b16 %v3259, %v3256
        %v3338 = vpack.c.b16 %v3260, %v3257
        %v3339 = vpack.c.b16 %v3261, %v3258
        %v3340 = vpack.c.b16 %v3265, %v3262
        %v3341 = vpack.c.b16 %v3266, %v3263
        %v3342 = vpack.c.b16 %v3267, %v3264
        %v3343 = vpack.c.b16 %v3271, %v3268
        %v3344 = vpack.c.b16 %v3272, %v3269
        %v3345 = vpack.c.b16 %v3273, %v3270
        %3418 = vmatprep.subr.bf16.mxu0 %v3275
        %3419 = vmatpush1.bf16.msra.mxu0 %v3274
        %3420 = vmatprep.subr.bf16.mxu0 %v3278
        %3421 = vmatpush1.bf16.msra.mxu0 %v3277
        %3422 = vmatprep.subr.bf16.mxu0 %v3281
        %3423 = vmatpush1.bf16.msra.mxu0 %v3280
        %3424 = vmatprep.subr.bf16.mxu0 %v3284
        %3425 = vmatpush1.bf16.msra.mxu0 %v3283
        %3426 = vmatprep.subr.bf16.mxu0 %v3287
        %3427 = vmatpush1.bf16.msra.mxu0 %v3286
        %3428 = vmatprep.subr.bf16.mxu0 %v3290
        %3429 = vmatpush1.bf16.msra.mxu0 %v3289
        %3430 = vmatprep.subr.bf16.mxu0 %v3293
        %3431 = vmatpush1.bf16.msra.mxu0 %v3292
        %3432 = vmatprep.subr.bf16.mxu0 %v3296
        %3433 = vmatpush1.bf16.msra.mxu0 %v3295
        %3434 = vmatprep.subr.bf16.mxu0 %v3299
        %3435 = vmatpush1.bf16.msra.mxu0 %v3298
        %3436 = vmatprep.subr.bf16.mxu0 %v3302
        %3437 = vmatpush1.bf16.msra.mxu0 %v3301
        %3438 = vmatprep.subr.bf16.mxu0 %v3305
        %3439 = vmatpush1.bf16.msra.mxu0 %v3304
        %3440 = vmatprep.subr.bf16.mxu0 %v3308
        %3441 = vmatpush1.bf16.msra.mxu0 %v3307
        %3442 = vmatprep.subr.bf16.mxu0 %v3311
        %3443 = vmatpush1.bf16.msra.mxu0 %v3310
        %3444 = vmatprep.subr.bf16.mxu0 %v3314
        %3445 = vmatpush1.bf16.msra.mxu0 %v3313
        %3446 = vmatprep.subr.bf16.mxu0 %v3317
        %3447 = vmatpush1.bf16.msra.mxu0 %v3316
        %3448 = vmatprep.subr.bf16.mxu0 %v3320
        %3449 = vmatpush1.bf16.msra.mxu0 %v3319
        %3450 = vmatprep.mubr.bf16.mxu0 %v2891
        %3451 = vmatmul.mubr.bf16.gmra.mrb[0].mxu0 %v2890
        %v3452 = vpop.f32.mrb[0].mxu0
        %v3453 = vadd.f32 0.0, %v3452
        %v3454 = vpop.f32.mrb[0].mxu0
        %v3455 = vadd.f32 0.0, %v3454
        %v3456 = vpop.f32.mrb[0].mxu0
        %v3457 = vadd.f32 0.0, %v3456
        %v3458 = vpop.f32.mrb[0].mxu0
        %v3459 = vadd.f32 0.0, %v3458
        %3460 = vmatprep.mubr.bf16.mxu0 %v2894
        %3461 = vmatmul.mubr.bf16.gmra.mrb[0].mxu0 %v2893
        %v3462 = vpop.f32.mrb[0].mxu0
        %v3463 = vadd.f32 0.0, %v3462
        %v3464 = vpop.f32.mrb[0].mxu0
        %v3465 = vadd.f32 0.0, %v3464
        %v3466 = vpop.f32.mrb[0].mxu0
        %v3467 = vadd.f32 0.0, %v3466
        %v3468 = vpop.f32.mrb[0].mxu0
        %v3469 = vadd.f32 0.0, %v3468
        %3470 = vmatprep.mubr.bf16.mxu0 %v2897
        %3471 = vmatmul.mubr.bf16.gmra.mrb[0].mxu0 %v2896
        %v3472 = vpop.f32.mrb[0].mxu0
        %v3473 = vadd.f32 0.0, %v3472
        %v3474 = vpop.f32.mrb[0].mxu0
        %v3475 = vadd.f32 0.0, %v3474
        %v3476 = vpop.f32.mrb[0].mxu0
        %v3477 = vadd.f32 0.0, %v3476
        %v3478 = vpop.f32.mrb[0].mxu0
        %v3479 = vadd.f32 0.0, %v3478
        %3480 = vmatprep.mubr.bf16.mxu0 %v2900
        %3481 = vmatmul.mubr.bf16.gmra.mrb[0].mxu0 %v2899
        %v3482 = vpop.f32.mrb[0].mxu0
        %v3483 = vadd.f32 0.0, %v3482
        %v3484 = vpop.f32.mrb[0].mxu0
        %v3485 = vadd.f32 0.0, %v3484
        %v3486 = vpop.f32.mrb[0].mxu0
        %v3487 = vadd.f32 0.0, %v3486
        %v3488 = vpop.f32.mrb[0].mxu0
        %v3489 = vadd.f32 0.0, %v3488
        %3490 = vmatprep.mubr.bf16.mxu0 %v2903
        %3491 = vmatmul.mubr.bf16.gmra.mrb[0].mxu0 %v2902
        %v3492 = vpop.f32.mrb[0].mxu0
        %v3493 = vadd.f32 0.0, %v3492
        %v3494 = vpop.f32.mrb[0].mxu0
        %v3495 = vadd.f32 0.0, %v3494
        %v3496 = vpop.f32.mrb[0].mxu0
        %v3497 = vadd.f32 0.0, %v3496
        %v3498 = vpop.f32.mrb[0].mxu0
        %v3499 = vadd.f32 0.0, %v3498
        %3500 = vmatprep.mubr.bf16.mxu0 %v2906
        %3501 = vmatmul.mubr.bf16.gmra.mrb[0].mxu0 %v2905
        %v3502 = vpop.f32.mrb[0].mxu0
        %v3503 = vadd.f32 0.0, %v3502
        %v3504 = vpop.f32.mrb[0].mxu0
        %v3505 = vadd.f32 0.0, %v3504
        %v3506 = vpop.f32.mrb[0].mxu0
        %v3507 = vadd.f32 0.0, %v3506
        %v3508 = vpop.f32.mrb[0].mxu0
        %v3509 = vadd.f32 0.0, %v3508
        %3510 = vmatprep.mubr.bf16.mxu0 %v2909
        %3511 = vmatmul.mubr.bf16.gmra.mrb[0].mxu0 %v2908
        %v3512 = vpop.f32.mrb[0].mxu0
        %v3513 = vadd.f32 0.0, %v3512
        %v3514 = vpop.f32.mrb[0].mxu0
        %v3515 = vadd.f32 0.0, %v3514
        %v3516 = vpop.f32.mrb[0].mxu0
        %v3517 = vadd.f32 0.0, %v3516
        %v3518 = vpop.f32.mrb[0].mxu0
        %v3519 = vadd.f32 0.0, %v3518
        %3520 = vmatprep.mubr.bf16.mxu0 %v2912
        %3521 = vmatmul.mubr.bf16.gmra.mrb[0].mxu0 %v2911
        %v3522 = vpop.f32.mrb[0].mxu0
        %v3523 = vadd.f32 0.0, %v3522
        %v3524 = vpop.f32.mrb[0].mxu0
        %v3525 = vadd.f32 0.0, %v3524
        %v3526 = vpop.f32.mrb[0].mxu0
        %v3527 = vadd.f32 0.0, %v3526
        %v3528 = vpop.f32.mrb[0].mxu0
        %v3529 = vadd.f32 0.0, %v3528
        %3530 = vmatprep.mubr.bf16.mxu0 %v2915
        %3531 = vmatmul.mubr.bf16.gmra.mrb[0].mxu0 %v2914
        %v3532 = vpop.f32.mrb[0].mxu0
        %v3533 = vadd.f32 0.0, %v3532
        %v3534 = vpop.f32.mrb[0].mxu0
        %v3535 = vadd.f32 0.0, %v3534
        %v3536 = vpop.f32.mrb[0].mxu0
        %v3537 = vadd.f32 0.0, %v3536
        %v3538 = vpop.f32.mrb[0].mxu0
        %v3539 = vadd.f32 0.0, %v3538
        %3540 = vmatprep.mubr.bf16.mxu0 %v2918
        %3541 = vmatmul.mubr.bf16.gmra.mrb[0].mxu0 %v2917
        %v3542 = vpop.f32.mrb[0].mxu0
        %v3543 = vadd.f32 0.0, %v3542
        %v3544 = vpop.f32.mrb[0].mxu0
        %v3545 = vadd.f32 0.0, %v3544
        %v3546 = vpop.f32.mrb[0].mxu0
        %v3547 = vadd.f32 0.0, %v3546
        %v3548 = vpop.f32.mrb[0].mxu0
        %v3549 = vadd.f32 0.0, %v3548
        %3550 = vmatprep.mubr.bf16.mxu0 %v2921
        %3551 = vmatmul.mubr.bf16.gmra.mrb[0].mxu0 %v2920
        %v3552 = vpop.f32.mrb[0].mxu0
        %v3553 = vadd.f32 0.0, %v3552
        %v3554 = vpop.f32.mrb[0].mxu0
        %v3555 = vadd.f32 0.0, %v3554
        %v3556 = vpop.f32.mrb[0].mxu0
        %v3557 = vadd.f32 0.0, %v3556
        %v3558 = vpop.f32.mrb[0].mxu0
        %v3559 = vadd.f32 0.0, %v3558
        %3560 = vmatprep.mubr.bf16.mxu0 %v2924
        %3561 = vmatmul.mubr.bf16.gmra.mrb[0].mxu0 %v2923
        %v3562 = vpop.f32.mrb[0].mxu0
        %v3563 = vadd.f32 0.0, %v3562
        %v3564 = vpop.f32.mrb[0].mxu0
        %v3565 = vadd.f32 0.0, %v3564
        %v3566 = vpop.f32.mrb[0].mxu0
        %v3567 = vadd.f32 0.0, %v3566
        %v3568 = vpop.f32.mrb[0].mxu0
        %v3569 = vadd.f32 0.0, %v3568
        %3570 = vmatprep.mubr.bf16.mxu0 %v2927
        %3571 = vmatmul.mubr.bf16.gmra.mrb[0].mxu0 %v2926
        %v3572 = vpop.f32.mrb[0].mxu0
        %v3573 = vadd.f32 0.0, %v3572
        %v3574 = vpop.f32.mrb[0].mxu0
        %v3575 = vadd.f32 0.0, %v3574
        %v3576 = vpop.f32.mrb[0].mxu0
        %v3577 = vadd.f32 0.0, %v3576
        %v3578 = vpop.f32.mrb[0].mxu0
        %v3579 = vadd.f32 0.0, %v3578
        %3580 = vmatprep.mubr.bf16.mxu0 %v2930
        %3581 = vmatmul.mubr.bf16.gmra.mrb[0].mxu0 %v2929
        %v3582 = vpop.f32.mrb[0].mxu0
        %v3583 = vadd.f32 0.0, %v3582
        %v3584 = vpop.f32.mrb[0].mxu0
        %v3585 = vadd.f32 0.0, %v3584
        %v3586 = vpop.f32.mrb[0].mxu0
        %v3587 = vadd.f32 0.0, %v3586
        %v3588 = vpop.f32.mrb[0].mxu0
        %v3589 = vadd.f32 0.0, %v3588
        %3590 = vmatprep.mubr.bf16.mxu0 %v2933
        %3591 = vmatmul.mubr.bf16.gmra.mrb[0].mxu0 %v2932
        %v3592 = vpop.f32.mrb[0].mxu0
        %v3593 = vadd.f32 0.0, %v3592
        %v3594 = vpop.f32.mrb[0].mxu0
        %v3595 = vadd.f32 0.0, %v3594
        %v3596 = vpop.f32.mrb[0].mxu0
        %v3597 = vadd.f32 0.0, %v3596
        %v3598 = vpop.f32.mrb[0].mxu0
        %v3599 = vadd.f32 0.0, %v3598
        %3600 = vmatprep.mubr.bf16.mxu0 %v2936
        %3601 = vmatmul.mubr.bf16.gmra.mrb[0].mxu0 %v2935
        %v3602 = vpop.f32.mrb[0].mxu0
        %v3603 = vadd.f32 0.0, %v3602
        %v3604 = vpop.f32.mrb[0].mxu0
        %v3605 = vadd.f32 0.0, %v3604
        %v3606 = vpop.f32.mrb[0].mxu0
        %v3607 = vadd.f32 0.0, %v3606
        %v3608 = vpop.f32.mrb[0].mxu0
        %v3609 = vadd.f32 0.0, %v3608
        %3610 = vdwg.mxu0
        %3611 = vmatprep.subr.bf16.mxu0 %v3323
        %3612 = vmatpush1.bf16.msra.mxu0 %v3322
        %3613 = vmatprep.subr.bf16.mxu0 %v3326
        %3614 = vmatpush1.bf16.msra.mxu0 %v3325
        %3615 = vmatprep.subr.bf16.mxu0 %v3329
        %3616 = vmatpush1.bf16.msra.mxu0 %v3328
        %3617 = vmatprep.subr.bf16.mxu0 %v3332
        %3618 = vmatpush1.bf16.msra.mxu0 %v3331
        %3619 = vmatprep.subr.bf16.mxu0 %v3335
        %3620 = vmatpush1.bf16.msra.mxu0 %v3334
        %3621 = vmatprep.subr.bf16.mxu0 %v3338
        %3622 = vmatpush1.bf16.msra.mxu0 %v3337
        %3623 = vmatprep.subr.bf16.mxu0 %v3341
        %3624 = vmatpush1.bf16.msra.mxu0 %v3340
        %3625 = vmatprep.subr.bf16.mxu0 %v3344
        %3626 = vmatpush1.bf16.msra.mxu0 %v3343
        %3627 = vmatprep.subr.bf16.mxu0 0
        %3628 = vmatpush1.bf16.msra.mxu0 0
        %3629 = vmatprep.subr.bf16.mxu0 0
        %3630 = vmatpush1.bf16.msra.mxu0 0
        %3631 = vmatprep.subr.bf16.mxu0 0
        %3632 = vmatpush1.bf16.msra.mxu0 0
        %3633 = vmatprep.subr.bf16.mxu0 0
        %3634 = vmatpush1.bf16.msra.mxu0 0
        %3635 = vmatprep.subr.bf16.mxu0 0
        %3636 = vmatpush1.bf16.msra.mxu0 0
        %3637 = vmatprep.subr.bf16.mxu0 0
        %3638 = vmatpush1.bf16.msra.mxu0 0
        %3639 = vmatprep.subr.bf16.mxu0 0
        %3640 = vmatpush1.bf16.msra.mxu0 0
        %3641 = vmatprep.subr.bf16.mxu0 0
        %3642 = vmatpush1.bf16.msra.mxu0 0
        %3643 = vmatprep.mubr.bf16.mxu0 0
        %3644 = vmatmul.mubr.bf16.gmra.mrb[0].mxu0 %v2892
        %v3645 = vpop.f32.mrb[0].mxu0
        %v3646 = vadd.f32 %v3453, %v3645
        %v3647 = vpop.f32.mrb[0].mxu0
        %v3648 = vadd.f32 %v3455, %v3647
        %v3649 = vpop.f32.mrb[0].mxu0
        %v3650 = vadd.f32 %v3457, %v3649
        %v3651 = vpop.f32.mrb[0].mxu0
        %v3652 = vadd.f32 %v3459, %v3651
        %3653 = vmatprep.mubr.bf16.mxu0 0
        %3654 = vmatmul.mubr.bf16.gmra.mrb[0].mxu0 %v2895
        %v3655 = vpop.f32.mrb[0].mxu0
        %v3656 = vadd.f32 %v3463, %v3655
        %v3657 = vpop.f32.mrb[0].mxu0
        %v3658 = vadd.f32 %v3465, %v3657
        %v3659 = vpop.f32.mrb[0].mxu0
        %v3660 = vadd.f32 %v3467, %v3659
        %v3661 = vpop.f32.mrb[0].mxu0
        %v3662 = vadd.f32 %v3469, %v3661
        %3663 = vmatprep.mubr.bf16.mxu0 0
        %3664 = vmatmul.mubr.bf16.gmra.mrb[0].mxu0 %v2898
        %v3665 = vpop.f32.mrb[0].mxu0
        %v3666 = vadd.f32 %v3473, %v3665
        %v3667 = vpop.f32.mrb[0].mxu0
        %v3668 = vadd.f32 %v3475, %v3667
        %v3669 = vpop.f32.mrb[0].mxu0
        %v3670 = vadd.f32 %v3477, %v3669
        %v3671 = vpop.f32.mrb[0].mxu0
        %v3672 = vadd.f32 %v3479, %v3671
        %3673 = vmatprep.mubr.bf16.mxu0 0
        %3674 = vmatmul.mubr.bf16.gmra.mrb[0].mxu0 %v2901
        %v3675 = vpop.f32.mrb[0].mxu0
        %v3676 = vadd.f32 %v3483, %v3675
        %v3677 = vpop.f32.mrb[0].mxu0
        %v3678 = vadd.f32 %v3485, %v3677
        %v3679 = vpop.f32.mrb[0].mxu0
        %v3680 = vadd.f32 %v3487, %v3679
        %v3681 = vpop.f32.mrb[0].mxu0
        %v3682 = vadd.f32 %v3489, %v3681
        %3683 = vmatprep.mubr.bf16.mxu0 0
        %3684 = vmatmul.mubr.bf16.gmra.mrb[0].mxu0 %v2904
        %v3685 = vpop.f32.mrb[0].mxu0
        %v3686 = vadd.f32 %v3493, %v3685
        %v3687 = vpop.f32.mrb[0].mxu0
        %v3688 = vadd.f32 %v3495, %v3687
        %v3689 = vpop.f32.mrb[0].mxu0
        %v3690 = vadd.f32 %v3497, %v3689
        %v3691 = vpop.f32.mrb[0].mxu0
        %v3692 = vadd.f32 %v3499, %v3691
        %3693 = vmatprep.mubr.bf16.mxu0 0
        %3694 = vmatmul.mubr.bf16.gmra.mrb[0].mxu0 %v2907
        %v3695 = vpop.f32.mrb[0].mxu0
        %v3696 = vadd.f32 %v3503, %v3695
        %v3697 = vpop.f32.mrb[0].mxu0
        %v3698 = vadd.f32 %v3505, %v3697
        %v3699 = vpop.f32.mrb[0].mxu0
        %v3700 = vadd.f32 %v3507, %v3699
        %v3701 = vpop.f32.mrb[0].mxu0
        %v3702 = vadd.f32 %v3509, %v3701
        %3703 = vmatprep.mubr.bf16.mxu0 0
        %3704 = vmatmul.mubr.bf16.gmra.mrb[0].mxu0 %v2910
        %v3705 = vpop.f32.mrb[0].mxu0
        %v3706 = vadd.f32 %v3513, %v3705
        %v3707 = vpop.f32.mrb[0].mxu0
        %v3708 = vadd.f32 %v3515, %v3707
        %v3709 = vpop.f32.mrb[0].mxu0
        %v3710 = vadd.f32 %v3517, %v3709
        %v3711 = vpop.f32.mrb[0].mxu0
        %v3712 = vadd.f32 %v3519, %v3711
        %3713 = vmatprep.mubr.bf16.mxu0 0
        %3714 = vmatmul.mubr.bf16.gmra.mrb[0].mxu0 %v2913
        %v3715 = vpop.f32.mrb[0].mxu0
        %v3716 = vadd.f32 %v3523, %v3715
        %v3717 = vpop.f32.mrb[0].mxu0
        %v3718 = vadd.f32 %v3525, %v3717
        %v3719 = vpop.f32.mrb[0].mxu0
        %v3720 = vadd.f32 %v3527, %v3719
        %v3721 = vpop.f32.mrb[0].mxu0
        %v3722 = vadd.f32 %v3529, %v3721
        %3723 = vmatprep.mubr.bf16.mxu0 0
        %3724 = vmatmul.mubr.bf16.gmra.mrb[0].mxu0 %v2916
        %v3725 = vpop.f32.mrb[0].mxu0
        %v3726 = vadd.f32 %v3533, %v3725
        %v3727 = vpop.f32.mrb[0].mxu0
        %v3728 = vadd.f32 %v3535, %v3727
        %v3729 = vpop.f32.mrb[0].mxu0
        %v3730 = vadd.f32 %v3537, %v3729
        %v3731 = vpop.f32.mrb[0].mxu0
        %v3732 = vadd.f32 %v3539, %v3731
        %3733 = vmatprep.mubr.bf16.mxu0 0
        %3734 = vmatmul.mubr.bf16.gmra.mrb[0].mxu0 %v2919
        %v3735 = vpop.f32.mrb[0].mxu0
        %v3736 = vadd.f32 %v3543, %v3735
        %v3737 = vpop.f32.mrb[0].mxu0
        %v3738 = vadd.f32 %v3545, %v3737
        %v3739 = vpop.f32.mrb[0].mxu0
        %v3740 = vadd.f32 %v3547, %v3739
        %v3741 = vpop.f32.mrb[0].mxu0
        %v3742 = vadd.f32 %v3549, %v3741
        %3743 = vmatprep.mubr.bf16.mxu0 0
        %3744 = vmatmul.mubr.bf16.gmra.mrb[0].mxu0 %v2922
        %v3745 = vpop.f32.mrb[0].mxu0
        %v3746 = vadd.f32 %v3553, %v3745
        %v3747 = vpop.f32.mrb[0].mxu0
        %v3748 = vadd.f32 %v3555, %v3747
        %v3749 = vpop.f32.mrb[0].mxu0
        %v3750 = vadd.f32 %v3557, %v3749
        %v3751 = vpop.f32.mrb[0].mxu0
        %v3752 = vadd.f32 %v3559, %v3751
        %3753 = vmatprep.mubr.bf16.mxu0 0
        %3754 = vmatmul.mubr.bf16.gmra.mrb[0].mxu0 %v2925
        %v3755 = vpop.f32.mrb[0].mxu0
        %v3756 = vadd.f32 %v3563, %v3755
        %v3757 = vpop.f32.mrb[0].mxu0
        %v3758 = vadd.f32 %v3565, %v3757
        %v3759 = vpop.f32.mrb[0].mxu0
        %v3760 = vadd.f32 %v3567, %v3759
        %v3761 = vpop.f32.mrb[0].mxu0
        %v3762 = vadd.f32 %v3569, %v3761
        %3763 = vmatprep.mubr.bf16.mxu0 0
        %3764 = vmatmul.mubr.bf16.gmra.mrb[0].mxu0 %v2928
        %v3765 = vpop.f32.mrb[0].mxu0
        %v3766 = vadd.f32 %v3573, %v3765
        %v3767 = vpop.f32.mrb[0].mxu0
        %v3768 = vadd.f32 %v3575, %v3767
        %v3769 = vpop.f32.mrb[0].mxu0
        %v3770 = vadd.f32 %v3577, %v3769
        %v3771 = vpop.f32.mrb[0].mxu0
        %v3772 = vadd.f32 %v3579, %v3771
        %3773 = vmatprep.mubr.bf16.mxu0 0
        %3774 = vmatmul.mubr.bf16.gmra.mrb[0].mxu0 %v2931
        %v3775 = vpop.f32.mrb[0].mxu0
        %v3776 = vadd.f32 %v3583, %v3775
        %v3777 = vpop.f32.mrb[0].mxu0
        %v3778 = vadd.f32 %v3585, %v3777
        %v3779 = vpop.f32.mrb[0].mxu0
        %v3780 = vadd.f32 %v3587, %v3779
        %v3781 = vpop.f32.mrb[0].mxu0
        %v3782 = vadd.f32 %v3589, %v3781
        %3783 = vmatprep.mubr.bf16.mxu0 0
        %3784 = vmatmul.mubr.bf16.gmra.mrb[0].mxu0 %v2934
        %v3785 = vpop.f32.mrb[0].mxu0
        %v3786 = vadd.f32 %v3593, %v3785
        %v3787 = vpop.f32.mrb[0].mxu0
        %v3788 = vadd.f32 %v3595, %v3787
        %v3789 = vpop.f32.mrb[0].mxu0
        %v3790 = vadd.f32 %v3597, %v3789
        %v3791 = vpop.f32.mrb[0].mxu0
        %v3792 = vadd.f32 %v3599, %v3791
        %3793 = vmatprep.mubr.bf16.mxu0 0
        %3794 = vmatmul.mubr.bf16.gmra.mrb[0].mxu0 %v2937
        %v3795 = vpop.f32.mrb[0].mxu0
        %v3796 = vadd.f32 %v3603, %v3795
        %v3797 = vpop.f32.mrb[0].mxu0
        %v3798 = vadd.f32 %v3605, %v3797
        %v3799 = vpop.f32.mrb[0].mxu0
        %v3800 = vadd.f32 %v3607, %v3799
        %v3801 = vpop.f32.mrb[0].mxu0
        %v3802 = vadd.f32 %v3609, %v3801
        %3803 = vdwg.mxu0
        %3804 = vmatprep.subr.bf16.mxu0 0
        %3805 = vmatpush1.bf16.msra.mxu0 %v3276
        %3806 = vmatprep.subr.bf16.mxu0 0
        %3807 = vmatpush1.bf16.msra.mxu0 %v3279
        %3808 = vmatprep.subr.bf16.mxu0 0
        %3809 = vmatpush1.bf16.msra.mxu0 %v3282
        %3810 = vmatprep.subr.bf16.mxu0 0
        %3811 = vmatpush1.bf16.msra.mxu0 %v3285
        %3812 = vmatprep.subr.bf16.mxu0 0
        %3813 = vmatpush1.bf16.msra.mxu0 %v3288
        %3814 = vmatprep.subr.bf16.mxu0 0
        %3815 = vmatpush1.bf16.msra.mxu0 %v3291
        %3816 = vmatprep.subr.bf16.mxu0 0
        %3817 = vmatpush1.bf16.msra.mxu0 %v3294
        %3818 = vmatprep.subr.bf16.mxu0 0
        %3819 = vmatpush1.bf16.msra.mxu0 %v3297
        %3820 = vmatprep.subr.bf16.mxu0 0
        %3821 = vmatpush1.bf16.msra.mxu0 %v3300
        %3822 = vmatprep.subr.bf16.mxu0 0
        %3823 = vmatpush1.bf16.msra.mxu0 %v3303
        %3824 = vmatprep.subr.bf16.mxu0 0
        %3825 = vmatpush1.bf16.msra.mxu0 %v3306
        %3826 = vmatprep.subr.bf16.mxu0 0
        %3827 = vmatpush1.bf16.msra.mxu0 %v3309
        %3828 = vmatprep.subr.bf16.mxu0 0
        %3829 = vmatpush1.bf16.msra.mxu0 %v3312
        %3830 = vmatprep.subr.bf16.mxu0 0
        %3831 = vmatpush1.bf16.msra.mxu0 %v3315
        %3832 = vmatprep.subr.bf16.mxu0 0
        %3833 = vmatpush1.bf16.msra.mxu0 %v3318
        %3834 = vmatprep.subr.bf16.mxu0 0
        %3835 = vmatpush1.bf16.msra.mxu0 %v3321
        %3836 = vmatprep.mubr.bf16.mxu0 %v2891
        %3837 = vmatmul.mubr.bf16.gmra.mrb[0].mxu0 %v2890
        %v3838 = vpop.f32.mrb[0].mxu0
        %v3839 = vadd.f32 0.0, %v3838
        %v3840 = vpop.f32.mrb[0].mxu0
        %v3841 = vpop.f32.mrb[0].mxu0
        %v3842 = vadd.f32 0.0, %v3841
        %v3843 = vpop.f32.mrb[0].mxu0
        %3844 = vmatprep.mubr.bf16.mxu0 %v2894
        %3845 = vmatmul.mubr.bf16.gmra.mrb[0].mxu0 %v2893
        %v3846 = vpop.f32.mrb[0].mxu0
        %v3847 = vadd.f32 0.0, %v3846
        %v3848 = vpop.f32.mrb[0].mxu0
        %v3849 = vpop.f32.mrb[0].mxu0
        %v3850 = vadd.f32 0.0, %v3849
        %v3851 = vpop.f32.mrb[0].mxu0
        %3852 = vmatprep.mubr.bf16.mxu0 %v2897
        %3853 = vmatmul.mubr.bf16.gmra.mrb[0].mxu0 %v2896
        %v3854 = vpop.f32.mrb[0].mxu0
        %v3855 = vadd.f32 0.0, %v3854
        %v3856 = vpop.f32.mrb[0].mxu0
        %v3857 = vpop.f32.mrb[0].mxu0
        %v3858 = vadd.f32 0.0, %v3857
        %v3859 = vpop.f32.mrb[0].mxu0
        %3860 = vmatprep.mubr.bf16.mxu0 %v2900
        %3861 = vmatmul.mubr.bf16.gmra.mrb[0].mxu0 %v2899
        %v3862 = vpop.f32.mrb[0].mxu0
        %v3863 = vadd.f32 0.0, %v3862
        %v3864 = vpop.f32.mrb[0].mxu0
        %v3865 = vpop.f32.mrb[0].mxu0
        %v3866 = vadd.f32 0.0, %v3865
        %v3867 = vpop.f32.mrb[0].mxu0
        %3868 = vmatprep.mubr.bf16.mxu0 %v2903
        %3869 = vmatmul.mubr.bf16.gmra.mrb[0].mxu0 %v2902
        %v3870 = vpop.f32.mrb[0].mxu0
        %v3871 = vadd.f32 0.0, %v3870
        %v3872 = vpop.f32.mrb[0].mxu0
        %v3873 = vpop.f32.mrb[0].mxu0
        %v3874 = vadd.f32 0.0, %v3873
        %v3875 = vpop.f32.mrb[0].mxu0
        %3876 = vmatprep.mubr.bf16.mxu0 %v2906
        %3877 = vmatmul.mubr.bf16.gmra.mrb[0].mxu0 %v2905
        %v3878 = vpop.f32.mrb[0].mxu0
        %v3879 = vadd.f32 0.0, %v3878
        %v3880 = vpop.f32.mrb[0].mxu0
        %v3881 = vpop.f32.mrb[0].mxu0
        %v3882 = vadd.f32 0.0, %v3881
        %v3883 = vpop.f32.mrb[0].mxu0
        %3884 = vmatprep.mubr.bf16.mxu0 %v2909
        %3885 = vmatmul.mubr.bf16.gmra.mrb[0].mxu0 %v2908
        %v3886 = vpop.f32.mrb[0].mxu0
        %v3887 = vadd.f32 0.0, %v3886
        %v3888 = vpop.f32.mrb[0].mxu0
        %v3889 = vpop.f32.mrb[0].mxu0
        %v3890 = vadd.f32 0.0, %v3889
        %v3891 = vpop.f32.mrb[0].mxu0
        %3892 = vmatprep.mubr.bf16.mxu0 %v2912
        %3893 = vmatmul.mubr.bf16.gmra.mrb[0].mxu0 %v2911
        %v3894 = vpop.f32.mrb[0].mxu0
        %v3895 = vadd.f32 0.0, %v3894
        %v3896 = vpop.f32.mrb[0].mxu0
        %v3897 = vpop.f32.mrb[0].mxu0
        %v3898 = vadd.f32 0.0, %v3897
        %v3899 = vpop.f32.mrb[0].mxu0
        %3900 = vmatprep.mubr.bf16.mxu0 %v2915
        %3901 = vmatmul.mubr.bf16.gmra.mrb[0].mxu0 %v2914
        %v3902 = vpop.f32.mrb[0].mxu0
        %v3903 = vadd.f32 0.0, %v3902
        %v3904 = vpop.f32.mrb[0].mxu0
        %v3905 = vpop.f32.mrb[0].mxu0
        %v3906 = vadd.f32 0.0, %v3905
        %v3907 = vpop.f32.mrb[0].mxu0
        %3908 = vmatprep.mubr.bf16.mxu0 %v2918
        %3909 = vmatmul.mubr.bf16.gmra.mrb[0].mxu0 %v2917
        %v3910 = vpop.f32.mrb[0].mxu0
        %v3911 = vadd.f32 0.0, %v3910
        %v3912 = vpop.f32.mrb[0].mxu0
        %v3913 = vpop.f32.mrb[0].mxu0
        %v3914 = vadd.f32 0.0, %v3913
        %v3915 = vpop.f32.mrb[0].mxu0
        %3916 = vmatprep.mubr.bf16.mxu0 %v2921
        %3917 = vmatmul.mubr.bf16.gmra.mrb[0].mxu0 %v2920
        %v3918 = vpop.f32.mrb[0].mxu0
        %v3919 = vadd.f32 0.0, %v3918
        %v3920 = vpop.f32.mrb[0].mxu0
        %v3921 = vpop.f32.mrb[0].mxu0
        %v3922 = vadd.f32 0.0, %v3921
        %v3923 = vpop.f32.mrb[0].mxu0
        %3924 = vmatprep.mubr.bf16.mxu0 %v2924
        %3925 = vmatmul.mubr.bf16.gmra.mrb[0].mxu0 %v2923
        %v3926 = vpop.f32.mrb[0].mxu0
        %v3927 = vadd.f32 0.0, %v3926
        %v3928 = vpop.f32.mrb[0].mxu0
        %v3929 = vpop.f32.mrb[0].mxu0
        %v3930 = vadd.f32 0.0, %v3929
        %v3931 = vpop.f32.mrb[0].mxu0
        %3932 = vmatprep.mubr.bf16.mxu0 %v2927
        %3933 = vmatmul.mubr.bf16.gmra.mrb[0].mxu0 %v2926
        %v3934 = vpop.f32.mrb[0].mxu0
        %v3935 = vadd.f32 0.0, %v3934
        %v3936 = vpop.f32.mrb[0].mxu0
        %v3937 = vpop.f32.mrb[0].mxu0
        %v3938 = vadd.f32 0.0, %v3937
        %v3939 = vpop.f32.mrb[0].mxu0
        %3940 = vmatprep.mubr.bf16.mxu0 %v2930
        %3941 = vmatmul.mubr.bf16.gmra.mrb[0].mxu0 %v2929
        %v3942 = vpop.f32.mrb[0].mxu0
        %v3943 = vadd.f32 0.0, %v3942
        %v3944 = vpop.f32.mrb[0].mxu0
        %v3945 = vpop.f32.mrb[0].mxu0
        %v3946 = vadd.f32 0.0, %v3945
        %v3947 = vpop.f32.mrb[0].mxu0
        %3948 = vmatprep.mubr.bf16.mxu0 %v2933
        %3949 = vmatmul.mubr.bf16.gmra.mrb[0].mxu0 %v2932
        %v3950 = vpop.f32.mrb[0].mxu0
        %v3951 = vadd.f32 0.0, %v3950
        %v3952 = vpop.f32.mrb[0].mxu0
        %v3953 = vpop.f32.mrb[0].mxu0
        %v3954 = vadd.f32 0.0, %v3953
        %v3955 = vpop.f32.mrb[0].mxu0
        %3956 = vmatprep.mubr.bf16.mxu0 %v2936
        %3957 = vmatmul.mubr.bf16.gmra.mrb[0].mxu0 %v2935
        %v3958 = vpop.f32.mrb[0].mxu0
        %v3959 = vadd.f32 0.0, %v3958
        %v3960 = vpop.f32.mrb[0].mxu0
        %v3961 = vpop.f32.mrb[0].mxu0
        %v3962 = vadd.f32 0.0, %v3961
        %v3963 = vpop.f32.mrb[0].mxu0
        %3964 = vdwg.mxu0
        %3965 = vmatprep.subr.bf16.mxu0 0
        %3966 = vmatpush1.bf16.msra.mxu0 %v3324
        %3967 = vmatprep.subr.bf16.mxu0 0
        %3968 = vmatpush1.bf16.msra.mxu0 %v3327
        %3969 = vmatprep.subr.bf16.mxu0 0
        %3970 = vmatpush1.bf16.msra.mxu0 %v3330
        %3971 = vmatprep.subr.bf16.mxu0 0
        %3972 = vmatpush1.bf16.msra.mxu0 %v3333
        %3973 = vmatprep.subr.bf16.mxu0 0
        %3974 = vmatpush1.bf16.msra.mxu0 %v3336
        %3975 = vmatprep.subr.bf16.mxu0 0
        %3976 = vmatpush1.bf16.msra.mxu0 %v3339
        %3977 = vmatprep.subr.bf16.mxu0 0
        %3978 = vmatpush1.bf16.msra.mxu0 %v3342
        %3979 = vmatprep.subr.bf16.mxu0 0
        %3980 = vmatpush1.bf16.msra.mxu0 %v3345
        %3981 = vmatprep.subr.bf16.mxu0 0
        %3982 = vmatpush1.bf16.msra.mxu0 0
        %3983 = vmatprep.subr.bf16.mxu0 0
        %3984 = vmatpush1.bf16.msra.mxu0 0
        %3985 = vmatprep.subr.bf16.mxu0 0
        %3986 = vmatpush1.bf16.msra.mxu0 0
        %3987 = vmatprep.subr.bf16.mxu0 0
        %3988 = vmatpush1.bf16.msra.mxu0 0
        %3989 = vmatprep.subr.bf16.mxu0 0
        %3990 = vmatpush1.bf16.msra.mxu0 0
        %3991 = vmatprep.subr.bf16.mxu0 0
        %3992 = vmatpush1.bf16.msra.mxu0 0
        %3993 = vmatprep.subr.bf16.mxu0 0
        %3994 = vmatpush1.bf16.msra.mxu0 0
        %3995 = vmatprep.subr.bf16.mxu0 0
        %3996 = vmatpush1.bf16.msra.mxu0 0
        %3997 = vmatprep.mubr.bf16.mxu0 0
        %3998 = vmatmul.mubr.bf16.gmra.mrb[0].mxu0 %v2892
        %v3999 = vpop.f32.mrb[0].mxu0
        %v4000 = vadd.f32 %v3839, %v3999
        %v4001 = vpop.f32.mrb[0].mxu0
        %v4002 = vpop.f32.mrb[0].mxu0
        %v4003 = vadd.f32 %v3842, %v4002
        %v4004 = vpop.f32.mrb[0].mxu0
        %4005 = vmatprep.mubr.bf16.mxu0 0
        %4006 = vmatmul.mubr.bf16.gmra.mrb[0].mxu0 %v2895
        %v4007 = vpop.f32.mrb[0].mxu0
        %v4008 = vadd.f32 %v3847, %v4007
        %v4009 = vpop.f32.mrb[0].mxu0
        %v4010 = vpop.f32.mrb[0].mxu0
        %v4011 = vadd.f32 %v3850, %v4010
        %v4012 = vpop.f32.mrb[0].mxu0
        %4013 = vmatprep.mubr.bf16.mxu0 0
        %4014 = vmatmul.mubr.bf16.gmra.mrb[0].mxu0 %v2898
        %v4015 = vpop.f32.mrb[0].mxu0
        %v4016 = vadd.f32 %v3855, %v4015
        %v4017 = vpop.f32.mrb[0].mxu0
        %v4018 = vpop.f32.mrb[0].mxu0
        %v4019 = vadd.f32 %v3858, %v4018
        %v4020 = vpop.f32.mrb[0].mxu0
        %4021 = vmatprep.mubr.bf16.mxu0 0
        %4022 = vmatmul.mubr.bf16.gmra.mrb[0].mxu0 %v2901
        %v4023 = vpop.f32.mrb[0].mxu0
        %v4024 = vadd.f32 %v3863, %v4023
        %v4025 = vpop.f32.mrb[0].mxu0
        %v4026 = vpop.f32.mrb[0].mxu0
        %v4027 = vadd.f32 %v3866, %v4026
        %v4028 = vpop.f32.mrb[0].mxu0
        %4029 = vmatprep.mubr.bf16.mxu0 0
        %4030 = vmatmul.mubr.bf16.gmra.mrb[0].mxu0 %v2904
        %v4031 = vpop.f32.mrb[0].mxu0
        %v4032 = vadd.f32 %v3871, %v4031
        %v4033 = vpop.f32.mrb[0].mxu0
        %v4034 = vpop.f32.mrb[0].mxu0
        %v4035 = vadd.f32 %v3874, %v4034
        %v4036 = vpop.f32.mrb[0].mxu0
        %4037 = vmatprep.mubr.bf16.mxu0 0
        %4038 = vmatmul.mubr.bf16.gmra.mrb[0].mxu0 %v2907
        %v4039 = vpop.f32.mrb[0].mxu0
        %v4040 = vadd.f32 %v3879, %v4039
        %v4041 = vpop.f32.mrb[0].mxu0
        %v4042 = vpop.f32.mrb[0].mxu0
        %v4043 = vadd.f32 %v3882, %v4042
        %v4044 = vpop.f32.mrb[0].mxu0
        %4045 = vmatprep.mubr.bf16.mxu0 0
        %4046 = vmatmul.mubr.bf16.gmra.mrb[0].mxu0 %v2910
        %v4047 = vpop.f32.mrb[0].mxu0
        %v4048 = vadd.f32 %v3887, %v4047
        %v4049 = vpop.f32.mrb[0].mxu0
        %v4050 = vpop.f32.mrb[0].mxu0
        %v4051 = vadd.f32 %v3890, %v4050
        %v4052 = vpop.f32.mrb[0].mxu0
        %4053 = vmatprep.mubr.bf16.mxu0 0
        %4054 = vmatmul.mubr.bf16.gmra.mrb[0].mxu0 %v2913
        %v4055 = vpop.f32.mrb[0].mxu0
        %v4056 = vadd.f32 %v3895, %v4055
        %v4057 = vpop.f32.mrb[0].mxu0
        %v4058 = vpop.f32.mrb[0].mxu0
        %v4059 = vadd.f32 %v3898, %v4058
        %v4060 = vpop.f32.mrb[0].mxu0
        %4061 = vmatprep.mubr.bf16.mxu0 0
        %4062 = vmatmul.mubr.bf16.gmra.mrb[0].mxu0 %v2916
        %v4063 = vpop.f32.mrb[0].mxu0
        %v4064 = vadd.f32 %v3903, %v4063
        %v4065 = vpop.f32.mrb[0].mxu0
        %v4066 = vpop.f32.mrb[0].mxu0
        %v4067 = vadd.f32 %v3906, %v4066
        %v4068 = vpop.f32.mrb[0].mxu0
        %4069 = vmatprep.mubr.bf16.mxu0 0
        %4070 = vmatmul.mubr.bf16.gmra.mrb[0].mxu0 %v2919
        %v4071 = vpop.f32.mrb[0].mxu0
        %v4072 = vadd.f32 %v3911, %v4071
        %v4073 = vpop.f32.mrb[0].mxu0
        %v4074 = vpop.f32.mrb[0].mxu0
        %v4075 = vadd.f32 %v3914, %v4074
        %v4076 = vpop.f32.mrb[0].mxu0
        %4077 = vmatprep.mubr.bf16.mxu0 0
        %4078 = vmatmul.mubr.bf16.gmra.mrb[0].mxu0 %v2922
        %v4079 = vpop.f32.mrb[0].mxu0
        %v4080 = vadd.f32 %v3919, %v4079
        %v4081 = vpop.f32.mrb[0].mxu0
        %v4082 = vpop.f32.mrb[0].mxu0
        %v4083 = vadd.f32 %v3922, %v4082
        %v4084 = vpop.f32.mrb[0].mxu0
        %4085 = vmatprep.mubr.bf16.mxu0 0
        %4086 = vmatmul.mubr.bf16.gmra.mrb[0].mxu0 %v2925
        %v4087 = vpop.f32.mrb[0].mxu0
        %v4088 = vadd.f32 %v3927, %v4087
        %v4089 = vpop.f32.mrb[0].mxu0
        %v4090 = vpop.f32.mrb[0].mxu0
        %v4091 = vadd.f32 %v3930, %v4090
        %v4092 = vpop.f32.mrb[0].mxu0
        %4093 = vmatprep.mubr.bf16.mxu0 0
        %4094 = vmatmul.mubr.bf16.gmra.mrb[0].mxu0 %v2928
        %v4095 = vpop.f32.mrb[0].mxu0
        %v4096 = vadd.f32 %v3935, %v4095
        %v4097 = vpop.f32.mrb[0].mxu0
        %v4098 = vpop.f32.mrb[0].mxu0
        %v4099 = vadd.f32 %v3938, %v4098
        %v4100 = vpop.f32.mrb[0].mxu0
        %4101 = vmatprep.mubr.bf16.mxu0 0
        %4102 = vmatmul.mubr.bf16.gmra.mrb[0].mxu0 %v2931
        %v4103 = vpop.f32.mrb[0].mxu0
        %v4104 = vadd.f32 %v3943, %v4103
        %v4105 = vpop.f32.mrb[0].mxu0
        %v4106 = vpop.f32.mrb[0].mxu0
        %v4107 = vadd.f32 %v3946, %v4106
        %v4108 = vpop.f32.mrb[0].mxu0
        %4109 = vmatprep.mubr.bf16.mxu0 0
        %4110 = vmatmul.mubr.bf16.gmra.mrb[0].mxu0 %v2934
        %v4111 = vpop.f32.mrb[0].mxu0
        %v4112 = vadd.f32 %v3951, %v4111
        %v4113 = vpop.f32.mrb[0].mxu0
        %v4114 = vpop.f32.mrb[0].mxu0
        %v4115 = vadd.f32 %v3954, %v4114
        %v4116 = vpop.f32.mrb[0].mxu0
        %4117 = vmatprep.mubr.bf16.mxu0 0
        %4118 = vmatmul.mubr.bf16.gmra.mrb[0].mxu0 %v2937
        %v4119 = vpop.f32.mrb[0].mxu0
        %v4120 = vadd.f32 %v3959, %v4119
        %v4121 = vpop.f32.mrb[0].mxu0
        %v4122 = vpop.f32.mrb[0].mxu0
        %v4123 = vadd.f32 %v3962, %v4122
        %v4124 = vpop.f32.mrb[0].mxu0
        %4125 = vdwg.mxu0
        %v4126 = vrot.slane %v3646, 7
        %v4127 = vrot.slane %v3650, 7
        %v4128 = vrot.slane %v3656, 7
        %v4129 = vrot.slane %v3660, 7
        %v4130 = vrot.slane %v3666, 7
        %v4131 = vrot.slane %v3670, 7
        %v4132 = vrot.slane %v3676, 7
        %v4133 = vrot.slane %v3680, 7
        %v4134 = vrot.slane %v3686, 7
        %v4135 = vrot.slane %v3690, 7
        %v4136 = vrot.slane %v3696, 7
        %v4137 = vrot.slane %v3700, 7
        %v4138 = vrot.slane %v3706, 7
        %v4139 = vrot.slane %v3710, 7
        %v4140 = vrot.slane %v3716, 7
        %v4141 = vrot.slane %v3720, 7
        %v4142 = vrot.slane %v3726, 7
        %v4143 = vrot.slane %v3730, 7
        %v4144 = vrot.slane %v3736, 7
        %v4145 = vrot.slane %v3740, 7
        %v4146 = vrot.slane %v3746, 7
        %v4147 = vrot.slane %v3750, 7
        %v4148 = vrot.slane %v3756, 7
        %v4149 = vrot.slane %v3760, 7
        %v4150 = vrot.slane %v3766, 7
        %v4151 = vrot.slane %v3770, 7
        %v4152 = vrot.slane %v3776, 7
        %v4153 = vrot.slane %v3780, 7
        %v4154 = vrot.slane %v3786, 7
        %v4155 = vrot.slane %v3790, 7
        %v4156 = vrot.slane %v3796, 7
        %v4157 = vrot.slane %v3800, 7
        %v4158 = vsel %vm2362, %v4156, %v4157
        %v4159 = vsel %vm2362, %v4155, %v4156
        %v4160 = vsel %vm2362, %v4154, %v4155
        %v4161 = vsel %vm2362, %v4153, %v4154
        %v4162 = vsel %vm2362, %v4152, %v4153
        %v4163 = vsel %vm2362, %v4151, %v4152
        %v4164 = vsel %vm2362, %v4150, %v4151
        %v4165 = vsel %vm2362, %v4149, %v4150
        %v4166 = vsel %vm2362, %v4148, %v4149
        %v4167 = vsel %vm2362, %v4147, %v4148
        %v4168 = vsel %vm2362, %v4146, %v4147
        %v4169 = vsel %vm2362, %v4145, %v4146
        %v4170 = vsel %vm2362, %v4144, %v4145
        %v4171 = vsel %vm2362, %v4143, %v4144
        %v4172 = vsel %vm2362, %v4142, %v4143
        %v4173 = vsel %vm2362, %v4141, %v4142
        %v4174 = vsel %vm2362, %v4140, %v4141
        %v4175 = vsel %vm2362, %v4139, %v4140
        %v4176 = vsel %vm2362, %v4138, %v4139
        %v4177 = vsel %vm2362, %v4137, %v4138
        %v4178 = vsel %vm2362, %v4136, %v4137
        %v4179 = vsel %vm2362, %v4135, %v4136
        %v4180 = vsel %vm2362, %v4134, %v4135
        %v4181 = vsel %vm2362, %v4133, %v4134
        %v4182 = vsel %vm2362, %v4132, %v4133
        %v4183 = vsel %vm2362, %v4131, %v4132
        %v4184 = vsel %vm2362, %v4130, %v4131
        %v4185 = vsel %vm2362, %v4129, %v4130
        %v4186 = vsel %vm2362, %v4128, %v4129
        %v4187 = vsel %vm2362, %v4127, %v4128
        %v4188 = vsel %vm2362, %v4126, %v4127
        %v4189 = vsel %vm2362, %v4157, %v4126
        %v4190 = vsel %vm2427, %v4189, 0.0
        %v4191 = vsel %vm2428, %v4188, 0.0
        %v4192 = vsel %vm2429, %v4187, 0.0
        %v4193 = vsel %vm2430, %v4186, 0.0
        %v4194 = vsel %vm2431, %v4185, 0.0
        %v4195 = vsel %vm2432, %v4184, 0.0
        %v4196 = vsel %vm2433, %v4183, 0.0
        %v4197 = vsel %vm2434, %v4182, 0.0
        %v4198 = vsel %vm2435, %v4181, 0.0
        %v4199 = vsel %vm2436, %v4180, 0.0
        %v4200 = vsel %vm2437, %v4179, 0.0
        %v4201 = vsel %vm2438, %v4178, 0.0
        %v4202 = vsel %vm2439, %v4177, 0.0
        %v4203 = vsel %vm2440, %v4176, 0.0
        %v4204 = vsel %vm2441, %v4175, 0.0
        %v4205 = vsel %vm2442, %v4174, 0.0
        %v4206 = vsel %vm2443, %v4173, 0.0
        %v4207 = vsel %vm2444, %v4172, 0.0
        %v4208 = vsel %vm2445, %v4171, 0.0
        %v4209 = vsel %vm2446, %v4170, 0.0
        %v4210 = vsel %vm2447, %v4169, 0.0
        %v4211 = vsel %vm2448, %v4168, 0.0
        %v4212 = vsel %vm2449, %v4167, 0.0
        %v4213 = vsel %vm2450, %v4166, 0.0
        %v4214 = vsel %vm2451, %v4165, 0.0
        %v4215 = vsel %vm2452, %v4164, 0.0
        %v4216 = vsel %vm2453, %v4163, 0.0
        %v4217 = vsel %vm2454, %v4162, 0.0
        %v4218 = vsel %vm2455, %v4161, 0.0
        %v4219 = vsel %vm2456, %v4160, 0.0
        %v4220 = vsel %vm2457, %v4159, 0.0
        %v4221 = vsel %vm2458, %v4158, 0.0
        %v4222 = vrot.slane %v4000, 1
        %v4223 = vrot.slane %v4003, 1
        %v4224 = vrot.slane %v4008, 1
        %v4225 = vrot.slane %v4011, 1
        %v4226 = vrot.slane %v4016, 1
        %v4227 = vrot.slane %v4019, 1
        %v4228 = vrot.slane %v4024, 1
        %v4229 = vrot.slane %v4027, 1
        %v4230 = vrot.slane %v4032, 1
        %v4231 = vrot.slane %v4035, 1
        %v4232 = vrot.slane %v4040, 1
        %v4233 = vrot.slane %v4043, 1
        %v4234 = vrot.slane %v4048, 1
        %v4235 = vrot.slane %v4051, 1
        %v4236 = vrot.slane %v4056, 1
        %v4237 = vrot.slane %v4059, 1
        %v4238 = vrot.slane %v4064, 1
        %v4239 = vrot.slane %v4067, 1
        %v4240 = vrot.slane %v4072, 1
        %v4241 = vrot.slane %v4075, 1
        %v4242 = vrot.slane %v4080, 1
        %v4243 = vrot.slane %v4083, 1
        %v4244 = vrot.slane %v4088, 1
        %v4245 = vrot.slane %v4091, 1
        %v4246 = vrot.slane %v4096, 1
        %v4247 = vrot.slane %v4099, 1
        %v4248 = vrot.slane %v4104, 1
        %v4249 = vrot.slane %v4107, 1
        %v4250 = vrot.slane %v4112, 1
        %v4251 = vrot.slane %v4115, 1
        %v4252 = vrot.slane %v4120, 1
        %v4253 = vrot.slane %v4123, 1
        %v4254 = vsel %vm2523, %v4252, %v4253
        %v4255 = vsel %vm2523, %v4251, %v4252
        %v4256 = vsel %vm2523, %v4250, %v4251
        %v4257 = vsel %vm2523, %v4249, %v4250
        %v4258 = vsel %vm2523, %v4248, %v4249
        %v4259 = vsel %vm2523, %v4247, %v4248
        %v4260 = vsel %vm2523, %v4246, %v4247
        %v4261 = vsel %vm2523, %v4245, %v4246
        %v4262 = vsel %vm2523, %v4244, %v4245
        %v4263 = vsel %vm2523, %v4243, %v4244
        %v4264 = vsel %vm2523, %v4242, %v4243
        %v4265 = vsel %vm2523, %v4241, %v4242
        %v4266 = vsel %vm2523, %v4240, %v4241
        %v4267 = vsel %vm2523, %v4239, %v4240
        %v4268 = vsel %vm2523, %v4238, %v4239
        %v4269 = vsel %vm2523, %v4237, %v4238
        %v4270 = vsel %vm2523, %v4236, %v4237
        %v4271 = vsel %vm2523, %v4235, %v4236
        %v4272 = vsel %vm2523, %v4234, %v4235
        %v4273 = vsel %vm2523, %v4233, %v4234
        %v4274 = vsel %vm2523, %v4232, %v4233
        %v4275 = vsel %vm2523, %v4231, %v4232
        %v4276 = vsel %vm2523, %v4230, %v4231
        %v4277 = vsel %vm2523, %v4229, %v4230
        %v4278 = vsel %vm2523, %v4228, %v4229
        %v4279 = vsel %vm2523, %v4227, %v4228
        %v4280 = vsel %vm2523, %v4226, %v4227
        %v4281 = vsel %vm2523, %v4225, %v4226
        %v4282 = vsel %vm2523, %v4224, %v4225
        %v4283 = vsel %vm2523, %v4223, %v4224
        %v4284 = vsel %vm2523, %v4222, %v4223
        %v4285 = vsel %vm2523, %v4253, %v4222
        %v4286 = vsel %vm2588, %v4284, 0.0
        %v4287 = vsel %vm2589, %v4283, 0.0
        %v4288 = vsel %vm2590, %v4282, 0.0
        %v4289 = vsel %vm2591, %v4281, 0.0
        %v4290 = vsel %vm2592, %v4280, 0.0
        %v4291 = vsel %vm2593, %v4279, 0.0
        %v4292 = vsel %vm2594, %v4278, 0.0
        %v4293 = vsel %vm2595, %v4277, 0.0
        %v4294 = vsel %vm2596, %v4276, 0.0
        %v4295 = vsel %vm2597, %v4275, 0.0
        %v4296 = vsel %vm2598, %v4274, 0.0
        %v4297 = vsel %vm2599, %v4273, 0.0
        %v4298 = vsel %vm2600, %v4272, 0.0
        %v4299 = vsel %vm2601, %v4271, 0.0
        %v4300 = vsel %vm2602, %v4270, 0.0
        %v4301 = vsel %vm2603, %v4269, 0.0
        %v4302 = vsel %vm2604, %v4268, 0.0
        %v4303 = vsel %vm2605, %v4267, 0.0
        %v4304 = vsel %vm2606, %v4266, 0.0
        %v4305 = vsel %vm2607, %v4265, 0.0
        %v4306 = vsel %vm2608, %v4264, 0.0
        %v4307 = vsel %vm2609, %v4263, 0.0
        %v4308 = vsel %vm2610, %v4262, 0.0
        %v4309 = vsel %vm2611, %v4261, 0.0
        %v4310 = vsel %vm2612, %v4260, 0.0
        %v4311 = vsel %vm2613, %v4259, 0.0
        %v4312 = vsel %vm2614, %v4258, 0.0
        %v4313 = vsel %vm2615, %v4257, 0.0
        %v4314 = vsel %vm2616, %v4256, 0.0
        %v4315 = vsel %vm2617, %v4255, 0.0
        %v4316 = vsel %vm2618, %v4254, 0.0
        %v4317 = vsel %vm2619, %v4285, 0.0
        %v4318 = vadd.f32 %v4190, %v3648
        %v4319 = vadd.f32 %v4191, %v3652
        %v4320 = vadd.f32 %v4192, %v3658
        %v4321 = vadd.f32 %v4193, %v3662
        %v4322 = vadd.f32 %v4194, %v3668
        %v4323 = vadd.f32 %v4195, %v3672
        %v4324 = vadd.f32 %v4196, %v3678
        %v4325 = vadd.f32 %v4197, %v3682
        %v4326 = vadd.f32 %v4198, %v3688
        %v4327 = vadd.f32 %v4199, %v3692
        %v4328 = vadd.f32 %v4200, %v3698
        %v4329 = vadd.f32 %v4201, %v3702
        %v4330 = vadd.f32 %v4202, %v3708
        %v4331 = vadd.f32 %v4203, %v3712
        %v4332 = vadd.f32 %v4204, %v3718
        %v4333 = vadd.f32 %v4205, %v3722
        %v4334 = vadd.f32 %v4206, %v3728
        %v4335 = vadd.f32 %v4207, %v3732
        %v4336 = vadd.f32 %v4208, %v3738
        %v4337 = vadd.f32 %v4209, %v3742
        %v4338 = vadd.f32 %v4210, %v3748
        %v4339 = vadd.f32 %v4211, %v3752
        %v4340 = vadd.f32 %v4212, %v3758
        %v4341 = vadd.f32 %v4213, %v3762
        %v4342 = vadd.f32 %v4214, %v3768
        %v4343 = vadd.f32 %v4215, %v3772
        %v4344 = vadd.f32 %v4216, %v3778
        %v4345 = vadd.f32 %v4217, %v3782
        %v4346 = vadd.f32 %v4218, %v3788
        %v4347 = vadd.f32 %v4219, %v3792
        %v4348 = vadd.f32 %v4220, %v3798
        %v4349 = vadd.f32 %v4221, %v3802
        %v4350 = vadd.f32 %v4318, %v4286
        %v4351 = vadd.f32 %v4319, %v4287
        %v4352 = vadd.f32 %v4320, %v4288
        %v4353 = vadd.f32 %v4321, %v4289
        %v4354 = vadd.f32 %v4322, %v4290
        %v4355 = vadd.f32 %v4323, %v4291
        %v4356 = vadd.f32 %v4324, %v4292
        %v4357 = vadd.f32 %v4325, %v4293
        %v4358 = vadd.f32 %v4326, %v4294
        %v4359 = vadd.f32 %v4327, %v4295
        %v4360 = vadd.f32 %v4328, %v4296
        %v4361 = vadd.f32 %v4329, %v4297
        %v4362 = vadd.f32 %v4330, %v4298
        %v4363 = vadd.f32 %v4331, %v4299
        %v4364 = vadd.f32 %v4332, %v4300
        %v4365 = vadd.f32 %v4333, %v4301
        %v4366 = vadd.f32 %v4334, %v4302
        %v4367 = vadd.f32 %v4335, %v4303
        %v4368 = vadd.f32 %v4336, %v4304
        %v4369 = vadd.f32 %v4337, %v4305
        %v4370 = vadd.f32 %v4338, %v4306
        %v4371 = vadd.f32 %v4339, %v4307
        %v4372 = vadd.f32 %v4340, %v4308
        %v4373 = vadd.f32 %v4341, %v4309
        %v4374 = vadd.f32 %v4342, %v4310
        %v4375 = vadd.f32 %v4343, %v4311
        %v4376 = vadd.f32 %v4344, %v4312
        %v4377 = vadd.f32 %v4345, %v4313
        %v4378 = vadd.f32 %v4346, %v4314
        %v4379 = vadd.f32 %v4347, %v4315
        %v4380 = vadd.f32 %v4348, %v4316
        %v4381 = vadd.f32 %v4349, %v4317
        %v4382 = vld [vmem:[#allocation6] sm:$0xf]
        %v4383 = vld [vmem:[#allocation6 + $0x4] sm:$0xf]
        %v4384 = vld [vmem:[#allocation6 + $0x8] sm:$0xf]
        %v4385 = vld [vmem:[#allocation6 + $0xc] sm:$0xf]
        %v4386 = vld [vmem:[#allocation6 + $0x10] sm:$0xf]
        %v4387 = vld [vmem:[#allocation6 + $0x14] sm:$0xf]
        %v4388 = vld [vmem:[#allocation6 + $0x18] sm:$0xf]
        %v4389 = vld [vmem:[#allocation6 + $0x1c] sm:$0xf]
        %v4390 = vld [vmem:[#allocation6 + $0x20] sm:$0xf]
        %v4391 = vld [vmem:[#allocation6 + $0x24] sm:$0xf]
        %v4392 = vld [vmem:[#allocation6 + $0x28] sm:$0xf]
        %v4393 = vld [vmem:[#allocation6 + $0x2c] sm:$0xf]
        %v4394 = vld [vmem:[#allocation6 + $0x30] sm:$0xf]
        %v4395 = vld [vmem:[#allocation6 + $0x34] sm:$0xf]
        %v4396 = vld [vmem:[#allocation6 + $0x38] sm:$0xf]
        %v4397 = vld [vmem:[#allocation6 + $0x3c] sm:$0xf]
        %v4430 = vunpack.c.l.b16 %v369
        %v4431 = vunpack.c.l.b16 %v370
        %v4432 = vunpack.c.l.b16 %v371
        %v4433 = vunpack.c.l.b16 %v372
        %v4434 = vunpack.c.l.b16 %v373
        %v4435 = vunpack.c.l.b16 %v374
        %v4436 = vunpack.c.l.b16 %v375
        %v4437 = vunpack.c.l.b16 %v376
        %v4438 = vunpack.c.l.b16 %v377
        %v4439 = vunpack.c.l.b16 %v378
        %v4440 = vunpack.c.l.b16 %v379
        %v4441 = vunpack.c.l.b16 %v380
        %v4442 = vunpack.c.l.b16 %v381
        %v4443 = vunpack.c.l.b16 %v382
        %v4444 = vunpack.c.l.b16 %v383
        %v4445 = vunpack.c.l.b16 %v384
        %v4446 = vunpack.c.l.b16 %v385
        %v4447 = vunpack.c.l.b16 %v386
        %v4448 = vunpack.c.l.b16 %v387
        %v4449 = vunpack.c.l.b16 %v388
        %v4450 = vunpack.c.l.b16 %v389
        %v4451 = vunpack.c.l.b16 %v390
        %v4452 = vunpack.c.l.b16 %v391
        %v4453 = vunpack.c.l.b16 %v392
        %v4454 = vunpack.c.l.b16 %v393
        %v4455 = vunpack.c.l.b16 %v394
        %v4456 = vunpack.c.l.b16 %v395
        %v4457 = vunpack.c.l.b16 %v396
        %v4458 = vunpack.c.l.b16 %v397
        %v4459 = vunpack.c.l.b16 %v398
        %v4460 = vunpack.c.l.b16 %v399
        %v4461 = vunpack.c.l.b16 %v400
        %v4462 = vpack.c.b16 %v4431, %v4430
        %v4463 = vpack.c.b16 %v4433, %v4432
        %v4464 = vpack.c.b16 %v4435, %v4434
        %v4465 = vpack.c.b16 %v4437, %v4436
        %v4466 = vpack.c.b16 %v4439, %v4438
        %v4467 = vpack.c.b16 %v4441, %v4440
        %v4468 = vpack.c.b16 %v4443, %v4442
        %v4469 = vpack.c.b16 %v4445, %v4444
        %v4470 = vpack.c.b16 %v4447, %v4446
        %v4471 = vpack.c.b16 %v4449, %v4448
        %v4472 = vpack.c.b16 %v4451, %v4450
        %v4473 = vpack.c.b16 %v4453, %v4452
        %v4474 = vpack.c.b16 %v4455, %v4454
        %v4475 = vpack.c.b16 %v4457, %v4456
        %v4476 = vpack.c.b16 %v4459, %v4458
        %v4477 = vpack.c.b16 %v4461, %v4460
        %v4510 = vunpack.c.l.b16 %v4382
        %v4511 = vunpack.c.l.b16 %v4383
        %v4512 = vunpack.c.l.b16 %v4384
        %v4513 = vunpack.c.l.b16 %v4385
        %v4514 = vunpack.c.l.b16 %v4386
        %v4515 = vunpack.c.l.b16 %v4387
        %v4516 = vunpack.c.l.b16 %v4388
        %v4517 = vunpack.c.l.b16 %v4389
        %v4518 = vunpack.c.l.b16 %v4390
        %v4519 = vunpack.c.l.b16 %v4391
        %v4520 = vunpack.c.l.b16 %v4392
        %v4521 = vunpack.c.l.b16 %v4393
        %v4522 = vunpack.c.l.b16 %v4394
        %v4523 = vunpack.c.l.b16 %v4395
        %v4524 = vunpack.c.l.b16 %v4396
        %v4525 = vunpack.c.l.b16 %v4397
        %v4526 = vpack.c.b16 %v4511, %v4510
        %v4527 = vpack.c.b16 %v4513, %v4512
        %v4528 = vpack.c.b16 %v4515, %v4514
        %v4529 = vpack.c.b16 %v4517, %v4516
        %v4530 = vpack.c.b16 %v4519, %v4518
        %v4531 = vpack.c.b16 %v4521, %v4520
        %v4532 = vpack.c.b16 %v4523, %v4522
        %v4533 = vpack.c.b16 %v4525, %v4524
        %4542 = vmatprep.subr.bf16.mxu0 0
        %4543 = vmatpush1.bf16.msra.mxu0 %v4526
        %4544 = vmatprep.subr.bf16.mxu0 0
        %4545 = vmatpush1.bf16.msra.mxu0 %v4527
        %4546 = vmatprep.subr.bf16.mxu0 0
        %4547 = vmatpush1.bf16.msra.mxu0 %v4528
        %4548 = vmatprep.subr.bf16.mxu0 0
        %4549 = vmatpush1.bf16.msra.mxu0 %v4529
        %4550 = vmatprep.subr.bf16.mxu0 0
        %4551 = vmatpush1.bf16.msra.mxu0 %v4530
        %4552 = vmatprep.subr.bf16.mxu0 0
        %4553 = vmatpush1.bf16.msra.mxu0 %v4531
        %4554 = vmatprep.subr.bf16.mxu0 0
        %4555 = vmatpush1.bf16.msra.mxu0 %v4532
        %4556 = vmatprep.subr.bf16.mxu0 0
        %4557 = vmatpush1.bf16.msra.mxu0 %v4533
        %4558 = vmatprep.subr.bf16.mxu0 0
        %4559 = vmatpush1.bf16.msra.mxu0 0
        %4560 = vmatprep.subr.bf16.mxu0 0
        %4561 = vmatpush1.bf16.msra.mxu0 0
        %4562 = vmatprep.subr.bf16.mxu0 0
        %4563 = vmatpush1.bf16.msra.mxu0 0
        %4564 = vmatprep.subr.bf16.mxu0 0
        %4565 = vmatpush1.bf16.msra.mxu0 0
        %4566 = vmatprep.subr.bf16.mxu0 0
        %4567 = vmatpush1.bf16.msra.mxu0 0
        %4568 = vmatprep.subr.bf16.mxu0 0
        %4569 = vmatpush1.bf16.msra.mxu0 0
        %4570 = vmatprep.subr.bf16.mxu0 0
        %4571 = vmatpush1.bf16.msra.mxu0 0
        %4572 = vmatprep.subr.bf16.mxu0 0
        %4573 = vmatpush1.bf16.msra.mxu0 0
        %4574 = vmatprep.mubr.bf16.mxu0 0
        %4575 = vmatmul.mubr.bf16.gmra.mrb[0].mxu0 %v4462
        %v4576 = vpop.f32.mrb[0].mxu0
        %v4577 = vadd.f32 %v4350, %v4576
        %v4578 = vpop.f32.mrb[0].mxu0
        %v4579 = vpop.f32.mrb[0].mxu0
        %v4580 = vadd.f32 %v4351, %v4579
        %v4581 = vpop.f32.mrb[0].mxu0
        %4582 = vmatprep.mubr.bf16.mxu0 0
        %4583 = vmatmul.mubr.bf16.gmra.mrb[0].mxu0 %v4463
        %v4584 = vpop.f32.mrb[0].mxu0
        %v4585 = vadd.f32 %v4352, %v4584
        %v4586 = vpop.f32.mrb[0].mxu0
        %v4587 = vpop.f32.mrb[0].mxu0
        %v4588 = vadd.f32 %v4353, %v4587
        %v4589 = vpop.f32.mrb[0].mxu0
        %4590 = vmatprep.mubr.bf16.mxu0 0
        %4591 = vmatmul.mubr.bf16.gmra.mrb[0].mxu0 %v4464
        %v4592 = vpop.f32.mrb[0].mxu0
        %v4593 = vadd.f32 %v4354, %v4592
        %v4594 = vpop.f32.mrb[0].mxu0
        %v4595 = vpop.f32.mrb[0].mxu0
        %v4596 = vadd.f32 %v4355, %v4595
        %v4597 = vpop.f32.mrb[0].mxu0
        %4598 = vmatprep.mubr.bf16.mxu0 0
        %4599 = vmatmul.mubr.bf16.gmra.mrb[0].mxu0 %v4465
        %v4600 = vpop.f32.mrb[0].mxu0
        %v4601 = vadd.f32 %v4356, %v4600
        %v4602 = vpop.f32.mrb[0].mxu0
        %v4603 = vpop.f32.mrb[0].mxu0
        %v4604 = vadd.f32 %v4357, %v4603
        %v4605 = vpop.f32.mrb[0].mxu0
        %4606 = vmatprep.mubr.bf16.mxu0 0
        %4607 = vmatmul.mubr.bf16.gmra.mrb[0].mxu0 %v4466
        %v4608 = vpop.f32.mrb[0].mxu0
        %v4609 = vadd.f32 %v4358, %v4608
        %v4610 = vpop.f32.mrb[0].mxu0
        %v4611 = vpop.f32.mrb[0].mxu0
        %v4612 = vadd.f32 %v4359, %v4611
        %v4613 = vpop.f32.mrb[0].mxu0
        %4614 = vmatprep.mubr.bf16.mxu0 0
        %4615 = vmatmul.mubr.bf16.gmra.mrb[0].mxu0 %v4467
        %v4616 = vpop.f32.mrb[0].mxu0
        %v4617 = vadd.f32 %v4360, %v4616
        %v4618 = vpop.f32.mrb[0].mxu0
        %v4619 = vpop.f32.mrb[0].mxu0
        %v4620 = vadd.f32 %v4361, %v4619
        %v4621 = vpop.f32.mrb[0].mxu0
        %4622 = vmatprep.mubr.bf16.mxu0 0
        %4623 = vmatmul.mubr.bf16.gmra.mrb[0].mxu0 %v4468
        %v4624 = vpop.f32.mrb[0].mxu0
        %v4625 = vadd.f32 %v4362, %v4624
        %v4626 = vpop.f32.mrb[0].mxu0
        %v4627 = vpop.f32.mrb[0].mxu0
        %v4628 = vadd.f32 %v4363, %v4627
        %v4629 = vpop.f32.mrb[0].mxu0
        %4630 = vmatprep.mubr.bf16.mxu0 0
        %4631 = vmatmul.mubr.bf16.gmra.mrb[0].mxu0 %v4469
        %v4632 = vpop.f32.mrb[0].mxu0
        %v4633 = vadd.f32 %v4364, %v4632
        %v4634 = vpop.f32.mrb[0].mxu0
        %v4635 = vpop.f32.mrb[0].mxu0
        %v4636 = vadd.f32 %v4365, %v4635
        %v4637 = vpop.f32.mrb[0].mxu0
        %4638 = vmatprep.mubr.bf16.mxu0 0
        %4639 = vmatmul.mubr.bf16.gmra.mrb[0].mxu0 %v4470
        %v4640 = vpop.f32.mrb[0].mxu0
        %v4641 = vadd.f32 %v4366, %v4640
        %v4642 = vpop.f32.mrb[0].mxu0
        %v4643 = vpop.f32.mrb[0].mxu0
        %v4644 = vadd.f32 %v4367, %v4643
        %v4645 = vpop.f32.mrb[0].mxu0
        %4646 = vmatprep.mubr.bf16.mxu0 0
        %4647 = vmatmul.mubr.bf16.gmra.mrb[0].mxu0 %v4471
        %v4648 = vpop.f32.mrb[0].mxu0
        %v4649 = vadd.f32 %v4368, %v4648
        %v4650 = vpop.f32.mrb[0].mxu0
        %v4651 = vpop.f32.mrb[0].mxu0
        %v4652 = vadd.f32 %v4369, %v4651
        %v4653 = vpop.f32.mrb[0].mxu0
        %4654 = vmatprep.mubr.bf16.mxu0 0
        %4655 = vmatmul.mubr.bf16.gmra.mrb[0].mxu0 %v4472
        %v4656 = vpop.f32.mrb[0].mxu0
        %v4657 = vadd.f32 %v4370, %v4656
        %v4658 = vpop.f32.mrb[0].mxu0
        %v4659 = vpop.f32.mrb[0].mxu0
        %v4660 = vadd.f32 %v4371, %v4659
        %v4661 = vpop.f32.mrb[0].mxu0
        %4662 = vmatprep.mubr.bf16.mxu0 0
        %4663 = vmatmul.mubr.bf16.gmra.mrb[0].mxu0 %v4473
        %v4664 = vpop.f32.mrb[0].mxu0
        %v4665 = vadd.f32 %v4372, %v4664
        %v4666 = vpop.f32.mrb[0].mxu0
        %v4667 = vpop.f32.mrb[0].mxu0
        %v4668 = vadd.f32 %v4373, %v4667
        %v4669 = vpop.f32.mrb[0].mxu0
        %4670 = vmatprep.mubr.bf16.mxu0 0
        %4671 = vmatmul.mubr.bf16.gmra.mrb[0].mxu0 %v4474
        %v4672 = vpop.f32.mrb[0].mxu0
        %v4673 = vadd.f32 %v4374, %v4672
        %v4674 = vpop.f32.mrb[0].mxu0
        %v4675 = vpop.f32.mrb[0].mxu0
        %v4676 = vadd.f32 %v4375, %v4675
        %v4677 = vpop.f32.mrb[0].mxu0
        %4678 = vmatprep.mubr.bf16.mxu0 0
        %4679 = vmatmul.mubr.bf16.gmra.mrb[0].mxu0 %v4475
        %v4680 = vpop.f32.mrb[0].mxu0
        %v4681 = vadd.f32 %v4376, %v4680
        %v4682 = vpop.f32.mrb[0].mxu0
        %v4683 = vpop.f32.mrb[0].mxu0
        %v4684 = vadd.f32 %v4377, %v4683
        %v4685 = vpop.f32.mrb[0].mxu0
        %4686 = vmatprep.mubr.bf16.mxu0 0
        %4687 = vmatmul.mubr.bf16.gmra.mrb[0].mxu0 %v4476
        %v4688 = vpop.f32.mrb[0].mxu0
        %v4689 = vadd.f32 %v4378, %v4688
        %v4690 = vpop.f32.mrb[0].mxu0
        %v4691 = vpop.f32.mrb[0].mxu0
        %v4692 = vadd.f32 %v4379, %v4691
        %v4693 = vpop.f32.mrb[0].mxu0
        %4694 = vmatprep.mubr.bf16.mxu0 0
        %4695 = vmatmul.mubr.bf16.gmra.mrb[0].mxu0 %v4477
        %v4696 = vpop.f32.mrb[0].mxu0
        %v4697 = vadd.f32 %v4380, %v4696
        %v4698 = vpop.f32.mrb[0].mxu0
        %v4699 = vpop.f32.mrb[0].mxu0
        %v4700 = vadd.f32 %v4381, %v4699
        %v4701 = vpop.f32.mrb[0].mxu0
        %4702 = vdwg.mxu0
        %4703 = vst [vmem:[%s367] sm:$0xff] %v4577
        %4704 = vst [vmem:[%s367 + $0x8] sm:$0xff] %v4580
        %4705 = vst [vmem:[%s367 + $0x10] sm:$0xff] %v4585
        %4706 = vst [vmem:[%s367 + $0x18] sm:$0xff] %v4588
        %4707 = vst [vmem:[%s367 + $0x20] sm:$0xff] %v4593
        %4708 = vst [vmem:[%s367 + $0x28] sm:$0xff] %v4596
        %4709 = vst [vmem:[%s367 + $0x30] sm:$0xff] %v4601
        %4710 = vst [vmem:[%s367 + $0x38] sm:$0xff] %v4604
        %4711 = vst [vmem:[%s367 + $0x40] sm:$0xff] %v4609
        %4712 = vst [vmem:[%s367 + $0x48] sm:$0xff] %v4612
        %4713 = vst [vmem:[%s367 + $0x50] sm:$0xff] %v4617
        %4714 = vst [vmem:[%s367 + $0x58] sm:$0xff] %v4620
        %4715 = vst [vmem:[%s367 + $0x60] sm:$0xff] %v4625
        %4716 = vst [vmem:[%s367 + $0x68] sm:$0xff] %v4628
        %4717 = vst [vmem:[%s367 + $0x70] sm:$0xff] %v4633
        %4718 = vst [vmem:[%s367 + $0x78] sm:$0xff] %v4636
        %4719 = vst [vmem:[%s367 + $0x80] sm:$0xff] %v4641
        %4720 = vst [vmem:[%s367 + $0x88] sm:$0xff] %v4644
        %4721 = vst [vmem:[%s367 + $0x90] sm:$0xff] %v4649
        %4722 = vst [vmem:[%s367 + $0x98] sm:$0xff] %v4652
        %4723 = vst [vmem:[%s367 + $0xa0] sm:$0xff] %v4657
        %4724 = vst [vmem:[%s367 + $0xa8] sm:$0xff] %v4660
        %4725 = vst [vmem:[%s367 + $0xb0] sm:$0xff] %v4665
        %4726 = vst [vmem:[%s367 + $0xb8] sm:$0xff] %v4668
        %4727 = vst [vmem:[%s367 + $0xc0] sm:$0xff] %v4673
        %4728 = vst [vmem:[%s367 + $0xc8] sm:$0xff] %v4676
        %4729 = vst [vmem:[%s367 + $0xd0] sm:$0xff] %v4681
        %4730 = vst [vmem:[%s367 + $0xd8] sm:$0xff] %v4684
        %4731 = vst [vmem:[%s367 + $0xe0] sm:$0xff] %v4689
        %4732 = vst [vmem:[%s367 + $0xe8] sm:$0xff] %v4692
        %4733 = vst [vmem:[%s367 + $0xf0] sm:$0xff] %v4697
        %4734 = vst [vmem:[%s367 + $0xf8] sm:$0xff] %v4700
        %s4735 = sand.u32 %s208, 1
        %s4736 = scalar_lea.sflag [#allocation5], %s4735
        %s4737 = sand.u32 %s208, 1
        %s4738 = smul.addr %s4737, 256
        %s4739 = scalar_lea.vmem [#allocation11], %s4738
        // Predicated region
        $region69: #{tpu_custom_call.1} parent=51 // pred_check
          %p4740 = pneg %p218
        $region70: #{tpu_custom_call.1} parent=51 // pred_check_branch
          %4742 = sbr.rel (%p4740) target = $region72
        $region71: #{tpu_custom_call.1} parent=51 // pred_region
          %s4744 = ssub.s32 4096, 4096
          %4745 = vsyncadd %s4736, %s4744
          %s4746 = smul.addr %s27, 32
          %s4747 = smul.addr %s4746, 128
          %s4748 = scalar_lea.hbm %s8, %s4747
          %s4749 = sshll.u32 %s4739, 4
          %s4750 = int_to_ptr.vmem [resolvable:$true] %s4749
          %4755 = dma.vmem_to_hbm [thread:$0]  %s4750, 4096, %s4748, %s4736, 128, 128, 8
        $region72: #{tpu_custom_call.1} parent=51 // pred_fallthru
          _
      $region52: #{tpu_custom_call.1} parent=5 // pred_fallthru
        _
      %p4756 = scmp.le.s32.totalorder 2, %s22
      // Predicated region
      $region73: #{tpu_custom_call.1} parent=5 // pred_check
        %p4757 = pneg %p4756
      $region74: #{tpu_custom_call.1} parent=5 // pred_check_branch
        %4759 = sbr.rel (%p4757) target = $region76
      $region75: #{tpu_custom_call.1} parent=5 // pred_region
        %s4760 = ssub.s32 %s22, 2
        // Predicated region
        $region77: #{tpu_custom_call.1} parent=75 // pred_check
          %p4761 = pneg %p224
        $region78: #{tpu_custom_call.1} parent=75 // pred_check_branch
          %4763 = sbr.rel (%p4761) target = $region80
        $region79: #{tpu_custom_call.1} parent=75 // pred_region
          %s4764 = sand.u32 %s209, 1
          %s4765 = scalar_lea.sflag [#allocation5], %s4764
          %s4766 = sand.u32 %s209, 1
          %s4767 = smul.addr %s4766, 256
          %s4768 = scalar_lea.vmem [#allocation11], %s4767
          %4769 = dma.done %s4765, 4096
        $region80: #{tpu_custom_call.1} parent=75 // pred_fallthru
          _
      $region76: #{tpu_custom_call.1} parent=5 // pred_fallthru
        _
    $region6: #{tpu_custom_call.1} parent=1 // loop_footer
      %s26 = sadd.s32 1, %s22
    $region7: #{tpu_custom_call.1} parent=1 // loop_footer_branch
      %21 = sbr.rel target = $region3
    $region8: #{tpu_custom_call.1} parent=1 // loop_exit
      _
    %4770 = vsyncpa [#allocation4], 1
    %s4771 = scalar_lea.sflag [#allocation4], 1
    %4772 = vsyncpa %s4771, 1
    %4773 = vsyncpa [#allocation7], 1
    %4774 = vsyncpa [#allocation10], 1
    %4775 = vsyncpa [#allocation5], 1
    %s4776 = scalar_lea.sflag [#allocation5], 1
    %4777 = vsyncpa %s4776, 1

</llo_original>
